<compile_context>
chip_gen: v7x
topology: tpu7x:2x2x1
jax: 0.10.0
libtpu: 0.0.40
codegen_flags: <defaults>
</compile_context>

<pallas_src>
import jax
import jax.numpy as jnp
from jax.experimental import pallas as pl
from jax.experimental.pallas import tpu as pltpu


# ---------------------------------------------------------------------------
# Fused kernel: per-point MLP (BN folded, ReLU) + global max pool + classifier
#   grid = (B, Np // tn); batch axis "parallel", N-tile axis "arbitrary" with
#   both outputs resident in VMEM across it.
# ---------------------------------------------------------------------------
def pointnet_kernel(x_ref, w1_ref, b1_ref, w2_ref, b2_ref, w3_ref, b3_ref,
                    w4_ref, b4_ref, w5_ref, b5_ref, w6_ref, b6_ref,
                    gf_ref, out_ref):
    nt = pl.program_id(1)
    last = pl.num_programs(1) - 1

    @pl.when(nt == 0)
    def _init():
        gf_ref[...] = jnp.full_like(gf_ref, -jnp.inf)

    x = x_ref[...]                                       # (tn, Cin) f32
    w1 = w1_ref[...]                                     # (Cin, 64) f32
    cin = x.shape[1]

    # conv1 (Cin -> 64): tiny K, do it on the VPU as Cin broadcast FMAs
    # instead of a degenerate MXU pass.
    acc = x[:, 0:1] * w1[0:1, :]
    for k in range(1, cin):
        acc = acc + x[:, k:k + 1] * w1[k:k + 1, :]
    h = jnp.maximum(acc + b1_ref[...], 0.0)              # (tn, 64) f32

    # conv2s[0]: 64 -> 128  (bf16 MXU, f32 accumulate / bias / ReLU)
    h = jnp.dot(h.astype(jnp.bfloat16), w2_ref[...],
                preferred_element_type=jnp.float32) + b2_ref[...]
    h = jnp.maximum(h, 0.0)
    # conv2s[1]: 128 -> 1024
    h = jnp.dot(h.astype(jnp.bfloat16), w3_ref[...],
                preferred_element_type=jnp.float32) + b3_ref[...]
    h = jnp.maximum(h, 0.0)                               # (tn, 1024) f32

    # running global max-pool over points; output block resident across nt
    gf_ref[...] = jnp.maximum(gf_ref[...], jnp.max(h, axis=0, keepdims=True))

    # fused classifier head on the final reduction step
    # (MLP applies Linear+BN+ReLU uniformly to every layer, per mvtorch blocks)
    @pl.when(nt == last)
    def _head():
        g = gf_ref[...].astype(jnp.bfloat16)              # (1, 1024)
        y = jnp.maximum(
            jnp.dot(g, w4_ref[...],
                    preferred_element_type=jnp.float32) + b4_ref[...], 0.0)
        y = jnp.maximum(
            jnp.dot(y.astype(jnp.bfloat16), w5_ref[...],
                    preferred_element_type=jnp.float32) + b5_ref[...], 0.0)
        y = jnp.maximum(
            jnp.dot(y.astype(jnp.bfloat16), w6_ref[...],
                    preferred_element_type=jnp.float32) + b6_ref[...], 0.0)
        out_ref[...] = y                                  # (1, NCP) lane-dense


# ---------------------------------------------------------------------------
# Parameter folding (inference-mode BatchNorm folded into conv/linear)
# ---------------------------------------------------------------------------
def fold_bn(W, b, gamma, beta, mean, var, eps=1e-5):
    """W: [Cout, Cin] (Conv1d k=1 / Linear), b: [Cout].  Returns channels-last
    folded weight [Cin, Cout] and bias [1, Cout] so BN(conv(x)) = x @ Wf + bf."""
    s = gamma / jnp.sqrt(var + eps)
    Wf = (W * s[:, None]).T.astype(jnp.float32)            # [Cin, Cout]
    bf = ((b - mean) * s + beta).reshape(1, -1).astype(jnp.float32)
    return Wf, bf


# ---------------------------------------------------------------------------
# Wrapper: full PointNet forward (alignment=False, segmentation=False)
# ---------------------------------------------------------------------------
def pointnet_forward(x, params, tn=256, eps=1e-5):
    B, Cin, N = x.shape

    w1, b1 = fold_bn(*params["conv1"], eps=eps)
    w2, b2 = fold_bn(*params["conv2a"], eps=eps)
    w3, b3 = fold_bn(*params["conv2b"], eps=eps)
    w4, b4 = fold_bn(*params["fc1"], eps=eps)
    w5, b5 = fold_bn(*params["fc2"], eps=eps)
    w6, b6 = fold_bn(*params["fc3"], eps=eps)
    C1, C2, C3 = w1.shape[1], w2.shape[1], w3.shape[1]
    C4, C5 = w4.shape[1], w5.shape[1]
    NC = w6.shape[1]
    NCP = ((NC + 127) // 128) * 128     # lane-dense padded logits width

    # MXU operands in bf16 (layer 1 stays f32 on the VPU); biases stay f32.
    w2b, w3b = w2.astype(jnp.bfloat16), w3.astype(jnp.bfloat16)
    w4b, w5b = w4.astype(jnp.bfloat16), w5.astype(jnp.bfloat16)
    w6p = jnp.zeros((C5, NCP), jnp.float32).at[:, :NC].set(w6).astype(jnp.bfloat16)
    b6p = jnp.zeros((1, NCP), jnp.float32).at[:, :NC].set(b6)

    # channels-last points; pad N to a tile multiple by replicating the last
    # point (valid ONLY because the point reduction is a max-pool; a
    # segmentation/per-point head would need masking instead).
    x_nc = jnp.transpose(x, (0, 2, 1)).astype(jnp.float32)     # [B, N, Cin]
    Np = ((N + tn - 1) // tn) * tn
    if Np != N:
        pad = Np - N
        x_nc = jnp.concatenate(
            [x_nc, jnp.broadcast_to(x_nc[:, -1:, :], (B, pad, Cin))], axis=1)

    gf, logits_p = pl.pallas_call(
        pointnet_kernel,
        out_shape=(jax.ShapeDtypeStruct((B, 1, C3), jnp.float32),
                   jax.ShapeDtypeStruct((B, 1, NCP), jnp.float32)),
        grid_spec=pltpu.PrefetchScalarGridSpec(
            num_scalar_prefetch=0,
            grid=(B, Np // tn),
            in_specs=[
                pl.BlockSpec((None, tn, Cin), lambda b, n: (b, n, 0)),   # x tile
                pl.BlockSpec((Cin, C1), lambda b, n: (0, 0)),            # w1 (f32)
                pl.BlockSpec((1, C1), lambda b, n: (0, 0)),              # b1
                pl.BlockSpec((C1, C2), lambda b, n: (0, 0)),             # w2 (bf16)
                pl.BlockSpec((1, C2), lambda b, n: (0, 0)),              # b2
                pl.BlockSpec((C2, C3), lambda b, n: (0, 0)),             # w3 (bf16)
                pl.BlockSpec((1, C3), lambda b, n: (0, 0)),              # b3
                pl.BlockSpec((C3, C4), lambda b, n: (0, 0)),             # w4 (bf16)
                pl.BlockSpec((1, C4), lambda b, n: (0, 0)),              # b4
                pl.BlockSpec((C4, C5), lambda b, n: (0, 0)),             # w5 (bf16)
                pl.BlockSpec((1, C5), lambda b, n: (0, 0)),              # b5
                pl.BlockSpec((C5, NCP), lambda b, n: (0, 0)),            # w6 (bf16, padded)
                pl.BlockSpec((1, NCP), lambda b, n: (0, 0)),             # b6 (padded)
            ],
            out_specs=[
                pl.BlockSpec((None, 1, C3), lambda b, n: (b, 0, 0)),     # global feature
                pl.BlockSpec((None, 1, NCP), lambda b, n: (b, 0, 0)),    # logits (padded)
            ],
        ),
        compiler_params=pltpu.CompilerParams(
            dimension_semantics=("parallel", "arbitrary")),
    )(x_nc, w1, b1, w2b, b2, w3b, b3, w4b, b4, w5b, b5, w6p, b6p)

    global_feature = gf.reshape(B, C3)                     # [B, 1024]
    logits = logits_p.reshape(B, NCP)[:, :NC]              # [B, num_classes]
    # transform is None because alignment=False
    return logits, global_feature, None


# ---------------------------------------------------------------------------
# Pure-JAX f32 reference mirroring the PyTorch forward (inference mode)
# ---------------------------------------------------------------------------
def ref_forward(x, params, eps=1e-5):
    hi = jax.lax.Precision.HIGHEST

    def conv_bn_relu(h, layer):                            # h: [B, C, N]
        W, b, g, be, m, v = layer
        y = jnp.einsum("oc,bcn->bon", W, h, precision=hi) + b[None, :, None]
        y = (y - m[None, :, None]) * (g / jnp.sqrt(v + eps))[None, :, None] \
            + be[None, :, None]
        return jnp.maximum(y, 0.0)

    def lin_bn_relu(h, layer):                             # h: [B, C]
        W, b, g, be, m, v = layer
        y = jnp.dot(h, W.T, precision=hi) + b
        y = (y - m) * (g / jnp.sqrt(v + eps)) + be
        return jnp.maximum(y, 0.0)

    h = conv_bn_relu(x, params["conv1"])
    h = conv_bn_relu(h, params["conv2a"])
    h = conv_bn_relu(h, params["conv2b"])
    gf = jnp.max(h, axis=2)                                # [B, 1024]
    h = lin_bn_relu(gf, params["fc1"])
    h = lin_bn_relu(h, params["fc2"])
    h = lin_bn_relu(h, params["fc3"])
    return h, gf, None


# ---------------------------------------------------------------------------
# Parameter construction (Conv1d/Linear weight + bias, BN gamma/beta/stats)
# ---------------------------------------------------------------------------
def init_params(key, in_size=3, num_classes=40):
    layers = [("conv1", in_size, 64), ("conv2a", 64, 128), ("conv2b", 128, 1024),
              ("fc1", 1024, 512), ("fc2", 512, 256), ("fc3", 256, num_classes)]
    params = {}
    for name, cin, cout in layers:
        key, k1, k2, k3, k4, k5, k6 = jax.random.split(key, 7)
        W = jax.random.normal(k1, (cout, cin), jnp.float32) / jnp.sqrt(cin)
        b = 0.1 * jax.random.normal(k2, (cout,), jnp.float32)
        gamma = 1.0 + 0.1 * jax.random.normal(k3, (cout,), jnp.float32)
        beta = 0.1 * jax.random.normal(k4, (cout,), jnp.float32)
        mean = 0.1 * jax.random.normal(k5, (cout,), jnp.float32)
        var = jax.random.uniform(k6, (cout,), jnp.float32, minval=0.5, maxval=1.5)
        params[name] = (W, b, gamma, beta, mean, var)
    return params


if __name__ == "__main__":
    key = jax.random.PRNGKey(0)
    B, in_size, N, num_classes = 2, 3, 256, 40

    k_x, k_p = jax.random.split(key)
    x = jax.random.normal(k_x, (B, in_size, N), dtype=jnp.float32)
    params = init_params(k_p, in_size=in_size, num_classes=num_classes)

    logits, global_feature, transform = pointnet_forward(x, params, tn=256)
    logits = jax.block_until_ready(logits)
    global_feature = jax.block_until_ready(global_feature)

    ref_logits, ref_gf, _ = ref_forward(x, params)

    assert logits.shape == (B, num_classes), logits.shape
    assert global_feature.shape == (B, 1024), global_feature.shape
    assert transform is None
    # bf16 MXU operands vs f32 reference -> relaxed tolerances
    assert jnp.allclose(global_feature, ref_gf, atol=5e-2, rtol=3e-2), \
        "global feature mismatch vs reference"
    assert jnp.allclose(logits, ref_logits, atol=1e-1, rtol=3e-2), \
        "logits mismatch vs reference"

    print("KERNEL_OK")
</pallas_src>

<mosaic_0001>
module attributes {stable_mosaic.version = 11 : i64} {
  func.func @pointnet_kernel(%arg0: i32, %arg1: i32, %arg2: memref<1x256x3xf32, #tpu.memory_space<vmem>>, %arg3: memref<3x64xf32, #tpu.memory_space<vmem>>, %arg4: memref<1x64xf32, #tpu.memory_space<vmem>>, %arg5: memref<64x128xbf16, #tpu.memory_space<vmem>>, %arg6: memref<1x128xf32, #tpu.memory_space<vmem>>, %arg7: memref<128x1024xbf16, #tpu.memory_space<vmem>>, %arg8: memref<1x1024xf32, #tpu.memory_space<vmem>>, %arg9: memref<1024x512xbf16, #tpu.memory_space<vmem>>, %arg10: memref<1x512xf32, #tpu.memory_space<vmem>>, %arg11: memref<512x256xbf16, #tpu.memory_space<vmem>>, %arg12: memref<1x256xf32, #tpu.memory_space<vmem>>, %arg13: memref<256x128xbf16, #tpu.memory_space<vmem>>, %arg14: memref<1x128xf32, #tpu.memory_space<vmem>>, %arg15: memref<1x1x1024xf32, #tpu.memory_space<vmem>>, %arg16: memref<1x1x128xf32, #tpu.memory_space<vmem>>) attributes {dimension_semantics = [#tpu.dimension_semantics<parallel>, #tpu.dimension_semantics<arbitrary>], iteration_bounds = array<i64: 2, 1>, scalar_prefetch = 0 : i64, scratch_operands = 0 : i64, tpu.core_type = #tpu.core_type<tc>, window_params = [{transform_indices = @transform_0, window_bounds = array<i64: 1, 256, 3>}, {pipeline_mode = #tpu.pipeline_mode<synchronous>, transform_indices = @transform_1, window_bounds = array<i64: 3, 64>}, {pipeline_mode = #tpu.pipeline_mode<synchronous>, transform_indices = @transform_2, window_bounds = array<i64: 1, 64>}, {pipeline_mode = #tpu.pipeline_mode<synchronous>, transform_indices = @transform_3, window_bounds = array<i64: 64, 128>}, {pipeline_mode = #tpu.pipeline_mode<synchronous>, transform_indices = @transform_4, window_bounds = array<i64: 1, 128>}, {pipeline_mode = #tpu.pipeline_mode<synchronous>, transform_indices = @transform_5, window_bounds = array<i64: 128, 1024>}, {pipeline_mode = #tpu.pipeline_mode<synchronous>, transform_indices = @transform_6, window_bounds = array<i64: 1, 1024>}, {pipeline_mode = #tpu.pipeline_mode<synchronous>, transform_indices = @transform_7, window_bounds = array<i64: 1024, 512>}, {pipeline_mode = #tpu.pipeline_mode<synchronous>, transform_indices = @transform_8, window_bounds = array<i64: 1, 512>}, {pipeline_mode = #tpu.pipeline_mode<synchronous>, transform_indices = @transform_9, window_bounds = array<i64: 512, 256>}, {pipeline_mode = #tpu.pipeline_mode<synchronous>, transform_indices = @transform_10, window_bounds = array<i64: 1, 256>}, {pipeline_mode = #tpu.pipeline_mode<synchronous>, transform_indices = @transform_11, window_bounds = array<i64: 256, 128>}, {pipeline_mode = #tpu.pipeline_mode<synchronous>, transform_indices = @transform_12, window_bounds = array<i64: 1, 128>}, {transform_indices = @transform_13, window_bounds = array<i64: 1, 1, 1024>}, {transform_indices = @transform_14, window_bounds = array<i64: 1, 1, 128>}]} {
    %c0_i32 = arith.constant 0 : i32
    %0 = arith.cmpi eq, %arg1, %c0_i32 : i32
    %1 = arith.extui %0 : i1 to i32
    %c0_i32_0 = arith.constant 0 : i32
    %2 = arith.cmpi ne, %1, %c0_i32_0 : i32
    scf.if %2 {
      %cst_28 = arith.constant 0xFF800000 : f32
      %55 = vector.broadcast %cst_28 : f32 to vector<1x1024xf32>
      %c0_29 = arith.constant 0 : index
      %c0_30 = arith.constant 0 : index
      %c0_31 = arith.constant 0 : index
      %56 = vector.load %arg15[%c0_29, %c0_30, %c0_31] : memref<1x1x1024xf32, #tpu.memory_space<vmem>>, vector<1x1x1024xf32>
      %57 = vector.shape_cast %56 : vector<1x1x1024xf32> to vector<1x1024xf32>
      %58 = vector.shape_cast %55 : vector<1x1024xf32> to vector<1x1x1024xf32>
      tpu.vector_store %arg15[%c0_29, %c0_30, %c0_31], %58 {strides = array<i32>} : memref<1x1x1024xf32, #tpu.memory_space<vmem>>, vector<1x1x1024xf32>,
    } else {
    }
    %c0 = arith.constant 0 : index
    %c0_1 = arith.constant 0 : index
    %c0_2 = arith.constant 0 : index
    %3 = vector.load %arg2[%c0, %c0_1, %c0_2] : memref<1x256x3xf32, #tpu.memory_space<vmem>>, vector<1x256x3xf32>
    %4 = vector.shape_cast %3 : vector<1x256x3xf32> to vector<256x3xf32>
    %c0_3 = arith.constant 0 : index
    %c0_4 = arith.constant 0 : index
    %5 = vector.load %arg3[%c0_3, %c0_4] : memref<3x64xf32, #tpu.memory_space<vmem>>, vector<3x64xf32>
    %6 = vector.extract_strided_slice %4 {offsets = [0, 0], sizes = [256, 1], strides = [1, 1]} : vector<256x3xf32> to vector<256x1xf32>
    %7 = vector.extract_strided_slice %5 {offsets = [0, 0], sizes = [1, 64], strides = [1, 1]} : vector<3x64xf32> to vector<1x64xf32>
    %8 = vector.broadcast %6 : vector<256x1xf32> to vector<256x64xf32>
    %9 = vector.broadcast %7 : vector<1x64xf32> to vector<256x64xf32>
    %10 = arith.mulf %8, %9 : vector<256x64xf32>
    %11 = vector.extract_strided_slice %4 {offsets = [0, 1], sizes = [256, 1], strides = [1, 1]} : vector<256x3xf32> to vector<256x1xf32>
    %12 = vector.extract_strided_slice %5 {offsets = [1, 0], sizes = [1, 64], strides = [1, 1]} : vector<3x64xf32> to vector<1x64xf32>
    %13 = vector.broadcast %11 : vector<256x1xf32> to vector<256x64xf32>
    %14 = vector.broadcast %12 : vector<1x64xf32> to vector<256x64xf32>
    %15 = arith.mulf %13, %14 : vector<256x64xf32>
    %16 = arith.addf %10, %15 : vector<256x64xf32>
    %17 = vector.extract_strided_slice %4 {offsets = [0, 2], sizes = [256, 1], strides = [1, 1]} : vector<256x3xf32> to vector<256x1xf32>
    %18 = vector.extract_strided_slice %5 {offsets = [2, 0], sizes = [1, 64], strides = [1, 1]} : vector<3x64xf32> to vector<1x64xf32>
    %19 = vector.broadcast %17 : vector<256x1xf32> to vector<256x64xf32>
    %20 = vector.broadcast %18 : vector<1x64xf32> to vector<256x64xf32>
    %21 = arith.mulf %19, %20 : vector<256x64xf32>
    %22 = arith.addf %16, %21 : vector<256x64xf32>
    %c0_5 = arith.constant 0 : index
    %c0_6 = arith.constant 0 : index
    %23 = vector.load %arg4[%c0_5, %c0_6] : memref<1x64xf32, #tpu.memory_space<vmem>>, vector<1x64xf32>
    %24 = vector.broadcast %23 : vector<1x64xf32> to vector<256x64xf32>
    %25 = arith.addf %22, %24 : vector<256x64xf32>
    %cst = arith.constant 0.000000e+00 : f32
    %26 = vector.broadcast %cst : f32 to vector<256x64xf32>
    %27 = arith.maximumf %25, %26 : vector<256x64xf32>
    %28 = arith.truncf %27 : vector<256x64xf32> to vector<256x64xbf16>
    %c0_7 = arith.constant 0 : index
    %c0_8 = arith.constant 0 : index
    %29 = vector.load %arg5[%c0_7, %c0_8] : memref<64x128xbf16, #tpu.memory_space<vmem>>, vector<64x128xbf16>
    %cst_9 = arith.constant dense<0.000000e+00> : vector<256x128xf32>
    %30 = tpu.matmul %28, %29, %cst_9 {dimension_numbers = #tpu.dot_dimension_numbers<[1], [0], [0], [1], [0, 0, 1, 1], [], []>} : vector<256x64xbf16>, vector<64x128xbf16>, vector<256x128xf32> -> vector<256x128xf32>
    %c0_10 = arith.constant 0 : index
    %c0_11 = arith.constant 0 : index
    %31 = vector.load %arg6[%c0_10, %c0_11] : memref<1x128xf32, #tpu.memory_space<vmem>>, vector<1x128xf32>
    %32 = vector.broadcast %31 : vector<1x128xf32> to vector<256x128xf32>
    %33 = arith.addf %30, %32 : vector<256x128xf32>
    %cst_12 = arith.constant 0.000000e+00 : f32
    %34 = vector.broadcast %cst_12 : f32 to vector<256x128xf32>
    %35 = arith.maximumf %33, %34 : vector<256x128xf32>
    %36 = arith.truncf %35 : vector<256x128xf32> to vector<256x128xbf16>
    %c0_13 = arith.constant 0 : index
    %c0_14 = arith.constant 0 : index
    %37 = vector.load %arg7[%c0_13, %c0_14] : memref<128x1024xbf16, #tpu.memory_space<vmem>>, vector<128x1024xbf16>
    %cst_15 = arith.constant dense<0.000000e+00> : vector<256x1024xf32>
    %38 = tpu.matmul %36, %37, %cst_15 {dimension_numbers = #tpu.dot_dimension_numbers<[1], [0], [0], [1], [0, 0, 1, 1], [], []>} : vector<256x128xbf16>, vector<128x1024xbf16>, vector<256x1024xf32> -> vector<256x1024xf32>
    %c0_16 = arith.constant 0 : index
    %c0_17 = arith.constant 0 : index
    %39 = vector.load %arg8[%c0_16, %c0_17] : memref<1x1024xf32, #tpu.memory_space<vmem>>, vector<1x1024xf32>
    %40 = vector.broadcast %39 : vector<1x1024xf32> to vector<256x1024xf32>
    %41 = arith.addf %38, %40 : vector<256x1024xf32>
    %cst_18 = arith.constant 0.000000e+00 : f32
    %42 = vector.broadcast %cst_18 : f32 to vector<256x1024xf32>
    %43 = arith.maximumf %41, %42 : vector<256x1024xf32>
    %c0_19 = arith.constant 0 : index
    %c0_20 = arith.constant 0 : index
    %c0_21 = arith.constant 0 : index
    %44 = vector.load %arg15[%c0_19, %c0_20, %c0_21] : memref<1x1x1024xf32, #tpu.memory_space<vmem>>, vector<1x1x1024xf32>
    %45 = vector.shape_cast %44 : vector<1x1x1024xf32> to vector<1x1024xf32>
    %cst_22 = arith.constant dense<0xFF800000> : vector<1024xf32>
    %46 = vector.multi_reduction <maximumf>, %43, %cst_22 [0] : vector<256x1024xf32> to vector<1024xf32>
    %47 = vector.shape_cast %46 : vector<1024xf32> to vector<1x1024xf32>
    %48 = arith.maximumf %45, %47 : vector<1x1024xf32>
    %c0_23 = arith.constant 0 : index
    %c0_24 = arith.constant 0 : index
    %c0_25 = arith.constant 0 : index
    %49 = vector.load %arg15[%c0_23, %c0_24, %c0_25] : memref<1x1x1024xf32, #tpu.memory_space<vmem>>, vector<1x1x1024xf32>
    %50 = vector.shape_cast %49 : vector<1x1x1024xf32> to vector<1x1024xf32>
    %51 = vector.shape_cast %48 : vector<1x1024xf32> to vector<1x1x1024xf32>
    tpu.vector_store %arg15[%c0_23, %c0_24, %c0_25], %51 {strides = array<i32>} : memref<1x1x1024xf32, #tpu.memory_space<vmem>>, vector<1x1x1024xf32>,
    %c0_i32_26 = arith.constant 0 : i32
    %52 = arith.cmpi eq, %arg1, %c0_i32_26 : i32
    %53 = arith.extui %52 : i1 to i32
    %c0_i32_27 = arith.constant 0 : i32
    %54 = arith.cmpi ne, %53, %c0_i32_27 : i32
    scf.if %54 {
      %c0_28 = arith.constant 0 : index
      %c0_29 = arith.constant 0 : index
      %c0_30 = arith.constant 0 : index
      %55 = vector.load %arg15[%c0_28, %c0_29, %c0_30] : memref<1x1x1024xf32, #tpu.memory_space<vmem>>, vector<1x1x1024xf32>
      %56 = vector.shape_cast %55 : vector<1x1x1024xf32> to vector<1x1024xf32>
      %57 = arith.truncf %56 : vector<1x1024xf32> to vector<1x1024xbf16>
      %c0_31 = arith.constant 0 : index
      %c0_32 = arith.constant 0 : index
      %58 = vector.load %arg9[%c0_31, %c0_32] : memref<1024x512xbf16, #tpu.memory_space<vmem>>, vector<1024x512xbf16>
      %cst_33 = arith.constant dense<0.000000e+00> : vector<1x512xf32>
      %59 = tpu.matmul %57, %58, %cst_33 {dimension_numbers = #tpu.dot_dimension_numbers<[1], [0], [0], [1], [0, 0, 1, 1], [], []>} : vector<1x1024xbf16>, vector<1024x512xbf16>, vector<1x512xf32> -> vector<1x512xf32>
      %c0_34 = arith.constant 0 : index
      %c0_35 = arith.constant 0 : index
      %60 = vector.load %arg10[%c0_34, %c0_35] : memref<1x512xf32, #tpu.memory_space<vmem>>, vector<1x512xf32>
      %61 = arith.addf %59, %60 : vector<1x512xf32>
      %cst_36 = arith.constant 0.000000e+00 : f32
      %62 = vector.broadcast %cst_36 : f32 to vector<1x512xf32>
      %63 = arith.maximumf %61, %62 : vector<1x512xf32>
      %64 = arith.truncf %63 : vector<1x512xf32> to vector<1x512xbf16>
      %c0_37 = arith.constant 0 : index
      %c0_38 = arith.constant 0 : index
      %65 = vector.load %arg11[%c0_37, %c0_38] : memref<512x256xbf16, #tpu.memory_space<vmem>>, vector<512x256xbf16>
      %cst_39 = arith.constant dense<0.000000e+00> : vector<1x256xf32>
      %66 = tpu.matmul %64, %65, %cst_39 {dimension_numbers = #tpu.dot_dimension_numbers<[1], [0], [0], [1], [0, 0, 1, 1], [], []>} : vector<1x512xbf16>, vector<512x256xbf16>, vector<1x256xf32> -> vector<1x256xf32>
      %c0_40 = arith.constant 0 : index
      %c0_41 = arith.constant 0 : index
      %67 = vector.load %arg12[%c0_40, %c0_41] : memref<1x256xf32, #tpu.memory_space<vmem>>, vector<1x256xf32>
      %68 = arith.addf %66, %67 : vector<1x256xf32>
      %cst_42 = arith.constant 0.000000e+00 : f32
      %69 = vector.broadcast %cst_42 : f32 to vector<1x256xf32>
      %70 = arith.maximumf %68, %69 : vector<1x256xf32>
      %71 = arith.truncf %70 : vector<1x256xf32> to vector<1x256xbf16>
      %c0_43 = arith.constant 0 : index
      %c0_44 = arith.constant 0 : index
      %72 = vector.load %arg13[%c0_43, %c0_44] : memref<256x128xbf16, #tpu.memory_space<vmem>>, vector<256x128xbf16>
      %cst_45 = arith.constant dense<0.000000e+00> : vector<1x128xf32>
      %73 = tpu.matmul %71, %72, %cst_45 {dimension_numbers = #tpu.dot_dimension_numbers<[1], [0], [0], [1], [0, 0, 1, 1], [], []>} : vector<1x256xbf16>, vector<256x128xbf16>, vector<1x128xf32> -> vector<1x128xf32>
      %c0_46 = arith.constant 0 : index
      %c0_47 = arith.constant 0 : index
      %74 = vector.load %arg14[%c0_46, %c0_47] : memref<1x128xf32, #tpu.memory_space<vmem>>, vector<1x128xf32>
      %75 = arith.addf %73, %74 : vector<1x128xf32>
      %cst_48 = arith.constant 0.000000e+00 : f32
      %76 = vector.broadcast %cst_48 : f32 to vector<1x128xf32>
      %77 = arith.maximumf %75, %76 : vector<1x128xf32>
      %c0_49 = arith.constant 0 : index
      %c0_50 = arith.constant 0 : index
      %c0_51 = arith.constant 0 : index
      %78 = vector.load %arg16[%c0_49, %c0_50, %c0_51] : memref<1x1x128xf32, #tpu.memory_space<vmem>>, vector<1x1x128xf32>
      %79 = vector.shape_cast %78 : vector<1x1x128xf32> to vector<1x128xf32>
      %80 = vector.shape_cast %77 : vector<1x128xf32> to vector<1x1x128xf32>
      tpu.vector_store %arg16[%c0_49, %c0_50, %c0_51], %80 {strides = array<i32>} : memref<1x1x128xf32, #tpu.memory_space<vmem>>, vector<1x1x128xf32>,
    } else {
    }
    return
  }
  func.func @transform_0(%arg0: i32, %arg1: i32) -> (i32, i32, i32) {
    %c0_i32 = arith.constant 0 : i32
    %c0_i32_0 = arith.constant 0 : i32
    return %arg0, %arg1, %c0_i32 : i32, i32, i32
  }
  func.func @transform_1(%arg0: i32, %arg1: i32) -> (i32, i32) {
    %c0_i32 = arith.constant 0 : i32
    %c0_i32_0 = arith.constant 0 : i32
    %c0_i32_1 = arith.constant 0 : i32
    return %c0_i32, %c0_i32_0 : i32, i32
  }
  func.func @transform_2(%arg0: i32, %arg1: i32) -> (i32, i32) {
    %c0_i32 = arith.constant 0 : i32
    %c0_i32_0 = arith.constant 0 : i32
    %c0_i32_1 = arith.constant 0 : i32
    return %c0_i32, %c0_i32_0 : i32, i32
  }
  func.func @transform_3(%arg0: i32, %arg1: i32) -> (i32, i32) {
    %c0_i32 = arith.constant 0 : i32
    %c0_i32_0 = arith.constant 0 : i32
    %c0_i32_1 = arith.constant 0 : i32
    return %c0_i32, %c0_i32_0 : i32, i32
  }
  func.func @transform_4(%arg0: i32, %arg1: i32) -> (i32, i32) {
    %c0_i32 = arith.constant 0 : i32
    %c0_i32_0 = arith.constant 0 : i32
    %c0_i32_1 = arith.constant 0 : i32
    return %c0_i32, %c0_i32_0 : i32, i32
  }
  func.func @transform_5(%arg0: i32, %arg1: i32) -> (i32, i32) {
    %c0_i32 = arith.constant 0 : i32
    %c0_i32_0 = arith.constant 0 : i32
    %c0_i32_1 = arith.constant 0 : i32
    return %c0_i32, %c0_i32_0 : i32, i32
  }
  func.func @transform_6(%arg0: i32, %arg1: i32) -> (i32, i32) {
    %c0_i32 = arith.constant 0 : i32
    %c0_i32_0 = arith.constant 0 : i32
    %c0_i32_1 = arith.constant 0 : i32
    return %c0_i32, %c0_i32_0 : i32, i32
  }
  func.func @transform_7(%arg0: i32, %arg1: i32) -> (i32, i32) {
    %c0_i32 = arith.constant 0 : i32
    %c0_i32_0 = arith.constant 0 : i32
    %c0_i32_1 = arith.constant 0 : i32
    return %c0_i32, %c0_i32_0 : i32, i32
  }
  func.func @transform_8(%arg0: i32, %arg1: i32) -> (i32, i32) {
    %c0_i32 = arith.constant 0 : i32
    %c0_i32_0 = arith.constant 0 : i32
    %c0_i32_1 = arith.constant 0 : i32
    return %c0_i32, %c0_i32_0 : i32, i32
  }
  func.func @transform_9(%arg0: i32, %arg1: i32) -> (i32, i32) {
    %c0_i32 = arith.constant 0 : i32
    %c0_i32_0 = arith.constant 0 : i32
    %c0_i32_1 = arith.constant 0 : i32
    return %c0_i32, %c0_i32_0 : i32, i32
  }
  func.func @transform_10(%arg0: i32, %arg1: i32) -> (i32, i32) {
    %c0_i32 = arith.constant 0 : i32
    %c0_i32_0 = arith.constant 0 : i32
    %c0_i32_1 = arith.constant 0 : i32
    return %c0_i32, %c0_i32_0 : i32, i32
  }
  func.func @transform_11(%arg0: i32, %arg1: i32) -> (i32, i32) {
    %c0_i32 = arith.constant 0 : i32
    %c0_i32_0 = arith.constant 0 : i32
    %c0_i32_1 = arith.constant 0 : i32
    return %c0_i32, %c0_i32_0 : i32, i32
  }
  func.func @transform_12(%arg0: i32, %arg1: i32) -> (i32, i32) {
    %c0_i32 = arith.constant 0 : i32
    %c0_i32_0 = arith.constant 0 : i32
    %c0_i32_1 = arith.constant 0 : i32
    return %c0_i32, %c0_i32_0 : i32, i32
  }
  func.func @transform_13(%arg0: i32, %arg1: i32) -> (i32, i32, i32) {
    %c0_i32 = arith.constant 0 : i32
    %c0_i32_0 = arith.constant 0 : i32
    %c0_i32_1 = arith.constant 0 : i32
    return %arg0, %c0_i32, %c0_i32_0 : i32, i32, i32
  }
  func.func @transform_14(%arg0: i32, %arg1: i32) -> (i32, i32, i32) {
    %c0_i32 = arith.constant 0 : i32
    %c0_i32_0 = arith.constant 0 : i32
    %c0_i32_1 = arith.constant 0 : i32
    return %arg0, %c0_i32, %c0_i32_0 : i32, i32, i32
  }
}

</mosaic_0001>

<llo_original>
// kernel: tpu_custom_call.1
$region0: #{tpu_custom_call.1}
  #allocation0 [shape = 'u32[]', space=smem, size = 0x4, offset = 0x4, fixed_abs, tag = 'smem constant byte address 0x4 - core index']
  #allocation1 [shape = 'u32[144,128]{1,0:T(1,128)}', space=vmem, size = 0x12000, scoped, tag = 'internal scratch']
  %s0 = inlined_call_operand.vmem [shape: f32[2,256,3], index: 0, kind: input, shape index: {}]
  %s1 = inlined_call_operand.vmem [shape: f32[3,64], index: 1, kind: input, shape index: {}]
  %s2 = inlined_call_operand.vmem [shape: f32[1,64], index: 2, kind: input, shape index: {}]
  %s3 = inlined_call_operand.hbm [shape: bf16[64,128], index: 3, kind: input, shape index: {}]
  %s4 = inlined_call_operand.vmem [shape: f32[1,128], index: 4, kind: input, shape index: {}]
  %s5 = inlined_call_operand.vmem [shape: bf16[128,1024], index: 5, kind: input, shape index: {}]
  %s6 = inlined_call_operand.vmem [shape: f32[1,1024], index: 6, kind: input, shape index: {}]
  %s7 = inlined_call_operand.hbm [shape: bf16[1024,512], index: 7, kind: input, shape index: {}]
  %s8 = inlined_call_operand.vmem [shape: f32[1,512], index: 8, kind: input, shape index: {}]
  %s9 = inlined_call_operand.hbm [shape: bf16[512,256], index: 9, kind: input, shape index: {}]
  %s10 = inlined_call_operand.vmem [shape: f32[1,256], index: 10, kind: input, shape index: {}]
  %s11 = inlined_call_operand.hbm [shape: bf16[256,128], index: 11, kind: input, shape index: {}]
  %s12 = inlined_call_operand.vmem [shape: f32[1,128], index: 12, kind: input, shape index: {}]
  %s13 = inlined_call_operand.hbm [shape: f32[2,1,1024], index: 13, kind: output, shape index: {0}]
  %s14 = inlined_call_operand.hbm [shape: f32[2,1,128], index: 14, kind: output, shape index: {1}]
  %15 = xla_tuple %s13, %s14
  %s16 = sld [smem:[#allocation0]]
  $region117: #{tpu_custom_call.1} parent=0
    _
  %s18 = ssub.s32 1, %s16
  %s19 = scalar_select 0, %s18, %s16
  $region1: #{tpu_custom_call.1} parent=0
    #allocation2 [shape = 'u8[16384]{0}', space=vmem, size = 0x4000, scoped, tag = 'input window, operand 3, single buffered']
    #allocation3 [shape = 's32[2]{0}', space=sflag, size = 0x8, scoped, tag = 'scoped memory for tpu_custom_call.1']
    #allocation4 [shape = 's32[2]{0}', space=sflag, size = 0x8, scoped, tag = 'scoped memory for tpu_custom_call.1']
    #allocation5 [shape = 'u8[1048576]{0}', space=vmem, size = 0x100000, scoped, tag = 'input window, operand 7, single buffered']
    #allocation6 [shape = 's32[1]{0}', space=sflag, size = 0x4, scoped, tag = 'scoped memory for tpu_custom_call.1']
    #allocation7 [shape = 'u8[262144]{0}', space=vmem, size = 0x40000, scoped, tag = 'input window, operand 9, single buffered']
    #allocation8 [shape = 'u8[65536]{0}', space=vmem, size = 0x10000, scoped, tag = 'input window, operand 11, single buffered']
    #allocation9 [shape = 's32[1]{0}', space=sflag, size = 0x4, scoped, tag = 'scoped memory for tpu_custom_call.1']
    #allocation10 [shape = 'u8[8192]{0}', space=vmem, size = 0x2000, scoped, tag = 'output window, operand 0']
    #allocation11 [shape = 'u8[1024]{0}', space=vmem, size = 0x400, scoped, tag = 'output window, operand 1']
    #allocation12 [shape = 's32[2]{0}', space=sflag, size = 0x8, scoped, tag = 'scoped memory for tpu_custom_call.1']
    %20 = vsyncpa [#allocation3], 0
    %21 = vsyncpa [#allocation6], 0
    %22 = vsyncpa [#allocation9], 0
    %23 = vsyncpa [#allocation4], 0
    %s24 = scalar_lea.sflag [#allocation4], 1
    %25 = vsyncpa %s24, 0
    %26 = vsyncpa [#allocation12], 0
    %s27 = scalar_lea.sflag [#allocation12], 1
    %28 = vsyncpa %s27, 0
    loop: start=0, step=1, limit=4
    $region2: #{tpu_custom_call.1} parent=1 // loop_pre_header
      _
    $region3: #{tpu_custom_call.1} parent=1 // loop_header
      %s30 = sphi 0, %s34
      %p31 = scmp.ge.s32.totalorder %s30, 4
      %s37 = sphi 0, %s49
      %s38 = sphi 0, %s45
      %s39 = sphi 0, %s37
      %s40 = sphi 0, %s38
      %s41 = sphi 0, %s39
      %s42 = sphi 0, %s40
      %s54 = sphi 0, %s56
      %s57 = sphi 0, %s54
      %s58 = sphi 0, %s57
      %s74 = sphi 0, %s58
      %s78 = sphi 0, %s78
      %s80 = sphi 0, %s78
      %s81 = sphi 0, %s80
      %s95 = sphi 0, %s81
      %s99 = sphi 0, %s99
      %s101 = sphi 0, %s99
      %s102 = sphi 0, %s101
      %s116 = sphi 0, %s102
      %s120 = sphi 0, %s120
      %s122 = sphi 0, %s120
      %s123 = sphi 0, %s122
      %s137 = sphi 0, %s123
      %s141 = sphi 0, %s141
      %s143 = sphi 0, %s141
      %s144 = sphi 0, %s143
      %s158 = sphi 0, %s144
      %s162 = sphi 0, %s162
      %s164 = sphi 0, %s162
      %s165 = sphi 0, %s164
      %s179 = sphi 0, %s165
      %s183 = sphi 0, %s183
      %s185 = sphi 0, %s183
      %s186 = sphi 0, %s185
      %s200 = sphi 0, %s186
      %s204 = sphi 0, %s204
      %s206 = sphi 0, %s204
      %s207 = sphi 0, %s206
      %s221 = sphi 0, %s207
      %s225 = sphi 0, %s225
      %s227 = sphi 0, %s225
      %s228 = sphi 0, %s227
      %s242 = sphi 0, %s228
      %s246 = sphi 0, %s246
      %s248 = sphi 0, %s246
      %s249 = sphi 0, %s248
      %s263 = sphi 0, %s249
      %s267 = sphi 0, %s267
      %s269 = sphi 0, %s267
      %s270 = sphi 0, %s269
      %s284 = sphi 0, %s270
      %s288 = sphi 0, %s288
      %s290 = sphi 0, %s288
      %s291 = sphi 0, %s290
      %s305 = sphi 0, %s291
      %s309 = sphi 0, %s309
      %s311 = sphi 0, %s309
      %s312 = sphi 0, %s311
      %s326 = sphi 0, %s312
      %s332 = sphi 0, %s334
      %s335 = sphi 0, %s332
      %s336 = sphi 0, %s335
      %s352 = sphi 0, %s336
      %s358 = sphi 0, %s360
      %s361 = sphi 0, %s358
      %s362 = sphi 0, %s361
      %s378 = sphi 0, %s362
    $region4: #{tpu_custom_call.1} parent=1 // loop_header_branch
      %33 = sbr.rel (%p31) target = $region8
    $region5: #{tpu_custom_call.1} parent=1 // loop_body
      %s35 = ssub.s32 %s30, 1
      %s36 = ssub.s32 %s30, 2
      %s43 = sadd.s32 1, %s38
      %p44 = scmp.ge.s32.totalorder %s43, 1
      %s45 = scalar_select %p44, 0, %s43
      %s46 = sadd.s32 1, %s37
      %s47 = scalar_select %p44, %s46, %s37
      %p48 = scmp.ge.s32.totalorder %s47, 2
      %s49 = scalar_select %p48, 0, %s47
      %s50 = ssub.s32 %s37, %s49
      %s51 = ssub.s32 %s38, %s45
      %s52 = sor.u32 %s50, %s51
      %p53 = scmp.eq.s32.totalorder %s52, 0
      %s55 = sadd.s32 %s54, 1
      %s56 = scalar_select %p53, %s54, %s55
      %p59 = pneg %p53
      %p60 = scmp.eq.s32.totalorder %s30, 1
      %p61 = por %p59, %p60
      %p62 = scmp.ne.s32.totalorder %s54, %s57
      %p63 = scmp.eq.s32.totalorder %s30, 0
      %p64 = por %p62, %p63
      %p65 = scmp.ne.s32.totalorder %s54, %s57
      %p66 = scmp.eq.s32.totalorder %s35, 1
      %p67 = por %p65, %p66
      %p68 = scmp.ne.s32.totalorder %s57, %s58
      %p69 = scmp.eq.s32.totalorder %s35, 0
      %p70 = por %p68, %p69
      %p71 = scmp.ne.s32.totalorder %s57, %s58
      %p72 = scmp.eq.s32.totalorder %s36, 1
      %p73 = por %p71, %p72
      %p75 = scmp.ne.s32.totalorder %s58, %s74
      %p76 = scmp.eq.s32.totalorder %s36, 0
      %p77 = por %p75, %p76
      %s79 = sadd.s32 %s78, 1
      %p82 = scmp.eq.s32.totalorder %s30, 1
      %p83 = scmp.ne.s32.totalorder %s78, %s80
      %p84 = scmp.eq.s32.totalorder %s30, 0
      %p85 = por %p83, %p84
      %p86 = scmp.ne.s32.totalorder %s78, %s80
      %p87 = scmp.eq.s32.totalorder %s35, 1
      %p88 = por %p86, %p87
      %p89 = scmp.ne.s32.totalorder %s80, %s81
      %p90 = scmp.eq.s32.totalorder %s35, 0
      %p91 = por %p89, %p90
      %p92 = scmp.ne.s32.totalorder %s80, %s81
      %p93 = scmp.eq.s32.totalorder %s36, 1
      %p94 = por %p92, %p93
      %p96 = scmp.ne.s32.totalorder %s81, %s95
      %p97 = scmp.eq.s32.totalorder %s36, 0
      %p98 = por %p96, %p97
      %s100 = sadd.s32 %s99, 1
      %p103 = scmp.eq.s32.totalorder %s30, 1
      %p104 = scmp.ne.s32.totalorder %s99, %s101
      %p105 = scmp.eq.s32.totalorder %s30, 0
      %p106 = por %p104, %p105
      %p107 = scmp.ne.s32.totalorder %s99, %s101
      %p108 = scmp.eq.s32.totalorder %s35, 1
      %p109 = por %p107, %p108
      %p110 = scmp.ne.s32.totalorder %s101, %s102
      %p111 = scmp.eq.s32.totalorder %s35, 0
      %p112 = por %p110, %p111
      %p113 = scmp.ne.s32.totalorder %s101, %s102
      %p114 = scmp.eq.s32.totalorder %s36, 1
      %p115 = por %p113, %p114
      %p117 = scmp.ne.s32.totalorder %s102, %s116
      %p118 = scmp.eq.s32.totalorder %s36, 0
      %p119 = por %p117, %p118
      %s121 = sadd.s32 %s120, 1
      %p124 = scmp.eq.s32.totalorder %s30, 1
      %p125 = scmp.ne.s32.totalorder %s120, %s122
      %p126 = scmp.eq.s32.totalorder %s30, 0
      %p127 = por %p125, %p126
      %p128 = scmp.ne.s32.totalorder %s120, %s122
      %p129 = scmp.eq.s32.totalorder %s35, 1
      %p130 = por %p128, %p129
      %p131 = scmp.ne.s32.totalorder %s122, %s123
      %p132 = scmp.eq.s32.totalorder %s35, 0
      %p133 = por %p131, %p132
      %p134 = scmp.ne.s32.totalorder %s122, %s123
      %p135 = scmp.eq.s32.totalorder %s36, 1
      %p136 = por %p134, %p135
      %p138 = scmp.ne.s32.totalorder %s123, %s137
      %p139 = scmp.eq.s32.totalorder %s36, 0
      %p140 = por %p138, %p139
      %s142 = sadd.s32 %s141, 1
      %p145 = scmp.eq.s32.totalorder %s30, 1
      %p146 = scmp.ne.s32.totalorder %s141, %s143
      %p147 = scmp.eq.s32.totalorder %s30, 0
      %p148 = por %p146, %p147
      %p149 = scmp.ne.s32.totalorder %s141, %s143
      %p150 = scmp.eq.s32.totalorder %s35, 1
      %p151 = por %p149, %p150
      %p152 = scmp.ne.s32.totalorder %s143, %s144
      %p153 = scmp.eq.s32.totalorder %s35, 0
      %p154 = por %p152, %p153
      %p155 = scmp.ne.s32.totalorder %s143, %s144
      %p156 = scmp.eq.s32.totalorder %s36, 1
      %p157 = por %p155, %p156
      %p159 = scmp.ne.s32.totalorder %s144, %s158
      %p160 = scmp.eq.s32.totalorder %s36, 0
      %p161 = por %p159, %p160
      %s163 = sadd.s32 %s162, 1
      %p166 = scmp.eq.s32.totalorder %s30, 1
      %p167 = scmp.ne.s32.totalorder %s162, %s164
      %p168 = scmp.eq.s32.totalorder %s30, 0
      %p169 = por %p167, %p168
      %p170 = scmp.ne.s32.totalorder %s162, %s164
      %p171 = scmp.eq.s32.totalorder %s35, 1
      %p172 = por %p170, %p171
      %p173 = scmp.ne.s32.totalorder %s164, %s165
      %p174 = scmp.eq.s32.totalorder %s35, 0
      %p175 = por %p173, %p174
      %p176 = scmp.ne.s32.totalorder %s164, %s165
      %p177 = scmp.eq.s32.totalorder %s36, 1
      %p178 = por %p176, %p177
      %p180 = scmp.ne.s32.totalorder %s165, %s179
      %p181 = scmp.eq.s32.totalorder %s36, 0
      %p182 = por %p180, %p181
      %s184 = sadd.s32 %s183, 1
      %p187 = scmp.eq.s32.totalorder %s30, 1
      %p188 = scmp.ne.s32.totalorder %s183, %s185
      %p189 = scmp.eq.s32.totalorder %s30, 0
      %p190 = por %p188, %p189
      %p191 = scmp.ne.s32.totalorder %s183, %s185
      %p192 = scmp.eq.s32.totalorder %s35, 1
      %p193 = por %p191, %p192
      %p194 = scmp.ne.s32.totalorder %s185, %s186
      %p195 = scmp.eq.s32.totalorder %s35, 0
      %p196 = por %p194, %p195
      %p197 = scmp.ne.s32.totalorder %s185, %s186
      %p198 = scmp.eq.s32.totalorder %s36, 1
      %p199 = por %p197, %p198
      %p201 = scmp.ne.s32.totalorder %s186, %s200
      %p202 = scmp.eq.s32.totalorder %s36, 0
      %p203 = por %p201, %p202
      %s205 = sadd.s32 %s204, 1
      %p208 = scmp.eq.s32.totalorder %s30, 1
      %p209 = scmp.ne.s32.totalorder %s204, %s206
      %p210 = scmp.eq.s32.totalorder %s30, 0
      %p211 = por %p209, %p210
      %p212 = scmp.ne.s32.totalorder %s204, %s206
      %p213 = scmp.eq.s32.totalorder %s35, 1
      %p214 = por %p212, %p213
      %p215 = scmp.ne.s32.totalorder %s206, %s207
      %p216 = scmp.eq.s32.totalorder %s35, 0
      %p217 = por %p215, %p216
      %p218 = scmp.ne.s32.totalorder %s206, %s207
      %p219 = scmp.eq.s32.totalorder %s36, 1
      %p220 = por %p218, %p219
      %p222 = scmp.ne.s32.totalorder %s207, %s221
      %p223 = scmp.eq.s32.totalorder %s36, 0
      %p224 = por %p222, %p223
      %s226 = sadd.s32 %s225, 1
      %p229 = scmp.eq.s32.totalorder %s30, 1
      %p230 = scmp.ne.s32.totalorder %s225, %s227
      %p231 = scmp.eq.s32.totalorder %s30, 0
      %p232 = por %p230, %p231
      %p233 = scmp.ne.s32.totalorder %s225, %s227
      %p234 = scmp.eq.s32.totalorder %s35, 1
      %p235 = por %p233, %p234
      %p236 = scmp.ne.s32.totalorder %s227, %s228
      %p237 = scmp.eq.s32.totalorder %s35, 0
      %p238 = por %p236, %p237
      %p239 = scmp.ne.s32.totalorder %s227, %s228
      %p240 = scmp.eq.s32.totalorder %s36, 1
      %p241 = por %p239, %p240
      %p243 = scmp.ne.s32.totalorder %s228, %s242
      %p244 = scmp.eq.s32.totalorder %s36, 0
      %p245 = por %p243, %p244
      %s247 = sadd.s32 %s246, 1
      %p250 = scmp.eq.s32.totalorder %s30, 1
      %p251 = scmp.ne.s32.totalorder %s246, %s248
      %p252 = scmp.eq.s32.totalorder %s30, 0
      %p253 = por %p251, %p252
      %p254 = scmp.ne.s32.totalorder %s246, %s248
      %p255 = scmp.eq.s32.totalorder %s35, 1
      %p256 = por %p254, %p255
      %p257 = scmp.ne.s32.totalorder %s248, %s249
      %p258 = scmp.eq.s32.totalorder %s35, 0
      %p259 = por %p257, %p258
      %p260 = scmp.ne.s32.totalorder %s248, %s249
      %p261 = scmp.eq.s32.totalorder %s36, 1
      %p262 = por %p260, %p261
      %p264 = scmp.ne.s32.totalorder %s249, %s263
      %p265 = scmp.eq.s32.totalorder %s36, 0
      %p266 = por %p264, %p265
      %s268 = sadd.s32 %s267, 1
      %p271 = scmp.eq.s32.totalorder %s30, 1
      %p272 = scmp.ne.s32.totalorder %s267, %s269
      %p273 = scmp.eq.s32.totalorder %s30, 0
      %p274 = por %p272, %p273
      %p275 = scmp.ne.s32.totalorder %s267, %s269
      %p276 = scmp.eq.s32.totalorder %s35, 1
      %p277 = por %p275, %p276
      %p278 = scmp.ne.s32.totalorder %s269, %s270
      %p279 = scmp.eq.s32.totalorder %s35, 0
      %p280 = por %p278, %p279
      %p281 = scmp.ne.s32.totalorder %s269, %s270
      %p282 = scmp.eq.s32.totalorder %s36, 1
      %p283 = por %p281, %p282
      %p285 = scmp.ne.s32.totalorder %s270, %s284
      %p286 = scmp.eq.s32.totalorder %s36, 0
      %p287 = por %p285, %p286
      %s289 = sadd.s32 %s288, 1
      %p292 = scmp.eq.s32.totalorder %s30, 1
      %p293 = scmp.ne.s32.totalorder %s288, %s290
      %p294 = scmp.eq.s32.totalorder %s30, 0
      %p295 = por %p293, %p294
      %p296 = scmp.ne.s32.totalorder %s288, %s290
      %p297 = scmp.eq.s32.totalorder %s35, 1
      %p298 = por %p296, %p297
      %p299 = scmp.ne.s32.totalorder %s290, %s291
      %p300 = scmp.eq.s32.totalorder %s35, 0
      %p301 = por %p299, %p300
      %p302 = scmp.ne.s32.totalorder %s290, %s291
      %p303 = scmp.eq.s32.totalorder %s36, 1
      %p304 = por %p302, %p303
      %p306 = scmp.ne.s32.totalorder %s291, %s305
      %p307 = scmp.eq.s32.totalorder %s36, 0
      %p308 = por %p306, %p307
      %s310 = sadd.s32 %s309, 1
      %p313 = scmp.eq.s32.totalorder %s30, 1
      %p314 = scmp.ne.s32.totalorder %s309, %s311
      %p315 = scmp.eq.s32.totalorder %s30, 0
      %p316 = por %p314, %p315
      %p317 = scmp.ne.s32.totalorder %s309, %s311
      %p318 = scmp.eq.s32.totalorder %s35, 1
      %p319 = por %p317, %p318
      %p320 = scmp.ne.s32.totalorder %s311, %s312
      %p321 = scmp.eq.s32.totalorder %s35, 0
      %p322 = por %p320, %p321
      %p323 = scmp.ne.s32.totalorder %s311, %s312
      %p324 = scmp.eq.s32.totalorder %s36, 1
      %p325 = por %p323, %p324
      %p327 = scmp.ne.s32.totalorder %s312, %s326
      %p328 = scmp.eq.s32.totalorder %s36, 0
      %p329 = por %p327, %p328
      %s330 = ssub.s32 %s37, %s49
      %p331 = scmp.eq.s32.totalorder %s330, 0
      %s333 = sadd.s32 %s332, 1
      %s334 = scalar_select %p331, %s332, %s333
      %p337 = pneg %p331
      %p338 = scmp.eq.s32.totalorder %s30, 1
      %p339 = por %p337, %p338
      %p340 = scmp.ne.s32.totalorder %s332, %s335
      %p341 = scmp.eq.s32.totalorder %s30, 0
      %p342 = por %p340, %p341
      %p343 = scmp.ne.s32.totalorder %s332, %s335
      %p344 = scmp.eq.s32.totalorder %s35, 1
      %p345 = por %p343, %p344
      %p346 = scmp.ne.s32.totalorder %s335, %s336
      %p347 = scmp.eq.s32.totalorder %s35, 0
      %p348 = por %p346, %p347
      %p349 = scmp.ne.s32.totalorder %s335, %s336
      %p350 = scmp.eq.s32.totalorder %s36, 1
      %p351 = por %p349, %p350
      %p353 = scmp.ne.s32.totalorder %s336, %s352
      %p354 = scmp.eq.s32.totalorder %s36, 0
      %p355 = por %p353, %p354
      %s356 = ssub.s32 %s37, %s49
      %p357 = scmp.eq.s32.totalorder %s356, 0
      %s359 = sadd.s32 %s358, 1
      %s360 = scalar_select %p357, %s358, %s359
      %p363 = pneg %p357
      %p364 = scmp.eq.s32.totalorder %s30, 1
      %p365 = por %p363, %p364
      %p366 = scmp.ne.s32.totalorder %s358, %s361
      %p367 = scmp.eq.s32.totalorder %s30, 0
      %p368 = por %p366, %p367
      %p369 = scmp.ne.s32.totalorder %s358, %s361
      %p370 = scmp.eq.s32.totalorder %s35, 1
      %p371 = por %p369, %p370
      %p372 = scmp.ne.s32.totalorder %s361, %s362
      %p373 = scmp.eq.s32.totalorder %s35, 0
      %p374 = por %p372, %p373
      %p375 = scmp.ne.s32.totalorder %s361, %s362
      %p376 = scmp.eq.s32.totalorder %s36, 1
      %p377 = por %p375, %p376
      %p379 = scmp.ne.s32.totalorder %s362, %s378
      %p380 = scmp.eq.s32.totalorder %s36, 0
      %p381 = por %p379, %p380
      %p382 = scmp.le.s32.totalorder 1, %s30
      %p383 = scmp.lt.s32.totalorder %s30, 3
      %p384 = pnand %p382, %p383
      %p385 = pneg %p384
      // Predicated region
      $region9: #{tpu_custom_call.1} parent=5 // pred_check
        _
      $region10: #{tpu_custom_call.1} parent=5 // pred_check_branch
        %387 = sbr.rel (%p384) target = $region12
      $region11: #{tpu_custom_call.1} parent=5 // pred_region
        %s388 = ssub.s32 %s30, 1
        // Predicated region
        $region13: #{tpu_custom_call.1} parent=11 // pred_check
          %p389 = pneg %p91
        $region14: #{tpu_custom_call.1} parent=11 // pred_check_branch
          %391 = sbr.rel (%p389) target = $region16
        $region15: #{tpu_custom_call.1} parent=11 // pred_region
          _
        $region16: #{tpu_custom_call.1} parent=11 // pred_fallthru
          _
        // Predicated region
        $region17: #{tpu_custom_call.1} parent=11 // pred_check
          %p392 = pneg %p112
        $region18: #{tpu_custom_call.1} parent=11 // pred_check_branch
          %394 = sbr.rel (%p392) target = $region20
        $region19: #{tpu_custom_call.1} parent=11 // pred_region
          _
        $region20: #{tpu_custom_call.1} parent=11 // pred_fallthru
          _
        // Predicated region
        $region21: #{tpu_custom_call.1} parent=11 // pred_check
          %p395 = pneg %p133
        $region22: #{tpu_custom_call.1} parent=11 // pred_check_branch
          %397 = sbr.rel (%p395) target = $region24
        $region23: #{tpu_custom_call.1} parent=11 // pred_region
          %s399 = ssub.s32 512, 512
          %400 = vsyncadd [#allocation3], %s399
          %s401 = sshll.u32 [#allocation2], 4
          %s402 = int_to_ptr.vmem [resolvable:$true] %s401
          %407 = dma.hbm_to_vmem [thread:$0]  %s3, 512, %s402, [#allocation3], 64, 64, 4
        $region24: #{tpu_custom_call.1} parent=11 // pred_fallthru
          _
        // Predicated region
        $region25: #{tpu_custom_call.1} parent=11 // pred_check
          %p408 = pneg %p154
        $region26: #{tpu_custom_call.1} parent=11 // pred_check_branch
          %410 = sbr.rel (%p408) target = $region28
        $region27: #{tpu_custom_call.1} parent=11 // pred_region
          _
        $region28: #{tpu_custom_call.1} parent=11 // pred_fallthru
          _
        // Predicated region
        $region29: #{tpu_custom_call.1} parent=11 // pred_check
          %p411 = pneg %p175
        $region30: #{tpu_custom_call.1} parent=11 // pred_check_branch
          %413 = sbr.rel (%p411) target = $region32
        $region31: #{tpu_custom_call.1} parent=11 // pred_region
          _
        $region32: #{tpu_custom_call.1} parent=11 // pred_fallthru
          _
        // Predicated region
        $region33: #{tpu_custom_call.1} parent=11 // pred_check
          %p414 = pneg %p196
        $region34: #{tpu_custom_call.1} parent=11 // pred_check_branch
          %416 = sbr.rel (%p414) target = $region36
        $region35: #{tpu_custom_call.1} parent=11 // pred_region
          _
        $region36: #{tpu_custom_call.1} parent=11 // pred_fallthru
          _
        // Predicated region
        $region37: #{tpu_custom_call.1} parent=11 // pred_check
          %p417 = pneg %p217
        $region38: #{tpu_custom_call.1} parent=11 // pred_check_branch
          %419 = sbr.rel (%p417) target = $region40
        $region39: #{tpu_custom_call.1} parent=11 // pred_region
          %s421 = ssub.s32 32768, 32768
          %422 = vsyncadd [#allocation6], %s421
          %s423 = sshll.u32 [#allocation5], 4
          %s424 = int_to_ptr.vmem [resolvable:$true] %s423
          %429 = dma.hbm_to_vmem [thread:$0]  %s7, 32768, %s424, [#allocation6], 256, 256, 16
        $region40: #{tpu_custom_call.1} parent=11 // pred_fallthru
          _
        // Predicated region
        $region41: #{tpu_custom_call.1} parent=11 // pred_check
          %p430 = pneg %p238
        $region42: #{tpu_custom_call.1} parent=11 // pred_check_branch
          %432 = sbr.rel (%p430) target = $region44
        $region43: #{tpu_custom_call.1} parent=11 // pred_region
          _
        $region44: #{tpu_custom_call.1} parent=11 // pred_fallthru
          _
        // Predicated region
        $region45: #{tpu_custom_call.1} parent=11 // pred_check
          %p433 = pneg %p259
        $region46: #{tpu_custom_call.1} parent=11 // pred_check_branch
          %435 = sbr.rel (%p433) target = $region48
        $region47: #{tpu_custom_call.1} parent=11 // pred_region
          %s437 = ssub.s32 8192, 8192
          %438 = vsyncadd [#allocation6], %s437
          %s439 = sshll.u32 [#allocation7], 4
          %s440 = int_to_ptr.vmem [resolvable:$true] %s439
          %445 = dma.hbm_to_vmem [thread:$0]  %s9, 8192, %s440, [#allocation6], 128, 128, 8
        $region48: #{tpu_custom_call.1} parent=11 // pred_fallthru
          _
        // Predicated region
        $region49: #{tpu_custom_call.1} parent=11 // pred_check
          %p446 = pneg %p280
        $region50: #{tpu_custom_call.1} parent=11 // pred_check_branch
          %448 = sbr.rel (%p446) target = $region52
        $region51: #{tpu_custom_call.1} parent=11 // pred_region
          _
        $region52: #{tpu_custom_call.1} parent=11 // pred_fallthru
          _
        // Predicated region
        $region53: #{tpu_custom_call.1} parent=11 // pred_check
          %p449 = pneg %p301
        $region54: #{tpu_custom_call.1} parent=11 // pred_check_branch
          %451 = sbr.rel (%p449) target = $region56
        $region55: #{tpu_custom_call.1} parent=11 // pred_region
          %s453 = ssub.s32 2048, 2048
          %454 = vsyncadd [#allocation9], %s453
          %s455 = sshll.u32 [#allocation8], 4
          %s456 = int_to_ptr.vmem [resolvable:$true] %s455
          %461 = dma.hbm_to_vmem [thread:$0]  %s11, 2048, %s456, [#allocation9], 64, 64, 4
        $region56: #{tpu_custom_call.1} parent=11 // pred_fallthru
          _
        // Predicated region
        $region57: #{tpu_custom_call.1} parent=11 // pred_check
          %p462 = pneg %p322
        $region58: #{tpu_custom_call.1} parent=11 // pred_check_branch
          %464 = sbr.rel (%p462) target = $region60
        $region59: #{tpu_custom_call.1} parent=11 // pred_region
          _
        $region60: #{tpu_custom_call.1} parent=11 // pred_fallthru
          _
      $region12: #{tpu_custom_call.1} parent=5 // pred_fallthru
        _
      %p465 = scmp.lt.s32.totalorder %s30, 2
      // Predicated region
      $region61: #{tpu_custom_call.1} parent=5 // pred_check
        %p466 = pneg %p465
      $region62: #{tpu_custom_call.1} parent=5 // pred_check_branch
        %468 = sbr.rel (%p466) target = $region64
      $region63: #{tpu_custom_call.1} parent=5 // pred_region
        // Predicated region
        $region65: #{tpu_custom_call.1} parent=63 // pred_check
          %p469 = pneg %p64
        $region66: #{tpu_custom_call.1} parent=63 // pred_check_branch
          %471 = sbr.rel (%p469) target = $region68
        $region67: #{tpu_custom_call.1} parent=63 // pred_region
          %s472 = smul.u32 32, %s38
          %p473 = scmp.lt.s32.totalorder %s37, 1
          %s474 = scalar_select %p473, %s37, 1
          %p475 = scmp.lt.s32.totalorder %s472, 31
          %s476 = scalar_select %p475, %s472, 31
          %s477 = smul.addr %s474, 32
          %s478 = sadd.s32 %s476, %s477
          %s479 = smul.addr %s478, 8
          %s480 = scalar_lea.vmem %s0, %s479
          %s481 = smul.u32 32, %s38
        $region68: #{tpu_custom_call.1} parent=63 // pred_fallthru
          _
      $region64: #{tpu_custom_call.1} parent=5 // pred_fallthru
        _
      %p482 = scmp.le.s32.totalorder 1, %s30
      %p483 = scmp.lt.s32.totalorder %s30, 3
      %p484 = pnand %p482, %p483
      %p485 = pneg %p484
      // Predicated region
      $region69: #{tpu_custom_call.1} parent=5 // pred_check
        _
      $region70: #{tpu_custom_call.1} parent=5 // pred_check_branch
        %487 = sbr.rel (%p484) target = $region72
      $region71: #{tpu_custom_call.1} parent=5 // pred_region
        %s488 = ssub.s32 %s30, 1
        // Predicated region
        $region73: #{tpu_custom_call.1} parent=71 // pred_check
          %p489 = pneg %p133
        $region74: #{tpu_custom_call.1} parent=71 // pred_check_branch
          %491 = sbr.rel (%p489) target = $region76
        $region75: #{tpu_custom_call.1} parent=71 // pred_region
          %492 = dma.done [#allocation3], 512
        $region76: #{tpu_custom_call.1} parent=71 // pred_fallthru
          _
        // Predicated region
        $region77: #{tpu_custom_call.1} parent=71 // pred_check
          %p493 = pneg %p217
        $region78: #{tpu_custom_call.1} parent=71 // pred_check_branch
          %495 = sbr.rel (%p493) target = $region80
        $region79: #{tpu_custom_call.1} parent=71 // pred_region
          %496 = dma.done [#allocation6], 32768
        $region80: #{tpu_custom_call.1} parent=71 // pred_fallthru
          _
        // Predicated region
        $region81: #{tpu_custom_call.1} parent=71 // pred_check
          %p497 = pneg %p259
        $region82: #{tpu_custom_call.1} parent=71 // pred_check_branch
          %499 = sbr.rel (%p497) target = $region84
        $region83: #{tpu_custom_call.1} parent=71 // pred_region
          %500 = dma.done [#allocation6], 8192
        $region84: #{tpu_custom_call.1} parent=71 // pred_fallthru
          _
        // Predicated region
        $region85: #{tpu_custom_call.1} parent=71 // pred_check
          %p501 = pneg %p301
        $region86: #{tpu_custom_call.1} parent=71 // pred_check_branch
          %503 = sbr.rel (%p501) target = $region88
        $region87: #{tpu_custom_call.1} parent=71 // pred_region
          %504 = dma.done [#allocation9], 2048
        $region88: #{tpu_custom_call.1} parent=71 // pred_fallthru
          _
        %s505 = smul.u32 32, %s40
        %p506 = scmp.lt.s32.totalorder %s39, 1
        %s507 = scalar_select %p506, %s39, 1
        %p508 = scmp.lt.s32.totalorder %s505, 31
        %s509 = scalar_select %p508, %s505, 31
        %s510 = smul.addr %s507, 32
        %s511 = sadd.s32 %s509, %s510
        %s512 = smul.addr %s511, 8
        %s513 = scalar_lea.vmem %s0, %s512
        %p514 = pneg %p70
        %p515 = pneg %p67
        %p516 = pneg %p91
        %p517 = pneg %p88
        %p518 = pneg %p112
        %p519 = pneg %p109
        %p520 = pneg %p133
        %p521 = pneg %p130
        %p522 = pneg %p154
        %p523 = pneg %p151
        %p524 = pneg %p175
        %p525 = pneg %p172
        %p526 = pneg %p196
        %p527 = pneg %p193
        %p528 = pneg %p217
        %p529 = pneg %p214
        %p530 = pneg %p238
        %p531 = pneg %p235
        %p532 = pneg %p259
        %p533 = pneg %p256
        %p534 = pneg %p280
        %p535 = pneg %p277
        %p536 = pneg %p301
        %p537 = pneg %p298
        %p538 = pneg %p322
        %p539 = pneg %p319
        %p540 = pneg %p348
        %p541 = pneg %p345
        %s542 = sand.u32 %s335, 1
        %s543 = scalar_lea.sflag [#allocation4], %s542
        %s544 = sand.u32 %s335, 1
        %s545 = smul.addr %s544, 8
        %s546 = scalar_lea.vmem [#allocation10], %s545
        %p547 = pneg %p374
        %p548 = pneg %p371
        %s549 = sand.u32 %s361, 1
        %s550 = scalar_lea.sflag [#allocation12], %s549
        %s551 = sand.u32 %s361, 1
        %s552 = scalar_lea.vmem [#allocation11], %s551
        %s553 = smul.u32 32, %s40
        %p554 = scmp.lt.s32.totalorder %s39, 1
        %s555 = scalar_select %p554, %s39, 1
        %p556 = scmp.lt.s32.totalorder %s553, 31
        %s557 = scalar_select %p556, %s553, 31
        %s558 = smul.addr %s555, 32
        %s559 = sadd.s32 %s557, %s558
        %s560 = smul.addr %s559, 8
        %s561 = scalar_lea.vmem %s0, %s560
        %s562 = smul.u32 32, %s40
        %p564 = scmp.eq.s32.totalorder %s40, 0
        // Predicated region
        $region89: #{tpu_custom_call.1} parent=71 // pred_check
          %p565 = pneg %p564
        $region90: #{tpu_custom_call.1} parent=71 // pred_check_branch
          %567 = sbr.rel (%p565) target = $region92
        $region91: #{tpu_custom_call.1} parent=71 // pred_region
          %568 = vst [vmem:[%s546] sm:$0xff] -inf
        $region92: #{tpu_custom_call.1} parent=71 // pred_fallthru
          _
        %v569 = vld [vmem:[%s561] sm:$0xff]
        %v570 = vld [vmem:[%s561 + $0x8] sm:$0xff]
        %v571 = vld [vmem:[%s561 + $0x10] sm:$0xff]
        %v572 = vld [vmem:[%s561 + $0x18] sm:$0xff]
        %v573 = vld [vmem:[%s561 + $0x20] sm:$0xff]
        %v574 = vld [vmem:[%s561 + $0x28] sm:$0xff]
        %v575 = vld [vmem:[%s561 + $0x30] sm:$0xff]
        %v576 = vld [vmem:[%s561 + $0x38] sm:$0xff]
        %v577 = vld [vmem:[%s561 + $0x40] sm:$0xff]
        %v578 = vld [vmem:[%s561 + $0x48] sm:$0xff]
        %v579 = vld [vmem:[%s561 + $0x50] sm:$0xff]
        %v580 = vld [vmem:[%s561 + $0x58] sm:$0xff]
        %v581 = vld [vmem:[%s561 + $0x60] sm:$0xff]
        %v582 = vld [vmem:[%s561 + $0x68] sm:$0xff]
        %v583 = vld [vmem:[%s561 + $0x70] sm:$0xff]
        %v584 = vld [vmem:[%s561 + $0x78] sm:$0xff]
        %v585 = vld [vmem:[%s561 + $0x80] sm:$0xff]
        %v586 = vld [vmem:[%s561 + $0x88] sm:$0xff]
        %v587 = vld [vmem:[%s561 + $0x90] sm:$0xff]
        %v588 = vld [vmem:[%s561 + $0x98] sm:$0xff]
        %v589 = vld [vmem:[%s561 + $0xa0] sm:$0xff]
        %v590 = vld [vmem:[%s561 + $0xa8] sm:$0xff]
        %v591 = vld [vmem:[%s561 + $0xb0] sm:$0xff]
        %v592 = vld [vmem:[%s561 + $0xb8] sm:$0xff]
        %v593 = vld [vmem:[%s561 + $0xc0] sm:$0xff]
        %v594 = vld [vmem:[%s561 + $0xc8] sm:$0xff]
        %v595 = vld [vmem:[%s561 + $0xd0] sm:$0xff]
        %v596 = vld [vmem:[%s561 + $0xd8] sm:$0xff]
        %v597 = vld [vmem:[%s561 + $0xe0] sm:$0xff]
        %v598 = vld [vmem:[%s561 + $0xe8] sm:$0xff]
        %v599 = vld [vmem:[%s561 + $0xf0] sm:$0xff]
        %v600 = vld [vmem:[%s561 + $0xf8] sm:$0xff]
        %v601 = vld [vmem:[%s1] sm:$0x7]
        %603 = vset.pattern.permute.xlu0 0
        %604 = vperm.xlu0 %603, %v569
        %v605 = vpop.permute.xlu0 %604
        %608 = vset.pattern.permute.xlu0 0
        %609 = vperm.xlu0 %608, %v570
        %v610 = vpop.permute.xlu0 %609
        %613 = vset.pattern.permute.xlu0 0
        %614 = vperm.xlu0 %613, %v571
        %v615 = vpop.permute.xlu0 %614
        %618 = vset.pattern.permute.xlu0 0
        %619 = vperm.xlu0 %618, %v572
        %v620 = vpop.permute.xlu0 %619
        %623 = vset.pattern.permute.xlu0 0
        %624 = vperm.xlu0 %623, %v573
        %v625 = vpop.permute.xlu0 %624
        %628 = vset.pattern.permute.xlu0 0
        %629 = vperm.xlu0 %628, %v574
        %v630 = vpop.permute.xlu0 %629
        %633 = vset.pattern.permute.xlu0 0
        %634 = vperm.xlu0 %633, %v575
        %v635 = vpop.permute.xlu0 %634
        %638 = vset.pattern.permute.xlu0 0
        %639 = vperm.xlu0 %638, %v576
        %v640 = vpop.permute.xlu0 %639
        %643 = vset.pattern.permute.xlu0 0
        %644 = vperm.xlu0 %643, %v577
        %v645 = vpop.permute.xlu0 %644
        %648 = vset.pattern.permute.xlu0 0
        %649 = vperm.xlu0 %648, %v578
        %v650 = vpop.permute.xlu0 %649
        %653 = vset.pattern.permute.xlu0 0
        %654 = vperm.xlu0 %653, %v579
        %v655 = vpop.permute.xlu0 %654
        %658 = vset.pattern.permute.xlu0 0
        %659 = vperm.xlu0 %658, %v580
        %v660 = vpop.permute.xlu0 %659
        %663 = vset.pattern.permute.xlu0 0
        %664 = vperm.xlu0 %663, %v581
        %v665 = vpop.permute.xlu0 %664
        %668 = vset.pattern.permute.xlu0 0
        %669 = vperm.xlu0 %668, %v582
        %v670 = vpop.permute.xlu0 %669
        %673 = vset.pattern.permute.xlu0 0
        %674 = vperm.xlu0 %673, %v583
        %v675 = vpop.permute.xlu0 %674
        %678 = vset.pattern.permute.xlu0 0
        %679 = vperm.xlu0 %678, %v584
        %v680 = vpop.permute.xlu0 %679
        %683 = vset.pattern.permute.xlu0 0
        %684 = vperm.xlu0 %683, %v585
        %v685 = vpop.permute.xlu0 %684
        %688 = vset.pattern.permute.xlu0 0
        %689 = vperm.xlu0 %688, %v586
        %v690 = vpop.permute.xlu0 %689
        %693 = vset.pattern.permute.xlu0 0
        %694 = vperm.xlu0 %693, %v587
        %v695 = vpop.permute.xlu0 %694
        %698 = vset.pattern.permute.xlu0 0
        %699 = vperm.xlu0 %698, %v588
        %v700 = vpop.permute.xlu0 %699
        %703 = vset.pattern.permute.xlu0 0
        %704 = vperm.xlu0 %703, %v589
        %v705 = vpop.permute.xlu0 %704
        %708 = vset.pattern.permute.xlu0 0
        %709 = vperm.xlu0 %708, %v590
        %v710 = vpop.permute.xlu0 %709
        %713 = vset.pattern.permute.xlu0 0
        %714 = vperm.xlu0 %713, %v591
        %v715 = vpop.permute.xlu0 %714
        %718 = vset.pattern.permute.xlu0 0
        %719 = vperm.xlu0 %718, %v592
        %v720 = vpop.permute.xlu0 %719
        %723 = vset.pattern.permute.xlu0 0
        %724 = vperm.xlu0 %723, %v593
        %v725 = vpop.permute.xlu0 %724
        %728 = vset.pattern.permute.xlu0 0
        %729 = vperm.xlu0 %728, %v594
        %v730 = vpop.permute.xlu0 %729
        %733 = vset.pattern.permute.xlu0 0
        %734 = vperm.xlu0 %733, %v595
        %v735 = vpop.permute.xlu0 %734
        %738 = vset.pattern.permute.xlu0 0
        %739 = vperm.xlu0 %738, %v596
        %v740 = vpop.permute.xlu0 %739
        %743 = vset.pattern.permute.xlu0 0
        %744 = vperm.xlu0 %743, %v597
        %v745 = vpop.permute.xlu0 %744
        %748 = vset.pattern.permute.xlu0 0
        %749 = vperm.xlu0 %748, %v598
        %v750 = vpop.permute.xlu0 %749
        %753 = vset.pattern.permute.xlu0 0
        %754 = vperm.xlu0 %753, %v599
        %v755 = vpop.permute.xlu0 %754
        %758 = vset.pattern.permute.xlu0 0
        %759 = vperm.xlu0 %758, %v600
        %v760 = vpop.permute.xlu0 %759
        %v762 = vlaneseq
        %v763 = vshrl.u32 %v762, 7
        %v764 = vsub.s32 0, %v763
        %v765 = vrot.slane %v601, %v764
        %v766 = vmul.f32 %v605, %v765
        %v767 = vmul.f32 %v610, %v765
        %v768 = vmul.f32 %v615, %v765
        %v769 = vmul.f32 %v620, %v765
        %v770 = vmul.f32 %v625, %v765
        %v771 = vmul.f32 %v630, %v765
        %v772 = vmul.f32 %v635, %v765
        %v773 = vmul.f32 %v640, %v765
        %v774 = vmul.f32 %v645, %v765
        %v775 = vmul.f32 %v650, %v765
        %v776 = vmul.f32 %v655, %v765
        %v777 = vmul.f32 %v660, %v765
        %v778 = vmul.f32 %v665, %v765
        %v779 = vmul.f32 %v670, %v765
        %v780 = vmul.f32 %v675, %v765
        %v781 = vmul.f32 %v680, %v765
        %v782 = vmul.f32 %v685, %v765
        %v783 = vmul.f32 %v690, %v765
        %v784 = vmul.f32 %v695, %v765
        %v785 = vmul.f32 %v700, %v765
        %v786 = vmul.f32 %v705, %v765
        %v787 = vmul.f32 %v710, %v765
        %v788 = vmul.f32 %v715, %v765
        %v789 = vmul.f32 %v720, %v765
        %v790 = vmul.f32 %v725, %v765
        %v791 = vmul.f32 %v730, %v765
        %v792 = vmul.f32 %v735, %v765
        %v793 = vmul.f32 %v740, %v765
        %v794 = vmul.f32 %v745, %v765
        %v795 = vmul.f32 %v750, %v765
        %v796 = vmul.f32 %v755, %v765
        %v797 = vmul.f32 %v760, %v765
        %798 = vset.pattern.permute.xlu0 1
        %799 = vperm.xlu0 %798, %v569
        %v800 = vpop.permute.xlu0 %799
        %802 = vset.pattern.permute.xlu0 1
        %803 = vperm.xlu0 %802, %v570
        %v804 = vpop.permute.xlu0 %803
        %806 = vset.pattern.permute.xlu0 1
        %807 = vperm.xlu0 %806, %v571
        %v808 = vpop.permute.xlu0 %807
        %810 = vset.pattern.permute.xlu0 1
        %811 = vperm.xlu0 %810, %v572
        %v812 = vpop.permute.xlu0 %811
        %814 = vset.pattern.permute.xlu0 1
        %815 = vperm.xlu0 %814, %v573
        %v816 = vpop.permute.xlu0 %815
        %818 = vset.pattern.permute.xlu0 1
        %819 = vperm.xlu0 %818, %v574
        %v820 = vpop.permute.xlu0 %819
        %822 = vset.pattern.permute.xlu0 1
        %823 = vperm.xlu0 %822, %v575
        %v824 = vpop.permute.xlu0 %823
        %826 = vset.pattern.permute.xlu0 1
        %827 = vperm.xlu0 %826, %v576
        %v828 = vpop.permute.xlu0 %827
        %830 = vset.pattern.permute.xlu0 1
        %831 = vperm.xlu0 %830, %v577
        %v832 = vpop.permute.xlu0 %831
        %834 = vset.pattern.permute.xlu0 1
        %835 = vperm.xlu0 %834, %v578
        %v836 = vpop.permute.xlu0 %835
        %838 = vset.pattern.permute.xlu0 1
        %839 = vperm.xlu0 %838, %v579
        %v840 = vpop.permute.xlu0 %839
        %842 = vset.pattern.permute.xlu0 1
        %843 = vperm.xlu0 %842, %v580
        %v844 = vpop.permute.xlu0 %843
        %846 = vset.pattern.permute.xlu0 1
        %847 = vperm.xlu0 %846, %v581
        %v848 = vpop.permute.xlu0 %847
        %850 = vset.pattern.permute.xlu0 1
        %851 = vperm.xlu0 %850, %v582
        %v852 = vpop.permute.xlu0 %851
        %854 = vset.pattern.permute.xlu0 1
        %855 = vperm.xlu0 %854, %v583
        %v856 = vpop.permute.xlu0 %855
        %858 = vset.pattern.permute.xlu0 1
        %859 = vperm.xlu0 %858, %v584
        %v860 = vpop.permute.xlu0 %859
        %862 = vset.pattern.permute.xlu0 1
        %863 = vperm.xlu0 %862, %v585
        %v864 = vpop.permute.xlu0 %863
        %866 = vset.pattern.permute.xlu0 1
        %867 = vperm.xlu0 %866, %v586
        %v868 = vpop.permute.xlu0 %867
        %870 = vset.pattern.permute.xlu0 1
        %871 = vperm.xlu0 %870, %v587
        %v872 = vpop.permute.xlu0 %871
        %874 = vset.pattern.permute.xlu0 1
        %875 = vperm.xlu0 %874, %v588
        %v876 = vpop.permute.xlu0 %875
        %878 = vset.pattern.permute.xlu0 1
        %879 = vperm.xlu0 %878, %v589
        %v880 = vpop.permute.xlu0 %879
        %882 = vset.pattern.permute.xlu0 1
        %883 = vperm.xlu0 %882, %v590
        %v884 = vpop.permute.xlu0 %883
        %886 = vset.pattern.permute.xlu0 1
        %887 = vperm.xlu0 %886, %v591
        %v888 = vpop.permute.xlu0 %887
        %890 = vset.pattern.permute.xlu0 1
        %891 = vperm.xlu0 %890, %v592
        %v892 = vpop.permute.xlu0 %891
        %894 = vset.pattern.permute.xlu0 1
        %895 = vperm.xlu0 %894, %v593
        %v896 = vpop.permute.xlu0 %895
        %898 = vset.pattern.permute.xlu0 1
        %899 = vperm.xlu0 %898, %v594
        %v900 = vpop.permute.xlu0 %899
        %902 = vset.pattern.permute.xlu0 1
        %903 = vperm.xlu0 %902, %v595
        %v904 = vpop.permute.xlu0 %903
        %906 = vset.pattern.permute.xlu0 1
        %907 = vperm.xlu0 %906, %v596
        %v908 = vpop.permute.xlu0 %907
        %910 = vset.pattern.permute.xlu0 1
        %911 = vperm.xlu0 %910, %v597
        %v912 = vpop.permute.xlu0 %911
        %914 = vset.pattern.permute.xlu0 1
        %915 = vperm.xlu0 %914, %v598
        %v916 = vpop.permute.xlu0 %915
        %918 = vset.pattern.permute.xlu0 1
        %919 = vperm.xlu0 %918, %v599
        %v920 = vpop.permute.xlu0 %919
        %922 = vset.pattern.permute.xlu0 1
        %923 = vperm.xlu0 %922, %v600
        %v924 = vpop.permute.xlu0 %923
        %v926 = vlaneseq
        %v927 = vshrl.u32 %v926, 7
        %v928 = vsub.s32 1, %v927
        %v929 = vrot.slane %v601, %v928
        %v930 = vmul.f32 %v800, %v929
        %v931 = vmul.f32 %v804, %v929
        %v932 = vmul.f32 %v808, %v929
        %v933 = vmul.f32 %v812, %v929
        %v934 = vmul.f32 %v816, %v929
        %v935 = vmul.f32 %v820, %v929
        %v936 = vmul.f32 %v824, %v929
        %v937 = vmul.f32 %v828, %v929
        %v938 = vmul.f32 %v832, %v929
        %v939 = vmul.f32 %v836, %v929
        %v940 = vmul.f32 %v840, %v929
        %v941 = vmul.f32 %v844, %v929
        %v942 = vmul.f32 %v848, %v929
        %v943 = vmul.f32 %v852, %v929
        %v944 = vmul.f32 %v856, %v929
        %v945 = vmul.f32 %v860, %v929
        %v946 = vmul.f32 %v864, %v929
        %v947 = vmul.f32 %v868, %v929
        %v948 = vmul.f32 %v872, %v929
        %v949 = vmul.f32 %v876, %v929
        %v950 = vmul.f32 %v880, %v929
        %v951 = vmul.f32 %v884, %v929
        %v952 = vmul.f32 %v888, %v929
        %v953 = vmul.f32 %v892, %v929
        %v954 = vmul.f32 %v896, %v929
        %v955 = vmul.f32 %v900, %v929
        %v956 = vmul.f32 %v904, %v929
        %v957 = vmul.f32 %v908, %v929
        %v958 = vmul.f32 %v912, %v929
        %v959 = vmul.f32 %v916, %v929
        %v960 = vmul.f32 %v920, %v929
        %v961 = vmul.f32 %v924, %v929
        %v962 = vadd.f32 %v766, %v930
        %v963 = vadd.f32 %v767, %v931
        %v964 = vadd.f32 %v768, %v932
        %v965 = vadd.f32 %v769, %v933
        %v966 = vadd.f32 %v770, %v934
        %v967 = vadd.f32 %v771, %v935
        %v968 = vadd.f32 %v772, %v936
        %v969 = vadd.f32 %v773, %v937
        %v970 = vadd.f32 %v774, %v938
        %v971 = vadd.f32 %v775, %v939
        %v972 = vadd.f32 %v776, %v940
        %v973 = vadd.f32 %v777, %v941
        %v974 = vadd.f32 %v778, %v942
        %v975 = vadd.f32 %v779, %v943
        %v976 = vadd.f32 %v780, %v944
        %v977 = vadd.f32 %v781, %v945
        %v978 = vadd.f32 %v782, %v946
        %v979 = vadd.f32 %v783, %v947
        %v980 = vadd.f32 %v784, %v948
        %v981 = vadd.f32 %v785, %v949
        %v982 = vadd.f32 %v786, %v950
        %v983 = vadd.f32 %v787, %v951
        %v984 = vadd.f32 %v788, %v952
        %v985 = vadd.f32 %v789, %v953
        %v986 = vadd.f32 %v790, %v954
        %v987 = vadd.f32 %v791, %v955
        %v988 = vadd.f32 %v792, %v956
        %v989 = vadd.f32 %v793, %v957
        %v990 = vadd.f32 %v794, %v958
        %v991 = vadd.f32 %v795, %v959
        %v992 = vadd.f32 %v796, %v960
        %v993 = vadd.f32 %v797, %v961
        %994 = vset.pattern.permute.xlu0 2
        %995 = vperm.xlu0 %994, %v569
        %v996 = vpop.permute.xlu0 %995
        %998 = vset.pattern.permute.xlu0 2
        %999 = vperm.xlu0 %998, %v570
        %v1000 = vpop.permute.xlu0 %999
        %1002 = vset.pattern.permute.xlu0 2
        %1003 = vperm.xlu0 %1002, %v571
        %v1004 = vpop.permute.xlu0 %1003
        %1006 = vset.pattern.permute.xlu0 2
        %1007 = vperm.xlu0 %1006, %v572
        %v1008 = vpop.permute.xlu0 %1007
        %1010 = vset.pattern.permute.xlu0 2
        %1011 = vperm.xlu0 %1010, %v573
        %v1012 = vpop.permute.xlu0 %1011
        %1014 = vset.pattern.permute.xlu0 2
        %1015 = vperm.xlu0 %1014, %v574
        %v1016 = vpop.permute.xlu0 %1015
        %1018 = vset.pattern.permute.xlu0 2
        %1019 = vperm.xlu0 %1018, %v575
        %v1020 = vpop.permute.xlu0 %1019
        %1022 = vset.pattern.permute.xlu0 2
        %1023 = vperm.xlu0 %1022, %v576
        %v1024 = vpop.permute.xlu0 %1023
        %1026 = vset.pattern.permute.xlu0 2
        %1027 = vperm.xlu0 %1026, %v577
        %v1028 = vpop.permute.xlu0 %1027
        %1030 = vset.pattern.permute.xlu0 2
        %1031 = vperm.xlu0 %1030, %v578
        %v1032 = vpop.permute.xlu0 %1031
        %1034 = vset.pattern.permute.xlu0 2
        %1035 = vperm.xlu0 %1034, %v579
        %v1036 = vpop.permute.xlu0 %1035
        %1038 = vset.pattern.permute.xlu0 2
        %1039 = vperm.xlu0 %1038, %v580
        %v1040 = vpop.permute.xlu0 %1039
        %1042 = vset.pattern.permute.xlu0 2
        %1043 = vperm.xlu0 %1042, %v581
        %v1044 = vpop.permute.xlu0 %1043
        %1046 = vset.pattern.permute.xlu0 2
        %1047 = vperm.xlu0 %1046, %v582
        %v1048 = vpop.permute.xlu0 %1047
        %1050 = vset.pattern.permute.xlu0 2
        %1051 = vperm.xlu0 %1050, %v583
        %v1052 = vpop.permute.xlu0 %1051
        %1054 = vset.pattern.permute.xlu0 2
        %1055 = vperm.xlu0 %1054, %v584
        %v1056 = vpop.permute.xlu0 %1055
        %1058 = vset.pattern.permute.xlu0 2
        %1059 = vperm.xlu0 %1058, %v585
        %v1060 = vpop.permute.xlu0 %1059
        %1062 = vset.pattern.permute.xlu0 2
        %1063 = vperm.xlu0 %1062, %v586
        %v1064 = vpop.permute.xlu0 %1063
        %1066 = vset.pattern.permute.xlu0 2
        %1067 = vperm.xlu0 %1066, %v587
        %v1068 = vpop.permute.xlu0 %1067
        %1070 = vset.pattern.permute.xlu0 2
        %1071 = vperm.xlu0 %1070, %v588
        %v1072 = vpop.permute.xlu0 %1071
        %1074 = vset.pattern.permute.xlu0 2
        %1075 = vperm.xlu0 %1074, %v589
        %v1076 = vpop.permute.xlu0 %1075
        %1078 = vset.pattern.permute.xlu0 2
        %1079 = vperm.xlu0 %1078, %v590
        %v1080 = vpop.permute.xlu0 %1079
        %1082 = vset.pattern.permute.xlu0 2
        %1083 = vperm.xlu0 %1082, %v591
        %v1084 = vpop.permute.xlu0 %1083
        %1086 = vset.pattern.permute.xlu0 2
        %1087 = vperm.xlu0 %1086, %v592
        %v1088 = vpop.permute.xlu0 %1087
        %1090 = vset.pattern.permute.xlu0 2
        %1091 = vperm.xlu0 %1090, %v593
        %v1092 = vpop.permute.xlu0 %1091
        %1094 = vset.pattern.permute.xlu0 2
        %1095 = vperm.xlu0 %1094, %v594
        %v1096 = vpop.permute.xlu0 %1095
        %1098 = vset.pattern.permute.xlu0 2
        %1099 = vperm.xlu0 %1098, %v595
        %v1100 = vpop.permute.xlu0 %1099
        %1102 = vset.pattern.permute.xlu0 2
        %1103 = vperm.xlu0 %1102, %v596
        %v1104 = vpop.permute.xlu0 %1103
        %1106 = vset.pattern.permute.xlu0 2
        %1107 = vperm.xlu0 %1106, %v597
        %v1108 = vpop.permute.xlu0 %1107
        %1110 = vset.pattern.permute.xlu0 2
        %1111 = vperm.xlu0 %1110, %v598
        %v1112 = vpop.permute.xlu0 %1111
        %1114 = vset.pattern.permute.xlu0 2
        %1115 = vperm.xlu0 %1114, %v599
        %v1116 = vpop.permute.xlu0 %1115
        %1118 = vset.pattern.permute.xlu0 2
        %1119 = vperm.xlu0 %1118, %v600
        %v1120 = vpop.permute.xlu0 %1119
        %v1122 = vlaneseq
        %v1123 = vshrl.u32 %v1122, 7
        %v1124 = vsub.s32 2, %v1123
        %v1125 = vrot.slane %v601, %v1124
        %v1126 = vmul.f32 %v996, %v1125
        %v1127 = vmul.f32 %v1000, %v1125
        %v1128 = vmul.f32 %v1004, %v1125
        %v1129 = vmul.f32 %v1008, %v1125
        %v1130 = vmul.f32 %v1012, %v1125
        %v1131 = vmul.f32 %v1016, %v1125
        %v1132 = vmul.f32 %v1020, %v1125
        %v1133 = vmul.f32 %v1024, %v1125
        %v1134 = vmul.f32 %v1028, %v1125
        %v1135 = vmul.f32 %v1032, %v1125
        %v1136 = vmul.f32 %v1036, %v1125
        %v1137 = vmul.f32 %v1040, %v1125
        %v1138 = vmul.f32 %v1044, %v1125
        %v1139 = vmul.f32 %v1048, %v1125
        %v1140 = vmul.f32 %v1052, %v1125
        %v1141 = vmul.f32 %v1056, %v1125
        %v1142 = vmul.f32 %v1060, %v1125
        %v1143 = vmul.f32 %v1064, %v1125
        %v1144 = vmul.f32 %v1068, %v1125
        %v1145 = vmul.f32 %v1072, %v1125
        %v1146 = vmul.f32 %v1076, %v1125
        %v1147 = vmul.f32 %v1080, %v1125
        %v1148 = vmul.f32 %v1084, %v1125
        %v1149 = vmul.f32 %v1088, %v1125
        %v1150 = vmul.f32 %v1092, %v1125
        %v1151 = vmul.f32 %v1096, %v1125
        %v1152 = vmul.f32 %v1100, %v1125
        %v1153 = vmul.f32 %v1104, %v1125
        %v1154 = vmul.f32 %v1108, %v1125
        %v1155 = vmul.f32 %v1112, %v1125
        %v1156 = vmul.f32 %v1116, %v1125
        %v1157 = vmul.f32 %v1120, %v1125
        %v1158 = vadd.f32 %v962, %v1126
        %v1159 = vadd.f32 %v963, %v1127
        %v1160 = vadd.f32 %v964, %v1128
        %v1161 = vadd.f32 %v965, %v1129
        %v1162 = vadd.f32 %v966, %v1130
        %v1163 = vadd.f32 %v967, %v1131
        %v1164 = vadd.f32 %v968, %v1132
        %v1165 = vadd.f32 %v969, %v1133
        %v1166 = vadd.f32 %v970, %v1134
        %v1167 = vadd.f32 %v971, %v1135
        %v1168 = vadd.f32 %v972, %v1136
        %v1169 = vadd.f32 %v973, %v1137
        %v1170 = vadd.f32 %v974, %v1138
        %v1171 = vadd.f32 %v975, %v1139
        %v1172 = vadd.f32 %v976, %v1140
        %v1173 = vadd.f32 %v977, %v1141
        %v1174 = vadd.f32 %v978, %v1142
        %v1175 = vadd.f32 %v979, %v1143
        %v1176 = vadd.f32 %v980, %v1144
        %v1177 = vadd.f32 %v981, %v1145
        %v1178 = vadd.f32 %v982, %v1146
        %v1179 = vadd.f32 %v983, %v1147
        %v1180 = vadd.f32 %v984, %v1148
        %v1181 = vadd.f32 %v985, %v1149
        %v1182 = vadd.f32 %v986, %v1150
        %v1183 = vadd.f32 %v987, %v1151
        %v1184 = vadd.f32 %v988, %v1152
        %v1185 = vadd.f32 %v989, %v1153
        %v1186 = vadd.f32 %v990, %v1154
        %v1187 = vadd.f32 %v991, %v1155
        %v1188 = vadd.f32 %v992, %v1156
        %v1189 = vadd.f32 %v993, %v1157
        %v1190 = vld [vmem:[%s2] sm:$0x1]
        %v1192 = vlaneseq
        %v1193 = vshrl.u32 %v1192, 7
        %v1194 = vsub.s32 0, %v1193
        %v1195 = vrot.slane %v1190, %v1194
        %v1197 = vadd.f32 %v1158, %v1195
        %v1198 = vadd.f32 %v1159, %v1195
        %v1199 = vadd.f32 %v1160, %v1195
        %v1200 = vadd.f32 %v1161, %v1195
        %v1201 = vadd.f32 %v1162, %v1195
        %v1202 = vadd.f32 %v1163, %v1195
        %v1203 = vadd.f32 %v1164, %v1195
        %v1204 = vadd.f32 %v1165, %v1195
        %v1205 = vadd.f32 %v1166, %v1195
        %v1206 = vadd.f32 %v1167, %v1195
        %v1207 = vadd.f32 %v1168, %v1195
        %v1208 = vadd.f32 %v1169, %v1195
        %v1209 = vadd.f32 %v1170, %v1195
        %v1210 = vadd.f32 %v1171, %v1195
        %v1211 = vadd.f32 %v1172, %v1195
        %v1212 = vadd.f32 %v1173, %v1195
        %v1213 = vadd.f32 %v1174, %v1195
        %v1214 = vadd.f32 %v1175, %v1195
        %v1215 = vadd.f32 %v1176, %v1195
        %v1216 = vadd.f32 %v1177, %v1195
        %v1217 = vadd.f32 %v1178, %v1195
        %v1218 = vadd.f32 %v1179, %v1195
        %v1219 = vadd.f32 %v1180, %v1195
        %v1220 = vadd.f32 %v1181, %v1195
        %v1221 = vadd.f32 %v1182, %v1195
        %v1222 = vadd.f32 %v1183, %v1195
        %v1223 = vadd.f32 %v1184, %v1195
        %v1224 = vadd.f32 %v1185, %v1195
        %v1225 = vadd.f32 %v1186, %v1195
        %v1226 = vadd.f32 %v1187, %v1195
        %v1227 = vadd.f32 %v1188, %v1195
        %v1228 = vadd.f32 %v1189, %v1195
        %v1229 = vmax.f32 %v1197, 0.0
        %v1230 = vmax.f32 %v1198, 0.0
        %v1231 = vmax.f32 %v1199, 0.0
        %v1232 = vmax.f32 %v1200, 0.0
        %v1233 = vmax.f32 %v1201, 0.0
        %v1234 = vmax.f32 %v1202, 0.0
        %v1235 = vmax.f32 %v1203, 0.0
        %v1236 = vmax.f32 %v1204, 0.0
        %v1237 = vmax.f32 %v1205, 0.0
        %v1238 = vmax.f32 %v1206, 0.0
        %v1239 = vmax.f32 %v1207, 0.0
        %v1240 = vmax.f32 %v1208, 0.0
        %v1241 = vmax.f32 %v1209, 0.0
        %v1242 = vmax.f32 %v1210, 0.0
        %v1243 = vmax.f32 %v1211, 0.0
        %v1244 = vmax.f32 %v1212, 0.0
        %v1245 = vmax.f32 %v1213, 0.0
        %v1246 = vmax.f32 %v1214, 0.0
        %v1247 = vmax.f32 %v1215, 0.0
        %v1248 = vmax.f32 %v1216, 0.0
        %v1249 = vmax.f32 %v1217, 0.0
        %v1250 = vmax.f32 %v1218, 0.0
        %v1251 = vmax.f32 %v1219, 0.0
        %v1252 = vmax.f32 %v1220, 0.0
        %v1253 = vmax.f32 %v1221, 0.0
        %v1254 = vmax.f32 %v1222, 0.0
        %v1255 = vmax.f32 %v1223, 0.0
        %v1256 = vmax.f32 %v1224, 0.0
        %v1257 = vmax.f32 %v1225, 0.0
        %v1258 = vmax.f32 %v1226, 0.0
        %v1259 = vmax.f32 %v1227, 0.0
        %v1260 = vmax.f32 %v1228, 0.0
        %v1261 = vpack.c.bf16 %v1230, %v1229
        %v1262 = vpack.c.bf16 %v1232, %v1231
        %v1263 = vpack.c.bf16 %v1234, %v1233
        %v1264 = vpack.c.bf16 %v1236, %v1235
        %v1265 = vpack.c.bf16 %v1238, %v1237
        %v1266 = vpack.c.bf16 %v1240, %v1239
        %v1267 = vpack.c.bf16 %v1242, %v1241
        %v1268 = vpack.c.bf16 %v1244, %v1243
        %v1269 = vpack.c.bf16 %v1246, %v1245
        %v1270 = vpack.c.bf16 %v1248, %v1247
        %v1271 = vpack.c.bf16 %v1250, %v1249
        %v1272 = vpack.c.bf16 %v1252, %v1251
        %v1273 = vpack.c.bf16 %v1254, %v1253
        %v1274 = vpack.c.bf16 %v1256, %v1255
        %v1275 = vpack.c.bf16 %v1258, %v1257
        %v1276 = vpack.c.bf16 %v1260, %v1259
        %v1277 = vld [vmem:[#allocation2] sm:$0xf]
        %v1278 = vld [vmem:[#allocation2 + $0x4] sm:$0xf]
        %v1279 = vld [vmem:[#allocation2 + $0x8] sm:$0xf]
        %v1280 = vld [vmem:[#allocation2 + $0xc] sm:$0xf]
        %v1281 = vld [vmem:[#allocation2 + $0x10] sm:$0xf]
        %v1282 = vld [vmem:[#allocation2 + $0x14] sm:$0xf]
        %v1283 = vld [vmem:[#allocation2 + $0x18] sm:$0xf]
        %v1284 = vld [vmem:[#allocation2 + $0x1c] sm:$0xf]
        %v1285 = vld [vmem:[%s4] sm:$0x1]
        %v1287 = vlaneseq
        %v1288 = vshrl.u32 %v1287, 7
        %v1289 = vsub.s32 0, %v1288
        %v1290 = vrot.slane %v1285, %v1289
        %v1300 = vunpack.c.l.b16 %v1277
        %v1301 = vunpack.c.l.b16 %v1278
        %v1302 = vunpack.c.l.b16 %v1279
        %v1303 = vunpack.c.l.b16 %v1280
        %v1304 = vunpack.c.l.b16 %v1281
        %v1305 = vunpack.c.l.b16 %v1282
        %v1306 = vunpack.c.l.b16 %v1283
        %v1307 = vunpack.c.l.b16 %v1284
        %v1308 = vpack.c.b16 %v1301, %v1300
        %v1309 = vpack.c.b16 %v1303, %v1302
        %v1310 = vpack.c.b16 %v1305, %v1304
        %v1311 = vpack.c.b16 %v1307, %v1306
        %vm1316 = vcmask 523264
        %v1318 = vsel %vm1316, %v1261, 0
        %v1321 = vsel %vm1316, %v1262, 0
        %v1324 = vsel %vm1316, %v1263, 0
        %v1327 = vsel %vm1316, %v1264, 0
        %v1330 = vsel %vm1316, %v1265, 0
        %v1333 = vsel %vm1316, %v1266, 0
        %v1336 = vsel %vm1316, %v1267, 0
        %v1339 = vsel %vm1316, %v1268, 0
        %v1342 = vsel %vm1316, %v1269, 0
        %v1345 = vsel %vm1316, %v1270, 0
        %v1348 = vsel %vm1316, %v1271, 0
        %v1351 = vsel %vm1316, %v1272, 0
        %v1354 = vsel %vm1316, %v1273, 0
        %v1357 = vsel %vm1316, %v1274, 0
        %v1360 = vsel %vm1316, %v1275, 0
        %v1363 = vsel %vm1316, %v1276, 0
        %1365 = vmatprep.subr.bf16.mxu0 0
        %1366 = vmatpush1.bf16.msra.mxu0 %v1308
        %1367 = vmatprep.subr.bf16.mxu0 0
        %1368 = vmatpush1.bf16.msra.mxu0 %v1309
        %1369 = vmatprep.subr.bf16.mxu0 0
        %1370 = vmatpush1.bf16.msra.mxu0 %v1310
        %1371 = vmatprep.subr.bf16.mxu0 0
        %1372 = vmatpush1.bf16.msra.mxu0 %v1311
        %1373 = vmatprep.subr.bf16.mxu0 0
        %1374 = vmatpush1.bf16.msra.mxu0 0
        %1375 = vmatprep.subr.bf16.mxu0 0
        %1376 = vmatpush1.bf16.msra.mxu0 0
        %1377 = vmatprep.subr.bf16.mxu0 0
        %1378 = vmatpush1.bf16.msra.mxu0 0
        %1379 = vmatprep.subr.bf16.mxu0 0
        %1380 = vmatpush1.bf16.msra.mxu0 0
        %1381 = vmatprep.subr.bf16.mxu0 0
        %1382 = vmatpush1.bf16.msra.mxu0 0
        %1383 = vmatprep.subr.bf16.mxu0 0
        %1384 = vmatpush1.bf16.msra.mxu0 0
        %1385 = vmatprep.subr.bf16.mxu0 0
        %1386 = vmatpush1.bf16.msra.mxu0 0
        %1387 = vmatprep.subr.bf16.mxu0 0
        %1388 = vmatpush1.bf16.msra.mxu0 0
        %1389 = vmatprep.subr.bf16.mxu0 0
        %1390 = vmatpush1.bf16.msra.mxu0 0
        %1391 = vmatprep.subr.bf16.mxu0 0
        %1392 = vmatpush1.bf16.msra.mxu0 0
        %1393 = vmatprep.subr.bf16.mxu0 0
        %1394 = vmatpush1.bf16.msra.mxu0 0
        %1395 = vmatprep.subr.bf16.mxu0 0
        %1396 = vmatpush1.bf16.msra.mxu0 0
        %1397 = vmatprep.mubr.bf16.mxu0 0
        %1398 = vmatmul.mubr.bf16.gmra.mrb[0].mxu0 %v1318
        %v1399 = vpop.f32.mrb[0].mxu0
        %v1400 = vadd.f32 %v1290, %v1399
        %v1401 = vpop.f32.mrb[0].mxu0
        %v1402 = vpop.f32.mrb[0].mxu0
        %v1403 = vadd.f32 %v1290, %v1402
        %v1404 = vpop.f32.mrb[0].mxu0
        %1405 = vmatprep.mubr.bf16.mxu0 0
        %1406 = vmatmul.mubr.bf16.gmra.mrb[0].mxu0 %v1321
        %v1407 = vpop.f32.mrb[0].mxu0
        %v1408 = vadd.f32 %v1290, %v1407
        %v1409 = vpop.f32.mrb[0].mxu0
        %v1410 = vpop.f32.mrb[0].mxu0
        %v1411 = vadd.f32 %v1290, %v1410
        %v1412 = vpop.f32.mrb[0].mxu0
        %1413 = vmatprep.mubr.bf16.mxu0 0
        %1414 = vmatmul.mubr.bf16.gmra.mrb[0].mxu0 %v1324
        %v1415 = vpop.f32.mrb[0].mxu0
        %v1416 = vadd.f32 %v1290, %v1415
        %v1417 = vpop.f32.mrb[0].mxu0
        %v1418 = vpop.f32.mrb[0].mxu0
        %v1419 = vadd.f32 %v1290, %v1418
        %v1420 = vpop.f32.mrb[0].mxu0
        %1421 = vmatprep.mubr.bf16.mxu0 0
        %1422 = vmatmul.mubr.bf16.gmra.mrb[0].mxu0 %v1327
        %v1423 = vpop.f32.mrb[0].mxu0
        %v1424 = vadd.f32 %v1290, %v1423
        %v1425 = vpop.f32.mrb[0].mxu0
        %v1426 = vpop.f32.mrb[0].mxu0
        %v1427 = vadd.f32 %v1290, %v1426
        %v1428 = vpop.f32.mrb[0].mxu0
        %1429 = vmatprep.mubr.bf16.mxu0 0
        %1430 = vmatmul.mubr.bf16.gmra.mrb[0].mxu0 %v1330
        %v1431 = vpop.f32.mrb[0].mxu0
        %v1432 = vadd.f32 %v1290, %v1431
        %v1433 = vpop.f32.mrb[0].mxu0
        %v1434 = vpop.f32.mrb[0].mxu0
        %v1435 = vadd.f32 %v1290, %v1434
        %v1436 = vpop.f32.mrb[0].mxu0
        %1437 = vmatprep.mubr.bf16.mxu0 0
        %1438 = vmatmul.mubr.bf16.gmra.mrb[0].mxu0 %v1333
        %v1439 = vpop.f32.mrb[0].mxu0
        %v1440 = vadd.f32 %v1290, %v1439
        %v1441 = vpop.f32.mrb[0].mxu0
        %v1442 = vpop.f32.mrb[0].mxu0
        %v1443 = vadd.f32 %v1290, %v1442
        %v1444 = vpop.f32.mrb[0].mxu0
        %1445 = vmatprep.mubr.bf16.mxu0 0
        %1446 = vmatmul.mubr.bf16.gmra.mrb[0].mxu0 %v1336
        %v1447 = vpop.f32.mrb[0].mxu0
        %v1448 = vadd.f32 %v1290, %v1447
        %v1449 = vpop.f32.mrb[0].mxu0
        %v1450 = vpop.f32.mrb[0].mxu0
        %v1451 = vadd.f32 %v1290, %v1450
        %v1452 = vpop.f32.mrb[0].mxu0
        %1453 = vmatprep.mubr.bf16.mxu0 0
        %1454 = vmatmul.mubr.bf16.gmra.mrb[0].mxu0 %v1339
        %v1455 = vpop.f32.mrb[0].mxu0
        %v1456 = vadd.f32 %v1290, %v1455
        %v1457 = vpop.f32.mrb[0].mxu0
        %v1458 = vpop.f32.mrb[0].mxu0
        %v1459 = vadd.f32 %v1290, %v1458
        %v1460 = vpop.f32.mrb[0].mxu0
        %1461 = vmatprep.mubr.bf16.mxu0 0
        %1462 = vmatmul.mubr.bf16.gmra.mrb[0].mxu0 %v1342
        %v1463 = vpop.f32.mrb[0].mxu0
        %v1464 = vadd.f32 %v1290, %v1463
        %v1465 = vpop.f32.mrb[0].mxu0
        %v1466 = vpop.f32.mrb[0].mxu0
        %v1467 = vadd.f32 %v1290, %v1466
        %v1468 = vpop.f32.mrb[0].mxu0
        %1469 = vmatprep.mubr.bf16.mxu0 0
        %1470 = vmatmul.mubr.bf16.gmra.mrb[0].mxu0 %v1345
        %v1471 = vpop.f32.mrb[0].mxu0
        %v1472 = vadd.f32 %v1290, %v1471
        %v1473 = vpop.f32.mrb[0].mxu0
        %v1474 = vpop.f32.mrb[0].mxu0
        %v1475 = vadd.f32 %v1290, %v1474
        %v1476 = vpop.f32.mrb[0].mxu0
        %1477 = vmatprep.mubr.bf16.mxu0 0
        %1478 = vmatmul.mubr.bf16.gmra.mrb[0].mxu0 %v1348
        %v1479 = vpop.f32.mrb[0].mxu0
        %v1480 = vadd.f32 %v1290, %v1479
        %v1481 = vpop.f32.mrb[0].mxu0
        %v1482 = vpop.f32.mrb[0].mxu0
        %v1483 = vadd.f32 %v1290, %v1482
        %v1484 = vpop.f32.mrb[0].mxu0
        %1485 = vmatprep.mubr.bf16.mxu0 0
        %1486 = vmatmul.mubr.bf16.gmra.mrb[0].mxu0 %v1351
        %v1487 = vpop.f32.mrb[0].mxu0
        %v1488 = vadd.f32 %v1290, %v1487
        %v1489 = vpop.f32.mrb[0].mxu0
        %v1490 = vpop.f32.mrb[0].mxu0
        %v1491 = vadd.f32 %v1290, %v1490
        %v1492 = vpop.f32.mrb[0].mxu0
        %1493 = vmatprep.mubr.bf16.mxu0 0
        %1494 = vmatmul.mubr.bf16.gmra.mrb[0].mxu0 %v1354
        %v1495 = vpop.f32.mrb[0].mxu0
        %v1496 = vadd.f32 %v1290, %v1495
        %v1497 = vpop.f32.mrb[0].mxu0
        %v1498 = vpop.f32.mrb[0].mxu0
        %v1499 = vadd.f32 %v1290, %v1498
        %v1500 = vpop.f32.mrb[0].mxu0
        %1501 = vmatprep.mubr.bf16.mxu0 0
        %1502 = vmatmul.mubr.bf16.gmra.mrb[0].mxu0 %v1357
        %v1503 = vpop.f32.mrb[0].mxu0
        %v1504 = vadd.f32 %v1290, %v1503
        %v1505 = vpop.f32.mrb[0].mxu0
        %v1506 = vpop.f32.mrb[0].mxu0
        %v1507 = vadd.f32 %v1290, %v1506
        %v1508 = vpop.f32.mrb[0].mxu0
        %1509 = vmatprep.mubr.bf16.mxu0 0
        %1510 = vmatmul.mubr.bf16.gmra.mrb[0].mxu0 %v1360
        %v1511 = vpop.f32.mrb[0].mxu0
        %v1512 = vadd.f32 %v1290, %v1511
        %v1513 = vpop.f32.mrb[0].mxu0
        %v1514 = vpop.f32.mrb[0].mxu0
        %v1515 = vadd.f32 %v1290, %v1514
        %v1516 = vpop.f32.mrb[0].mxu0
        %1517 = vmatprep.mubr.bf16.mxu0 0
        %1518 = vmatmul.mubr.bf16.gmra.mrb[0].mxu0 %v1363
        %v1519 = vpop.f32.mrb[0].mxu0
        %v1520 = vadd.f32 %v1290, %v1519
        %v1521 = vpop.f32.mrb[0].mxu0
        %v1522 = vpop.f32.mrb[0].mxu0
        %v1523 = vadd.f32 %v1290, %v1522
        %v1524 = vpop.f32.mrb[0].mxu0
        %1525 = vdwg.mxu0
        %v1526 = vmax.f32 %v1400, 0.0
        %v1527 = vmax.f32 %v1403, 0.0
        %v1528 = vmax.f32 %v1408, 0.0
        %v1529 = vmax.f32 %v1411, 0.0
        %v1530 = vmax.f32 %v1416, 0.0
        %v1531 = vmax.f32 %v1419, 0.0
        %v1532 = vmax.f32 %v1424, 0.0
        %v1533 = vmax.f32 %v1427, 0.0
        %v1534 = vmax.f32 %v1432, 0.0
        %v1535 = vmax.f32 %v1435, 0.0
        %v1536 = vmax.f32 %v1440, 0.0
        %v1537 = vmax.f32 %v1443, 0.0
        %v1538 = vmax.f32 %v1448, 0.0
        %v1539 = vmax.f32 %v1451, 0.0
        %v1540 = vmax.f32 %v1456, 0.0
        %v1541 = vmax.f32 %v1459, 0.0
        %v1542 = vmax.f32 %v1464, 0.0
        %v1543 = vmax.f32 %v1467, 0.0
        %v1544 = vmax.f32 %v1472, 0.0
        %v1545 = vmax.f32 %v1475, 0.0
        %v1546 = vmax.f32 %v1480, 0.0
        %v1547 = vmax.f32 %v1483, 0.0
        %v1548 = vmax.f32 %v1488, 0.0
        %v1549 = vmax.f32 %v1491, 0.0
        %v1550 = vmax.f32 %v1496, 0.0
        %v1551 = vmax.f32 %v1499, 0.0
        %v1552 = vmax.f32 %v1504, 0.0
        %v1553 = vmax.f32 %v1507, 0.0
        %v1554 = vmax.f32 %v1512, 0.0
        %v1555 = vmax.f32 %v1515, 0.0
        %v1556 = vmax.f32 %v1520, 0.0
        %v1557 = vmax.f32 %v1523, 0.0
        %v1558 = vpack.c.bf16 %v1527, %v1526
        %v1559 = vpack.c.bf16 %v1529, %v1528
        %v1560 = vpack.c.bf16 %v1531, %v1530
        %v1561 = vpack.c.bf16 %v1533, %v1532
        %v1562 = vpack.c.bf16 %v1535, %v1534
        %v1563 = vpack.c.bf16 %v1537, %v1536
        %v1564 = vpack.c.bf16 %v1539, %v1538
        %v1565 = vpack.c.bf16 %v1541, %v1540
        %v1566 = vpack.c.bf16 %v1543, %v1542
        %v1567 = vpack.c.bf16 %v1545, %v1544
        %v1568 = vpack.c.bf16 %v1547, %v1546
        %v1569 = vpack.c.bf16 %v1549, %v1548
        %v1570 = vpack.c.bf16 %v1551, %v1550
        %v1571 = vpack.c.bf16 %v1553, %v1552
        %v1572 = vpack.c.bf16 %v1555, %v1554
        %v1573 = vpack.c.bf16 %v1557, %v1556
        %v1574 = vld [vmem:[%s5] sm:$0xff]
        %v1575 = vld [vmem:[%s5 + $0x8] sm:$0xff]
        %v1576 = vld [vmem:[%s5 + $0x10] sm:$0xff]
        %v1577 = vld [vmem:[%s5 + $0x18] sm:$0xff]
        %v1578 = vld [vmem:[%s5 + $0x20] sm:$0xff]
        %v1579 = vld [vmem:[%s5 + $0x28] sm:$0xff]
        %v1580 = vld [vmem:[%s5 + $0x30] sm:$0xff]
        %v1581 = vld [vmem:[%s5 + $0x38] sm:$0xff]
        %v1582 = vld [vmem:[%s5 + $0x40] sm:$0xff]
        %v1583 = vld [vmem:[%s5 + $0x48] sm:$0xff]
        %v1584 = vld [vmem:[%s5 + $0x50] sm:$0xff]
        %v1585 = vld [vmem:[%s5 + $0x58] sm:$0xff]
        %v1586 = vld [vmem:[%s5 + $0x60] sm:$0xff]
        %v1587 = vld [vmem:[%s5 + $0x68] sm:$0xff]
        %v1588 = vld [vmem:[%s5 + $0x70] sm:$0xff]
        %v1589 = vld [vmem:[%s5 + $0x78] sm:$0xff]
        %v1590 = vld [vmem:[%s5 + $0x80] sm:$0xff]
        %v1591 = vld [vmem:[%s5 + $0x88] sm:$0xff]
        %v1592 = vld [vmem:[%s5 + $0x90] sm:$0xff]
        %v1593 = vld [vmem:[%s5 + $0x98] sm:$0xff]
        %v1594 = vld [vmem:[%s5 + $0xa0] sm:$0xff]
        %v1595 = vld [vmem:[%s5 + $0xa8] sm:$0xff]
        %v1596 = vld [vmem:[%s5 + $0xb0] sm:$0xff]
        %v1597 = vld [vmem:[%s5 + $0xb8] sm:$0xff]
        %v1598 = vld [vmem:[%s5 + $0xc0] sm:$0xff]
        %v1599 = vld [vmem:[%s5 + $0xc8] sm:$0xff]
        %v1600 = vld [vmem:[%s5 + $0xd0] sm:$0xff]
        %v1601 = vld [vmem:[%s5 + $0xd8] sm:$0xff]
        %v1602 = vld [vmem:[%s5 + $0xe0] sm:$0xff]
        %v1603 = vld [vmem:[%s5 + $0xe8] sm:$0xff]
        %v1604 = vld [vmem:[%s5 + $0xf0] sm:$0xff]
        %v1605 = vld [vmem:[%s5 + $0xf8] sm:$0xff]
        %v1606 = vld [vmem:[%s5 + $0x100] sm:$0xff]
        %v1607 = vld [vmem:[%s5 + $0x108] sm:$0xff]
        %v1608 = vld [vmem:[%s5 + $0x110] sm:$0xff]
        %v1609 = vld [vmem:[%s5 + $0x118] sm:$0xff]
        %v1610 = vld [vmem:[%s5 + $0x120] sm:$0xff]
        %v1611 = vld [vmem:[%s5 + $0x128] sm:$0xff]
        %v1612 = vld [vmem:[%s5 + $0x130] sm:$0xff]
        %v1613 = vld [vmem:[%s5 + $0x138] sm:$0xff]
        %v1614 = vld [vmem:[%s5 + $0x140] sm:$0xff]
        %v1615 = vld [vmem:[%s5 + $0x148] sm:$0xff]
        %v1616 = vld [vmem:[%s5 + $0x150] sm:$0xff]
        %v1617 = vld [vmem:[%s5 + $0x158] sm:$0xff]
        %v1618 = vld [vmem:[%s5 + $0x160] sm:$0xff]
        %v1619 = vld [vmem:[%s5 + $0x168] sm:$0xff]
        %v1620 = vld [vmem:[%s5 + $0x170] sm:$0xff]
        %v1621 = vld [vmem:[%s5 + $0x178] sm:$0xff]
        %v1622 = vld [vmem:[%s5 + $0x180] sm:$0xff]
        %v1623 = vld [vmem:[%s5 + $0x188] sm:$0xff]
        %v1624 = vld [vmem:[%s5 + $0x190] sm:$0xff]
        %v1625 = vld [vmem:[%s5 + $0x198] sm:$0xff]
        %v1626 = vld [vmem:[%s5 + $0x1a0] sm:$0xff]
        %v1627 = vld [vmem:[%s5 + $0x1a8] sm:$0xff]
        %v1628 = vld [vmem:[%s5 + $0x1b0] sm:$0xff]
        %v1629 = vld [vmem:[%s5 + $0x1b8] sm:$0xff]
        %v1630 = vld [vmem:[%s5 + $0x1c0] sm:$0xff]
        %v1631 = vld [vmem:[%s5 + $0x1c8] sm:$0xff]
        %v1632 = vld [vmem:[%s5 + $0x1d0] sm:$0xff]
        %v1633 = vld [vmem:[%s5 + $0x1d8] sm:$0xff]
        %v1634 = vld [vmem:[%s5 + $0x1e0] sm:$0xff]
        %v1635 = vld [vmem:[%s5 + $0x1e8] sm:$0xff]
        %v1636 = vld [vmem:[%s5 + $0x1f0] sm:$0xff]
        %v1637 = vld [vmem:[%s5 + $0x1f8] sm:$0xff]
        %v1638 = vld [vmem:[%s6] sm:$0xff]
        %v1640 = vlaneseq
        %v1641 = vshrl.u32 %v1640, 7
        %v1642 = vsub.s32 0, %v1641
        %v1643 = vrot.slane %v1638, %v1642
        %v1644 = vlaneseq
        %v1645 = vshrl.u32 %v1644, 7
        %v1646 = vsub.s32 1, %v1645
        %v1647 = vrot.slane %v1638, %v1646
        %v1648 = vlaneseq
        %v1649 = vshrl.u32 %v1648, 7
        %v1650 = vsub.s32 2, %v1649
        %v1651 = vrot.slane %v1638, %v1650
        %v1652 = vlaneseq
        %v1653 = vshrl.u32 %v1652, 7
        %v1654 = vsub.s32 3, %v1653
        %v1655 = vrot.slane %v1638, %v1654
        %v1656 = vlaneseq
        %v1657 = vshrl.u32 %v1656, 7
        %v1658 = vsub.s32 4, %v1657
        %v1659 = vrot.slane %v1638, %v1658
        %v1660 = vlaneseq
        %v1661 = vshrl.u32 %v1660, 7
        %v1662 = vsub.s32 5, %v1661
        %v1663 = vrot.slane %v1638, %v1662
        %v1664 = vlaneseq
        %v1665 = vshrl.u32 %v1664, 7
        %v1666 = vsub.s32 6, %v1665
        %v1667 = vrot.slane %v1638, %v1666
        %v1668 = vlaneseq
        %v1669 = vshrl.u32 %v1668, 7
        %v1670 = vsub.s32 7, %v1669
        %v1671 = vrot.slane %v1638, %v1670
        %v1744 = vunpack.c.l.b16 %v1574
        %v1745 = vunpack.c.h.b16 %v1574
        %v1746 = vunpack.c.l.b16 %v1575
        %v1747 = vunpack.c.h.b16 %v1575
        %v1748 = vunpack.c.l.b16 %v1576
        %v1749 = vunpack.c.h.b16 %v1576
        %v1750 = vunpack.c.l.b16 %v1577
        %v1751 = vunpack.c.h.b16 %v1577
        %v1752 = vunpack.c.l.b16 %v1578
        %v1753 = vunpack.c.h.b16 %v1578
        %v1754 = vunpack.c.l.b16 %v1579
        %v1755 = vunpack.c.h.b16 %v1579
        %v1756 = vunpack.c.l.b16 %v1580
        %v1757 = vunpack.c.h.b16 %v1580
        %v1758 = vunpack.c.l.b16 %v1581
        %v1759 = vunpack.c.h.b16 %v1581
        %v1760 = vunpack.c.l.b16 %v1582
        %v1761 = vunpack.c.h.b16 %v1582
        %v1762 = vunpack.c.l.b16 %v1583
        %v1763 = vunpack.c.h.b16 %v1583
        %v1764 = vunpack.c.l.b16 %v1584
        %v1765 = vunpack.c.h.b16 %v1584
        %v1766 = vunpack.c.l.b16 %v1585
        %v1767 = vunpack.c.h.b16 %v1585
        %v1768 = vunpack.c.l.b16 %v1586
        %v1769 = vunpack.c.h.b16 %v1586
        %v1770 = vunpack.c.l.b16 %v1587
        %v1771 = vunpack.c.h.b16 %v1587
        %v1772 = vunpack.c.l.b16 %v1588
        %v1773 = vunpack.c.h.b16 %v1588
        %v1774 = vunpack.c.l.b16 %v1589
        %v1775 = vunpack.c.h.b16 %v1589
        %v1776 = vunpack.c.l.b16 %v1590
        %v1777 = vunpack.c.h.b16 %v1590
        %v1778 = vunpack.c.l.b16 %v1591
        %v1779 = vunpack.c.h.b16 %v1591
        %v1780 = vunpack.c.l.b16 %v1592
        %v1781 = vunpack.c.h.b16 %v1592
        %v1782 = vunpack.c.l.b16 %v1593
        %v1783 = vunpack.c.h.b16 %v1593
        %v1784 = vunpack.c.l.b16 %v1594
        %v1785 = vunpack.c.h.b16 %v1594
        %v1786 = vunpack.c.l.b16 %v1595
        %v1787 = vunpack.c.h.b16 %v1595
        %v1788 = vunpack.c.l.b16 %v1596
        %v1789 = vunpack.c.h.b16 %v1596
        %v1790 = vunpack.c.l.b16 %v1597
        %v1791 = vunpack.c.h.b16 %v1597
        %v1792 = vunpack.c.l.b16 %v1598
        %v1793 = vunpack.c.h.b16 %v1598
        %v1794 = vunpack.c.l.b16 %v1599
        %v1795 = vunpack.c.h.b16 %v1599
        %v1796 = vunpack.c.l.b16 %v1600
        %v1797 = vunpack.c.h.b16 %v1600
        %v1798 = vunpack.c.l.b16 %v1601
        %v1799 = vunpack.c.h.b16 %v1601
        %v1800 = vunpack.c.l.b16 %v1602
        %v1801 = vunpack.c.h.b16 %v1602
        %v1802 = vunpack.c.l.b16 %v1603
        %v1803 = vunpack.c.h.b16 %v1603
        %v1804 = vunpack.c.l.b16 %v1604
        %v1805 = vunpack.c.h.b16 %v1604
        %v1806 = vunpack.c.l.b16 %v1605
        %v1807 = vunpack.c.h.b16 %v1605
        %v1808 = vunpack.c.l.b16 %v1606
        %v1809 = vunpack.c.h.b16 %v1606
        %v1810 = vunpack.c.l.b16 %v1607
        %v1811 = vunpack.c.h.b16 %v1607
        %v1812 = vunpack.c.l.b16 %v1608
        %v1813 = vunpack.c.h.b16 %v1608
        %v1814 = vunpack.c.l.b16 %v1609
        %v1815 = vunpack.c.h.b16 %v1609
        %v1816 = vunpack.c.l.b16 %v1610
        %v1817 = vunpack.c.h.b16 %v1610
        %v1818 = vunpack.c.l.b16 %v1611
        %v1819 = vunpack.c.h.b16 %v1611
        %v1820 = vunpack.c.l.b16 %v1612
        %v1821 = vunpack.c.h.b16 %v1612
        %v1822 = vunpack.c.l.b16 %v1613
        %v1823 = vunpack.c.h.b16 %v1613
        %v1824 = vunpack.c.l.b16 %v1614
        %v1825 = vunpack.c.h.b16 %v1614
        %v1826 = vunpack.c.l.b16 %v1615
        %v1827 = vunpack.c.h.b16 %v1615
        %v1828 = vunpack.c.l.b16 %v1616
        %v1829 = vunpack.c.h.b16 %v1616
        %v1830 = vunpack.c.l.b16 %v1617
        %v1831 = vunpack.c.h.b16 %v1617
        %v1832 = vunpack.c.l.b16 %v1618
        %v1833 = vunpack.c.h.b16 %v1618
        %v1834 = vunpack.c.l.b16 %v1619
        %v1835 = vunpack.c.h.b16 %v1619
        %v1836 = vunpack.c.l.b16 %v1620
        %v1837 = vunpack.c.h.b16 %v1620
        %v1838 = vunpack.c.l.b16 %v1621
        %v1839 = vunpack.c.h.b16 %v1621
        %v1840 = vunpack.c.l.b16 %v1622
        %v1841 = vunpack.c.h.b16 %v1622
        %v1842 = vunpack.c.l.b16 %v1623
        %v1843 = vunpack.c.h.b16 %v1623
        %v1844 = vunpack.c.l.b16 %v1624
        %v1845 = vunpack.c.h.b16 %v1624
        %v1846 = vunpack.c.l.b16 %v1625
        %v1847 = vunpack.c.h.b16 %v1625
        %v1848 = vunpack.c.l.b16 %v1626
        %v1849 = vunpack.c.h.b16 %v1626
        %v1850 = vunpack.c.l.b16 %v1627
        %v1851 = vunpack.c.h.b16 %v1627
        %v1852 = vunpack.c.l.b16 %v1628
        %v1853 = vunpack.c.h.b16 %v1628
        %v1854 = vunpack.c.l.b16 %v1629
        %v1855 = vunpack.c.h.b16 %v1629
        %v1856 = vunpack.c.l.b16 %v1630
        %v1857 = vunpack.c.h.b16 %v1630
        %v1858 = vunpack.c.l.b16 %v1631
        %v1859 = vunpack.c.h.b16 %v1631
        %v1860 = vunpack.c.l.b16 %v1632
        %v1861 = vunpack.c.h.b16 %v1632
        %v1862 = vunpack.c.l.b16 %v1633
        %v1863 = vunpack.c.h.b16 %v1633
        %v1864 = vunpack.c.l.b16 %v1634
        %v1865 = vunpack.c.h.b16 %v1634
        %v1866 = vunpack.c.l.b16 %v1635
        %v1867 = vunpack.c.h.b16 %v1635
        %v1868 = vunpack.c.l.b16 %v1636
        %v1869 = vunpack.c.h.b16 %v1636
        %v1870 = vunpack.c.l.b16 %v1637
        %v1871 = vunpack.c.h.b16 %v1637
        %v1872 = vpack.c.b16 %v1752, %v1744
        %v1873 = vpack.c.b16 %v1753, %v1745
        %v1874 = vpack.c.b16 %v1754, %v1746
        %v1875 = vpack.c.b16 %v1755, %v1747
        %v1876 = vpack.c.b16 %v1756, %v1748
        %v1877 = vpack.c.b16 %v1757, %v1749
        %v1878 = vpack.c.b16 %v1758, %v1750
        %v1879 = vpack.c.b16 %v1759, %v1751
        %v1880 = vpack.c.b16 %v1768, %v1760
        %v1881 = vpack.c.b16 %v1769, %v1761
        %v1882 = vpack.c.b16 %v1770, %v1762
        %v1883 = vpack.c.b16 %v1771, %v1763
        %v1884 = vpack.c.b16 %v1772, %v1764
        %v1885 = vpack.c.b16 %v1773, %v1765
        %v1886 = vpack.c.b16 %v1774, %v1766
        %v1887 = vpack.c.b16 %v1775, %v1767
        %v1888 = vpack.c.b16 %v1784, %v1776
        %v1889 = vpack.c.b16 %v1785, %v1777
        %v1890 = vpack.c.b16 %v1786, %v1778
        %v1891 = vpack.c.b16 %v1787, %v1779
        %v1892 = vpack.c.b16 %v1788, %v1780
        %v1893 = vpack.c.b16 %v1789, %v1781
        %v1894 = vpack.c.b16 %v1790, %v1782
        %v1895 = vpack.c.b16 %v1791, %v1783
        %v1896 = vpack.c.b16 %v1800, %v1792
        %v1897 = vpack.c.b16 %v1801, %v1793
        %v1898 = vpack.c.b16 %v1802, %v1794
        %v1899 = vpack.c.b16 %v1803, %v1795
        %v1900 = vpack.c.b16 %v1804, %v1796
        %v1901 = vpack.c.b16 %v1805, %v1797
        %v1902 = vpack.c.b16 %v1806, %v1798
        %v1903 = vpack.c.b16 %v1807, %v1799
        %v1904 = vpack.c.b16 %v1816, %v1808
        %v1905 = vpack.c.b16 %v1817, %v1809
        %v1906 = vpack.c.b16 %v1818, %v1810
        %v1907 = vpack.c.b16 %v1819, %v1811
        %v1908 = vpack.c.b16 %v1820, %v1812
        %v1909 = vpack.c.b16 %v1821, %v1813
        %v1910 = vpack.c.b16 %v1822, %v1814
        %v1911 = vpack.c.b16 %v1823, %v1815
        %v1912 = vpack.c.b16 %v1832, %v1824
        %v1913 = vpack.c.b16 %v1833, %v1825
        %v1914 = vpack.c.b16 %v1834, %v1826
        %v1915 = vpack.c.b16 %v1835, %v1827
        %v1916 = vpack.c.b16 %v1836, %v1828
        %v1917 = vpack.c.b16 %v1837, %v1829
        %v1918 = vpack.c.b16 %v1838, %v1830
        %v1919 = vpack.c.b16 %v1839, %v1831
        %v1920 = vpack.c.b16 %v1848, %v1840
        %v1921 = vpack.c.b16 %v1849, %v1841
        %v1922 = vpack.c.b16 %v1850, %v1842
        %v1923 = vpack.c.b16 %v1851, %v1843
        %v1924 = vpack.c.b16 %v1852, %v1844
        %v1925 = vpack.c.b16 %v1853, %v1845
        %v1926 = vpack.c.b16 %v1854, %v1846
        %v1927 = vpack.c.b16 %v1855, %v1847
        %v1928 = vpack.c.b16 %v1864, %v1856
        %v1929 = vpack.c.b16 %v1865, %v1857
        %v1930 = vpack.c.b16 %v1866, %v1858
        %v1931 = vpack.c.b16 %v1867, %v1859
        %v1932 = vpack.c.b16 %v1868, %v1860
        %v1933 = vpack.c.b16 %v1869, %v1861
        %v1934 = vpack.c.b16 %v1870, %v1862
        %v1935 = vpack.c.b16 %v1871, %v1863
        %2000 = vmatprep.subr.bf16.mxu0 %v1873
        %2001 = vmatpush1.bf16.msra.mxu0 %v1872
        %2002 = vmatprep.subr.bf16.mxu0 %v1881
        %2003 = vmatpush1.bf16.msra.mxu0 %v1880
        %2004 = vmatprep.subr.bf16.mxu0 %v1889
        %2005 = vmatpush1.bf16.msra.mxu0 %v1888
        %2006 = vmatprep.subr.bf16.mxu0 %v1897
        %2007 = vmatpush1.bf16.msra.mxu0 %v1896
        %2008 = vmatprep.subr.bf16.mxu0 %v1905
        %2009 = vmatpush1.bf16.msra.mxu0 %v1904
        %2010 = vmatprep.subr.bf16.mxu0 %v1913
        %2011 = vmatpush1.bf16.msra.mxu0 %v1912
        %2012 = vmatprep.subr.bf16.mxu0 %v1921
        %2013 = vmatpush1.bf16.msra.mxu0 %v1920
        %2014 = vmatprep.subr.bf16.mxu0 %v1929
        %2015 = vmatpush1.bf16.msra.mxu0 %v1928
        %2016 = vmatprep.subr.bf16.mxu0 0
        %2017 = vmatpush1.bf16.msra.mxu0 0
        %2018 = vmatprep.subr.bf16.mxu0 0
        %2019 = vmatpush1.bf16.msra.mxu0 0
        %2020 = vmatprep.subr.bf16.mxu0 0
        %2021 = vmatpush1.bf16.msra.mxu0 0
        %2022 = vmatprep.subr.bf16.mxu0 0
        %2023 = vmatpush1.bf16.msra.mxu0 0
        %2024 = vmatprep.subr.bf16.mxu0 0
        %2025 = vmatpush1.bf16.msra.mxu0 0
        %2026 = vmatprep.subr.bf16.mxu0 0
        %2027 = vmatpush1.bf16.msra.mxu0 0
        %2028 = vmatprep.subr.bf16.mxu0 0
        %2029 = vmatpush1.bf16.msra.mxu0 0
        %2030 = vmatprep.subr.bf16.mxu0 0
        %2031 = vmatpush1.bf16.msra.mxu0 0
        %2032 = vmatprep.mubr.bf16.mxu0 0
        %2033 = vmatmul.mubr.bf16.gmra.mrb[0].mxu0 %v1558
        %v2034 = vpop.f32.mrb[0].mxu0
        %v2035 = vadd.f32 %v1643, %v2034
        %v2036 = vpop.f32.mrb[0].mxu0
        %v2037 = vadd.f32 %v1647, %v2036
        %v2038 = vpop.f32.mrb[0].mxu0
        %v2039 = vadd.f32 %v1643, %v2038
        %v2040 = vpop.f32.mrb[0].mxu0
        %v2041 = vadd.f32 %v1647, %v2040
        %2042 = vmatprep.mubr.bf16.mxu0 0
        %2043 = vmatmul.mubr.bf16.gmra.mrb[0].mxu0 %v1559
        %v2044 = vpop.f32.mrb[0].mxu0
        %v2045 = vadd.f32 %v1643, %v2044
        %v2046 = vpop.f32.mrb[0].mxu0
        %v2047 = vadd.f32 %v1647, %v2046
        %v2048 = vpop.f32.mrb[0].mxu0
        %v2049 = vadd.f32 %v1643, %v2048
        %v2050 = vpop.f32.mrb[0].mxu0
        %v2051 = vadd.f32 %v1647, %v2050
        %2052 = vmatprep.mubr.bf16.mxu0 0
        %2053 = vmatmul.mubr.bf16.gmra.mrb[0].mxu0 %v1560
        %v2054 = vpop.f32.mrb[0].mxu0
        %v2055 = vadd.f32 %v1643, %v2054
        %v2056 = vpop.f32.mrb[0].mxu0
        %v2057 = vadd.f32 %v1647, %v2056
        %v2058 = vpop.f32.mrb[0].mxu0
        %v2059 = vadd.f32 %v1643, %v2058
        %v2060 = vpop.f32.mrb[0].mxu0
        %v2061 = vadd.f32 %v1647, %v2060
        %2062 = vmatprep.mubr.bf16.mxu0 0
        %2063 = vmatmul.mubr.bf16.gmra.mrb[0].mxu0 %v1561
        %v2064 = vpop.f32.mrb[0].mxu0
        %v2065 = vadd.f32 %v1643, %v2064
        %v2066 = vpop.f32.mrb[0].mxu0
        %v2067 = vadd.f32 %v1647, %v2066
        %v2068 = vpop.f32.mrb[0].mxu0
        %v2069 = vadd.f32 %v1643, %v2068
        %v2070 = vpop.f32.mrb[0].mxu0
        %v2071 = vadd.f32 %v1647, %v2070
        %2072 = vmatprep.mubr.bf16.mxu0 0
        %2073 = vmatmul.mubr.bf16.gmra.mrb[0].mxu0 %v1562
        %v2074 = vpop.f32.mrb[0].mxu0
        %v2075 = vadd.f32 %v1643, %v2074
        %v2076 = vpop.f32.mrb[0].mxu0
        %v2077 = vadd.f32 %v1647, %v2076
        %v2078 = vpop.f32.mrb[0].mxu0
        %v2079 = vadd.f32 %v1643, %v2078
        %v2080 = vpop.f32.mrb[0].mxu0
        %v2081 = vadd.f32 %v1647, %v2080
        %2082 = vmatprep.mubr.bf16.mxu0 0
        %2083 = vmatmul.mubr.bf16.gmra.mrb[0].mxu0 %v1563
        %v2084 = vpop.f32.mrb[0].mxu0
        %v2085 = vadd.f32 %v1643, %v2084
        %v2086 = vpop.f32.mrb[0].mxu0
        %v2087 = vadd.f32 %v1647, %v2086
        %v2088 = vpop.f32.mrb[0].mxu0
        %v2089 = vadd.f32 %v1643, %v2088
        %v2090 = vpop.f32.mrb[0].mxu0
        %v2091 = vadd.f32 %v1647, %v2090
        %2092 = vmatprep.mubr.bf16.mxu0 0
        %2093 = vmatmul.mubr.bf16.gmra.mrb[0].mxu0 %v1564
        %v2094 = vpop.f32.mrb[0].mxu0
        %v2095 = vadd.f32 %v1643, %v2094
        %v2096 = vpop.f32.mrb[0].mxu0
        %v2097 = vadd.f32 %v1647, %v2096
        %v2098 = vpop.f32.mrb[0].mxu0
        %v2099 = vadd.f32 %v1643, %v2098
        %v2100 = vpop.f32.mrb[0].mxu0
        %v2101 = vadd.f32 %v1647, %v2100
        %2102 = vmatprep.mubr.bf16.mxu0 0
        %2103 = vmatmul.mubr.bf16.gmra.mrb[0].mxu0 %v1565
        %v2104 = vpop.f32.mrb[0].mxu0
        %v2105 = vadd.f32 %v1643, %v2104
        %v2106 = vpop.f32.mrb[0].mxu0
        %v2107 = vadd.f32 %v1647, %v2106
        %v2108 = vpop.f32.mrb[0].mxu0
        %v2109 = vadd.f32 %v1643, %v2108
        %v2110 = vpop.f32.mrb[0].mxu0
        %v2111 = vadd.f32 %v1647, %v2110
        %2112 = vmatprep.mubr.bf16.mxu0 0
        %2113 = vmatmul.mubr.bf16.gmra.mrb[0].mxu0 %v1566
        %v2114 = vpop.f32.mrb[0].mxu0
        %v2115 = vadd.f32 %v1643, %v2114
        %v2116 = vpop.f32.mrb[0].mxu0
        %v2117 = vadd.f32 %v1647, %v2116
        %v2118 = vpop.f32.mrb[0].mxu0
        %v2119 = vadd.f32 %v1643, %v2118
        %v2120 = vpop.f32.mrb[0].mxu0
        %v2121 = vadd.f32 %v1647, %v2120
        %2122 = vmatprep.mubr.bf16.mxu0 0
        %2123 = vmatmul.mubr.bf16.gmra.mrb[0].mxu0 %v1567
        %v2124 = vpop.f32.mrb[0].mxu0
        %v2125 = vadd.f32 %v1643, %v2124
        %v2126 = vpop.f32.mrb[0].mxu0
        %v2127 = vadd.f32 %v1647, %v2126
        %v2128 = vpop.f32.mrb[0].mxu0
        %v2129 = vadd.f32 %v1643, %v2128
        %v2130 = vpop.f32.mrb[0].mxu0
        %v2131 = vadd.f32 %v1647, %v2130
        %2132 = vmatprep.mubr.bf16.mxu0 0
        %2133 = vmatmul.mubr.bf16.gmra.mrb[0].mxu0 %v1568
        %v2134 = vpop.f32.mrb[0].mxu0
        %v2135 = vadd.f32 %v1643, %v2134
        %v2136 = vpop.f32.mrb[0].mxu0
        %v2137 = vadd.f32 %v1647, %v2136
        %v2138 = vpop.f32.mrb[0].mxu0
        %v2139 = vadd.f32 %v1643, %v2138
        %v2140 = vpop.f32.mrb[0].mxu0
        %v2141 = vadd.f32 %v1647, %v2140
        %2142 = vmatprep.mubr.bf16.mxu0 0
        %2143 = vmatmul.mubr.bf16.gmra.mrb[0].mxu0 %v1569
        %v2144 = vpop.f32.mrb[0].mxu0
        %v2145 = vadd.f32 %v1643, %v2144
        %v2146 = vpop.f32.mrb[0].mxu0
        %v2147 = vadd.f32 %v1647, %v2146
        %v2148 = vpop.f32.mrb[0].mxu0
        %v2149 = vadd.f32 %v1643, %v2148
        %v2150 = vpop.f32.mrb[0].mxu0
        %v2151 = vadd.f32 %v1647, %v2150
        %2152 = vmatprep.mubr.bf16.mxu0 0
        %2153 = vmatmul.mubr.bf16.gmra.mrb[0].mxu0 %v1570
        %v2154 = vpop.f32.mrb[0].mxu0
        %v2155 = vadd.f32 %v1643, %v2154
        %v2156 = vpop.f32.mrb[0].mxu0
        %v2157 = vadd.f32 %v1647, %v2156
        %v2158 = vpop.f32.mrb[0].mxu0
        %v2159 = vadd.f32 %v1643, %v2158
        %v2160 = vpop.f32.mrb[0].mxu0
        %v2161 = vadd.f32 %v1647, %v2160
        %2162 = vmatprep.mubr.bf16.mxu0 0
        %2163 = vmatmul.mubr.bf16.gmra.mrb[0].mxu0 %v1571
        %v2164 = vpop.f32.mrb[0].mxu0
        %v2165 = vadd.f32 %v1643, %v2164
        %v2166 = vpop.f32.mrb[0].mxu0
        %v2167 = vadd.f32 %v1647, %v2166
        %v2168 = vpop.f32.mrb[0].mxu0
        %v2169 = vadd.f32 %v1643, %v2168
        %v2170 = vpop.f32.mrb[0].mxu0
        %v2171 = vadd.f32 %v1647, %v2170
        %2172 = vmatprep.mubr.bf16.mxu0 0
        %2173 = vmatmul.mubr.bf16.gmra.mrb[0].mxu0 %v1572
        %v2174 = vpop.f32.mrb[0].mxu0
        %v2175 = vadd.f32 %v1643, %v2174
        %v2176 = vpop.f32.mrb[0].mxu0
        %v2177 = vadd.f32 %v1647, %v2176
        %v2178 = vpop.f32.mrb[0].mxu0
        %v2179 = vadd.f32 %v1643, %v2178
        %v2180 = vpop.f32.mrb[0].mxu0
        %v2181 = vadd.f32 %v1647, %v2180
        %2182 = vmatprep.mubr.bf16.mxu0 0
        %2183 = vmatmul.mubr.bf16.gmra.mrb[0].mxu0 %v1573
        %v2184 = vpop.f32.mrb[0].mxu0
        %v2185 = vadd.f32 %v1643, %v2184
        %v2186 = vpop.f32.mrb[0].mxu0
        %v2187 = vadd.f32 %v1647, %v2186
        %v2188 = vpop.f32.mrb[0].mxu0
        %v2189 = vadd.f32 %v1643, %v2188
        %v2190 = vpop.f32.mrb[0].mxu0
        %v2191 = vadd.f32 %v1647, %v2190
        %2192 = vdwg.mxu0
        %2193 = vmatprep.subr.bf16.mxu0 %v1875
        %2194 = vmatpush1.bf16.msra.mxu0 %v1874
        %2195 = vmatprep.subr.bf16.mxu0 %v1883
        %2196 = vmatpush1.bf16.msra.mxu0 %v1882
        %2197 = vmatprep.subr.bf16.mxu0 %v1891
        %2198 = vmatpush1.bf16.msra.mxu0 %v1890
        %2199 = vmatprep.subr.bf16.mxu0 %v1899
        %2200 = vmatpush1.bf16.msra.mxu0 %v1898
        %2201 = vmatprep.subr.bf16.mxu0 %v1907
        %2202 = vmatpush1.bf16.msra.mxu0 %v1906
        %2203 = vmatprep.subr.bf16.mxu0 %v1915
        %2204 = vmatpush1.bf16.msra.mxu0 %v1914
        %2205 = vmatprep.subr.bf16.mxu0 %v1923
        %2206 = vmatpush1.bf16.msra.mxu0 %v1922
        %2207 = vmatprep.subr.bf16.mxu0 %v1931
        %2208 = vmatpush1.bf16.msra.mxu0 %v1930
        %2209 = vmatprep.subr.bf16.mxu0 0
        %2210 = vmatpush1.bf16.msra.mxu0 0
        %2211 = vmatprep.subr.bf16.mxu0 0
        %2212 = vmatpush1.bf16.msra.mxu0 0
        %2213 = vmatprep.subr.bf16.mxu0 0
        %2214 = vmatpush1.bf16.msra.mxu0 0
        %2215 = vmatprep.subr.bf16.mxu0 0
        %2216 = vmatpush1.bf16.msra.mxu0 0
        %2217 = vmatprep.subr.bf16.mxu0 0
        %2218 = vmatpush1.bf16.msra.mxu0 0
        %2219 = vmatprep.subr.bf16.mxu0 0
        %2220 = vmatpush1.bf16.msra.mxu0 0
        %2221 = vmatprep.subr.bf16.mxu0 0
        %2222 = vmatpush1.bf16.msra.mxu0 0
        %2223 = vmatprep.subr.bf16.mxu0 0
        %2224 = vmatpush1.bf16.msra.mxu0 0
        %2225 = vmatprep.mubr.bf16.mxu0 0
        %2226 = vmatmul.mubr.bf16.gmra.mrb[0].mxu0 %v1558
        %v2227 = vpop.f32.mrb[0].mxu0
        %v2228 = vadd.f32 %v1651, %v2227
        %v2229 = vpop.f32.mrb[0].mxu0
        %v2230 = vadd.f32 %v1655, %v2229
        %v2231 = vpop.f32.mrb[0].mxu0
        %v2232 = vadd.f32 %v1651, %v2231
        %v2233 = vpop.f32.mrb[0].mxu0
        %v2234 = vadd.f32 %v1655, %v2233
        %2235 = vmatprep.mubr.bf16.mxu0 0
        %2236 = vmatmul.mubr.bf16.gmra.mrb[0].mxu0 %v1559
        %v2237 = vpop.f32.mrb[0].mxu0
        %v2238 = vadd.f32 %v1651, %v2237
        %v2239 = vpop.f32.mrb[0].mxu0
        %v2240 = vadd.f32 %v1655, %v2239
        %v2241 = vpop.f32.mrb[0].mxu0
        %v2242 = vadd.f32 %v1651, %v2241
        %v2243 = vpop.f32.mrb[0].mxu0
        %v2244 = vadd.f32 %v1655, %v2243
        %2245 = vmatprep.mubr.bf16.mxu0 0
        %2246 = vmatmul.mubr.bf16.gmra.mrb[0].mxu0 %v1560
        %v2247 = vpop.f32.mrb[0].mxu0
        %v2248 = vadd.f32 %v1651, %v2247
        %v2249 = vpop.f32.mrb[0].mxu0
        %v2250 = vadd.f32 %v1655, %v2249
        %v2251 = vpop.f32.mrb[0].mxu0
        %v2252 = vadd.f32 %v1651, %v2251
        %v2253 = vpop.f32.mrb[0].mxu0
        %v2254 = vadd.f32 %v1655, %v2253
        %2255 = vmatprep.mubr.bf16.mxu0 0
        %2256 = vmatmul.mubr.bf16.gmra.mrb[0].mxu0 %v1561
        %v2257 = vpop.f32.mrb[0].mxu0
        %v2258 = vadd.f32 %v1651, %v2257
        %v2259 = vpop.f32.mrb[0].mxu0
        %v2260 = vadd.f32 %v1655, %v2259
        %v2261 = vpop.f32.mrb[0].mxu0
        %v2262 = vadd.f32 %v1651, %v2261
        %v2263 = vpop.f32.mrb[0].mxu0
        %v2264 = vadd.f32 %v1655, %v2263
        %2265 = vmatprep.mubr.bf16.mxu0 0
        %2266 = vmatmul.mubr.bf16.gmra.mrb[0].mxu0 %v1562
        %v2267 = vpop.f32.mrb[0].mxu0
        %v2268 = vadd.f32 %v1651, %v2267
        %v2269 = vpop.f32.mrb[0].mxu0
        %v2270 = vadd.f32 %v1655, %v2269
        %v2271 = vpop.f32.mrb[0].mxu0
        %v2272 = vadd.f32 %v1651, %v2271
        %v2273 = vpop.f32.mrb[0].mxu0
        %v2274 = vadd.f32 %v1655, %v2273
        %2275 = vmatprep.mubr.bf16.mxu0 0
        %2276 = vmatmul.mubr.bf16.gmra.mrb[0].mxu0 %v1563
        %v2277 = vpop.f32.mrb[0].mxu0
        %v2278 = vadd.f32 %v1651, %v2277
        %v2279 = vpop.f32.mrb[0].mxu0
        %v2280 = vadd.f32 %v1655, %v2279
        %v2281 = vpop.f32.mrb[0].mxu0
        %v2282 = vadd.f32 %v1651, %v2281
        %v2283 = vpop.f32.mrb[0].mxu0
        %v2284 = vadd.f32 %v1655, %v2283
        %2285 = vmatprep.mubr.bf16.mxu0 0
        %2286 = vmatmul.mubr.bf16.gmra.mrb[0].mxu0 %v1564
        %v2287 = vpop.f32.mrb[0].mxu0
        %v2288 = vadd.f32 %v1651, %v2287
        %v2289 = vpop.f32.mrb[0].mxu0
        %v2290 = vadd.f32 %v1655, %v2289
        %v2291 = vpop.f32.mrb[0].mxu0
        %v2292 = vadd.f32 %v1651, %v2291
        %v2293 = vpop.f32.mrb[0].mxu0
        %v2294 = vadd.f32 %v1655, %v2293
        %2295 = vmatprep.mubr.bf16.mxu0 0
        %2296 = vmatmul.mubr.bf16.gmra.mrb[0].mxu0 %v1565
        %v2297 = vpop.f32.mrb[0].mxu0
        %v2298 = vadd.f32 %v1651, %v2297
        %v2299 = vpop.f32.mrb[0].mxu0
        %v2300 = vadd.f32 %v1655, %v2299
        %v2301 = vpop.f32.mrb[0].mxu0
        %v2302 = vadd.f32 %v1651, %v2301
        %v2303 = vpop.f32.mrb[0].mxu0
        %v2304 = vadd.f32 %v1655, %v2303
        %2305 = vmatprep.mubr.bf16.mxu0 0
        %2306 = vmatmul.mubr.bf16.gmra.mrb[0].mxu0 %v1566
        %v2307 = vpop.f32.mrb[0].mxu0
        %v2308 = vadd.f32 %v1651, %v2307
        %v2309 = vpop.f32.mrb[0].mxu0
        %v2310 = vadd.f32 %v1655, %v2309
        %v2311 = vpop.f32.mrb[0].mxu0
        %v2312 = vadd.f32 %v1651, %v2311
        %v2313 = vpop.f32.mrb[0].mxu0
        %v2314 = vadd.f32 %v1655, %v2313
        %2315 = vmatprep.mubr.bf16.mxu0 0
        %2316 = vmatmul.mubr.bf16.gmra.mrb[0].mxu0 %v1567
        %v2317 = vpop.f32.mrb[0].mxu0
        %v2318 = vadd.f32 %v1651, %v2317
        %v2319 = vpop.f32.mrb[0].mxu0
        %v2320 = vadd.f32 %v1655, %v2319
        %v2321 = vpop.f32.mrb[0].mxu0
        %v2322 = vadd.f32 %v1651, %v2321
        %v2323 = vpop.f32.mrb[0].mxu0
        %v2324 = vadd.f32 %v1655, %v2323
        %2325 = vmatprep.mubr.bf16.mxu0 0
        %2326 = vmatmul.mubr.bf16.gmra.mrb[0].mxu0 %v1568
        %v2327 = vpop.f32.mrb[0].mxu0
        %v2328 = vadd.f32 %v1651, %v2327
        %v2329 = vpop.f32.mrb[0].mxu0
        %v2330 = vadd.f32 %v1655, %v2329
        %v2331 = vpop.f32.mrb[0].mxu0
        %v2332 = vadd.f32 %v1651, %v2331
        %v2333 = vpop.f32.mrb[0].mxu0
        %v2334 = vadd.f32 %v1655, %v2333
        %2335 = vmatprep.mubr.bf16.mxu0 0
        %2336 = vmatmul.mubr.bf16.gmra.mrb[0].mxu0 %v1569
        %v2337 = vpop.f32.mrb[0].mxu0
        %v2338 = vadd.f32 %v1651, %v2337
        %v2339 = vpop.f32.mrb[0].mxu0
        %v2340 = vadd.f32 %v1655, %v2339
        %v2341 = vpop.f32.mrb[0].mxu0
        %v2342 = vadd.f32 %v1651, %v2341
        %v2343 = vpop.f32.mrb[0].mxu0
        %v2344 = vadd.f32 %v1655, %v2343
        %2345 = vmatprep.mubr.bf16.mxu0 0
        %2346 = vmatmul.mubr.bf16.gmra.mrb[0].mxu0 %v1570
        %v2347 = vpop.f32.mrb[0].mxu0
        %v2348 = vadd.f32 %v1651, %v2347
        %v2349 = vpop.f32.mrb[0].mxu0
        %v2350 = vadd.f32 %v1655, %v2349
        %v2351 = vpop.f32.mrb[0].mxu0
        %v2352 = vadd.f32 %v1651, %v2351
        %v2353 = vpop.f32.mrb[0].mxu0
        %v2354 = vadd.f32 %v1655, %v2353
        %2355 = vmatprep.mubr.bf16.mxu0 0
        %2356 = vmatmul.mubr.bf16.gmra.mrb[0].mxu0 %v1571
        %v2357 = vpop.f32.mrb[0].mxu0
        %v2358 = vadd.f32 %v1651, %v2357
        %v2359 = vpop.f32.mrb[0].mxu0
        %v2360 = vadd.f32 %v1655, %v2359
        %v2361 = vpop.f32.mrb[0].mxu0
        %v2362 = vadd.f32 %v1651, %v2361
        %v2363 = vpop.f32.mrb[0].mxu0
        %v2364 = vadd.f32 %v1655, %v2363
        %2365 = vmatprep.mubr.bf16.mxu0 0
        %2366 = vmatmul.mubr.bf16.gmra.mrb[0].mxu0 %v1572
        %v2367 = vpop.f32.mrb[0].mxu0
        %v2368 = vadd.f32 %v1651, %v2367
        %v2369 = vpop.f32.mrb[0].mxu0
        %v2370 = vadd.f32 %v1655, %v2369
        %v2371 = vpop.f32.mrb[0].mxu0
        %v2372 = vadd.f32 %v1651, %v2371
        %v2373 = vpop.f32.mrb[0].mxu0
        %v2374 = vadd.f32 %v1655, %v2373
        %2375 = vmatprep.mubr.bf16.mxu0 0
        %2376 = vmatmul.mubr.bf16.gmra.mrb[0].mxu0 %v1573
        %v2377 = vpop.f32.mrb[0].mxu0
        %v2378 = vadd.f32 %v1651, %v2377
        %v2379 = vpop.f32.mrb[0].mxu0
        %v2380 = vadd.f32 %v1655, %v2379
        %v2381 = vpop.f32.mrb[0].mxu0
        %v2382 = vadd.f32 %v1651, %v2381
        %v2383 = vpop.f32.mrb[0].mxu0
        %v2384 = vadd.f32 %v1655, %v2383
        %2385 = vdwg.mxu0
        %2386 = vmatprep.subr.bf16.mxu0 %v1877
        %2387 = vmatpush1.bf16.msra.mxu0 %v1876
        %2388 = vmatprep.subr.bf16.mxu0 %v1885
        %2389 = vmatpush1.bf16.msra.mxu0 %v1884
        %2390 = vmatprep.subr.bf16.mxu0 %v1893
        %2391 = vmatpush1.bf16.msra.mxu0 %v1892
        %2392 = vmatprep.subr.bf16.mxu0 %v1901
        %2393 = vmatpush1.bf16.msra.mxu0 %v1900
        %2394 = vmatprep.subr.bf16.mxu0 %v1909
        %2395 = vmatpush1.bf16.msra.mxu0 %v1908
        %2396 = vmatprep.subr.bf16.mxu0 %v1917
        %2397 = vmatpush1.bf16.msra.mxu0 %v1916
        %2398 = vmatprep.subr.bf16.mxu0 %v1925
        %2399 = vmatpush1.bf16.msra.mxu0 %v1924
        %2400 = vmatprep.subr.bf16.mxu0 %v1933
        %2401 = vmatpush1.bf16.msra.mxu0 %v1932
        %2402 = vmatprep.subr.bf16.mxu0 0
        %2403 = vmatpush1.bf16.msra.mxu0 0
        %2404 = vmatprep.subr.bf16.mxu0 0
        %2405 = vmatpush1.bf16.msra.mxu0 0
        %2406 = vmatprep.subr.bf16.mxu0 0
        %2407 = vmatpush1.bf16.msra.mxu0 0
        %2408 = vmatprep.subr.bf16.mxu0 0
        %2409 = vmatpush1.bf16.msra.mxu0 0
        %2410 = vmatprep.subr.bf16.mxu0 0
        %2411 = vmatpush1.bf16.msra.mxu0 0
        %2412 = vmatprep.subr.bf16.mxu0 0
        %2413 = vmatpush1.bf16.msra.mxu0 0
        %2414 = vmatprep.subr.bf16.mxu0 0
        %2415 = vmatpush1.bf16.msra.mxu0 0
        %2416 = vmatprep.subr.bf16.mxu0 0
        %2417 = vmatpush1.bf16.msra.mxu0 0
        %2418 = vmatprep.mubr.bf16.mxu0 0
        %2419 = vmatmul.mubr.bf16.gmra.mrb[0].mxu0 %v1558
        %v2420 = vpop.f32.mrb[0].mxu0
        %v2421 = vadd.f32 %v1659, %v2420
        %v2422 = vpop.f32.mrb[0].mxu0
        %v2423 = vadd.f32 %v1663, %v2422
        %v2424 = vpop.f32.mrb[0].mxu0
        %v2425 = vadd.f32 %v1659, %v2424
        %v2426 = vpop.f32.mrb[0].mxu0
        %v2427 = vadd.f32 %v1663, %v2426
        %2428 = vmatprep.mubr.bf16.mxu0 0
        %2429 = vmatmul.mubr.bf16.gmra.mrb[0].mxu0 %v1559
        %v2430 = vpop.f32.mrb[0].mxu0
        %v2431 = vadd.f32 %v1659, %v2430
        %v2432 = vpop.f32.mrb[0].mxu0
        %v2433 = vadd.f32 %v1663, %v2432
        %v2434 = vpop.f32.mrb[0].mxu0
        %v2435 = vadd.f32 %v1659, %v2434
        %v2436 = vpop.f32.mrb[0].mxu0
        %v2437 = vadd.f32 %v1663, %v2436
        %2438 = vmatprep.mubr.bf16.mxu0 0
        %2439 = vmatmul.mubr.bf16.gmra.mrb[0].mxu0 %v1560
        %v2440 = vpop.f32.mrb[0].mxu0
        %v2441 = vadd.f32 %v1659, %v2440
        %v2442 = vpop.f32.mrb[0].mxu0
        %v2443 = vadd.f32 %v1663, %v2442
        %v2444 = vpop.f32.mrb[0].mxu0
        %v2445 = vadd.f32 %v1659, %v2444
        %v2446 = vpop.f32.mrb[0].mxu0
        %v2447 = vadd.f32 %v1663, %v2446
        %2448 = vmatprep.mubr.bf16.mxu0 0
        %2449 = vmatmul.mubr.bf16.gmra.mrb[0].mxu0 %v1561
        %v2450 = vpop.f32.mrb[0].mxu0
        %v2451 = vadd.f32 %v1659, %v2450
        %v2452 = vpop.f32.mrb[0].mxu0
        %v2453 = vadd.f32 %v1663, %v2452
        %v2454 = vpop.f32.mrb[0].mxu0
        %v2455 = vadd.f32 %v1659, %v2454
        %v2456 = vpop.f32.mrb[0].mxu0
        %v2457 = vadd.f32 %v1663, %v2456
        %2458 = vmatprep.mubr.bf16.mxu0 0
        %2459 = vmatmul.mubr.bf16.gmra.mrb[0].mxu0 %v1562
        %v2460 = vpop.f32.mrb[0].mxu0
        %v2461 = vadd.f32 %v1659, %v2460
        %v2462 = vpop.f32.mrb[0].mxu0
        %v2463 = vadd.f32 %v1663, %v2462
        %v2464 = vpop.f32.mrb[0].mxu0
        %v2465 = vadd.f32 %v1659, %v2464
        %v2466 = vpop.f32.mrb[0].mxu0
        %v2467 = vadd.f32 %v1663, %v2466
        %2468 = vmatprep.mubr.bf16.mxu0 0
        %2469 = vmatmul.mubr.bf16.gmra.mrb[0].mxu0 %v1563
        %v2470 = vpop.f32.mrb[0].mxu0
        %v2471 = vadd.f32 %v1659, %v2470
        %v2472 = vpop.f32.mrb[0].mxu0
        %v2473 = vadd.f32 %v1663, %v2472
        %v2474 = vpop.f32.mrb[0].mxu0
        %v2475 = vadd.f32 %v1659, %v2474
        %v2476 = vpop.f32.mrb[0].mxu0
        %v2477 = vadd.f32 %v1663, %v2476
        %2478 = vmatprep.mubr.bf16.mxu0 0
        %2479 = vmatmul.mubr.bf16.gmra.mrb[0].mxu0 %v1564
        %v2480 = vpop.f32.mrb[0].mxu0
        %v2481 = vadd.f32 %v1659, %v2480
        %v2482 = vpop.f32.mrb[0].mxu0
        %v2483 = vadd.f32 %v1663, %v2482
        %v2484 = vpop.f32.mrb[0].mxu0
        %v2485 = vadd.f32 %v1659, %v2484
        %v2486 = vpop.f32.mrb[0].mxu0
        %v2487 = vadd.f32 %v1663, %v2486
        %2488 = vmatprep.mubr.bf16.mxu0 0
        %2489 = vmatmul.mubr.bf16.gmra.mrb[0].mxu0 %v1565
        %v2490 = vpop.f32.mrb[0].mxu0
        %v2491 = vadd.f32 %v1659, %v2490
        %v2492 = vpop.f32.mrb[0].mxu0
        %v2493 = vadd.f32 %v1663, %v2492
        %v2494 = vpop.f32.mrb[0].mxu0
        %v2495 = vadd.f32 %v1659, %v2494
        %v2496 = vpop.f32.mrb[0].mxu0
        %v2497 = vadd.f32 %v1663, %v2496
        %2498 = vmatprep.mubr.bf16.mxu0 0
        %2499 = vmatmul.mubr.bf16.gmra.mrb[0].mxu0 %v1566
        %v2500 = vpop.f32.mrb[0].mxu0
        %v2501 = vadd.f32 %v1659, %v2500
        %v2502 = vpop.f32.mrb[0].mxu0
        %v2503 = vadd.f32 %v1663, %v2502
        %v2504 = vpop.f32.mrb[0].mxu0
        %v2505 = vadd.f32 %v1659, %v2504
        %v2506 = vpop.f32.mrb[0].mxu0
        %v2507 = vadd.f32 %v1663, %v2506
        %2508 = vmatprep.mubr.bf16.mxu0 0
        %2509 = vmatmul.mubr.bf16.gmra.mrb[0].mxu0 %v1567
        %v2510 = vpop.f32.mrb[0].mxu0
        %v2511 = vadd.f32 %v1659, %v2510
        %v2512 = vpop.f32.mrb[0].mxu0
        %v2513 = vadd.f32 %v1663, %v2512
        %v2514 = vpop.f32.mrb[0].mxu0
        %v2515 = vadd.f32 %v1659, %v2514
        %v2516 = vpop.f32.mrb[0].mxu0
        %v2517 = vadd.f32 %v1663, %v2516
        %2518 = vmatprep.mubr.bf16.mxu0 0
        %2519 = vmatmul.mubr.bf16.gmra.mrb[0].mxu0 %v1568
        %v2520 = vpop.f32.mrb[0].mxu0
        %v2521 = vadd.f32 %v1659, %v2520
        %v2522 = vpop.f32.mrb[0].mxu0
        %v2523 = vadd.f32 %v1663, %v2522
        %v2524 = vpop.f32.mrb[0].mxu0
        %v2525 = vadd.f32 %v1659, %v2524
        %v2526 = vpop.f32.mrb[0].mxu0
        %v2527 = vadd.f32 %v1663, %v2526
        %2528 = vmatprep.mubr.bf16.mxu0 0
        %2529 = vmatmul.mubr.bf16.gmra.mrb[0].mxu0 %v1569
        %v2530 = vpop.f32.mrb[0].mxu0
        %v2531 = vadd.f32 %v1659, %v2530
        %v2532 = vpop.f32.mrb[0].mxu0
        %v2533 = vadd.f32 %v1663, %v2532
        %v2534 = vpop.f32.mrb[0].mxu0
        %v2535 = vadd.f32 %v1659, %v2534
        %v2536 = vpop.f32.mrb[0].mxu0
        %v2537 = vadd.f32 %v1663, %v2536
        %2538 = vmatprep.mubr.bf16.mxu0 0
        %2539 = vmatmul.mubr.bf16.gmra.mrb[0].mxu0 %v1570
        %v2540 = vpop.f32.mrb[0].mxu0
        %v2541 = vadd.f32 %v1659, %v2540
        %v2542 = vpop.f32.mrb[0].mxu0
        %v2543 = vadd.f32 %v1663, %v2542
        %v2544 = vpop.f32.mrb[0].mxu0
        %v2545 = vadd.f32 %v1659, %v2544
        %v2546 = vpop.f32.mrb[0].mxu0
        %v2547 = vadd.f32 %v1663, %v2546
        %2548 = vmatprep.mubr.bf16.mxu0 0
        %2549 = vmatmul.mubr.bf16.gmra.mrb[0].mxu0 %v1571
        %v2550 = vpop.f32.mrb[0].mxu0
        %v2551 = vadd.f32 %v1659, %v2550
        %v2552 = vpop.f32.mrb[0].mxu0
        %v2553 = vadd.f32 %v1663, %v2552
        %v2554 = vpop.f32.mrb[0].mxu0
        %v2555 = vadd.f32 %v1659, %v2554
        %v2556 = vpop.f32.mrb[0].mxu0
        %v2557 = vadd.f32 %v1663, %v2556
        %2558 = vmatprep.mubr.bf16.mxu0 0
        %2559 = vmatmul.mubr.bf16.gmra.mrb[0].mxu0 %v1572
        %v2560 = vpop.f32.mrb[0].mxu0
        %v2561 = vadd.f32 %v1659, %v2560
        %v2562 = vpop.f32.mrb[0].mxu0
        %v2563 = vadd.f32 %v1663, %v2562
        %v2564 = vpop.f32.mrb[0].mxu0
        %v2565 = vadd.f32 %v1659, %v2564
        %v2566 = vpop.f32.mrb[0].mxu0
        %v2567 = vadd.f32 %v1663, %v2566
        %2568 = vmatprep.mubr.bf16.mxu0 0
        %2569 = vmatmul.mubr.bf16.gmra.mrb[0].mxu0 %v1573
        %v2570 = vpop.f32.mrb[0].mxu0
        %v2571 = vadd.f32 %v1659, %v2570
        %v2572 = vpop.f32.mrb[0].mxu0
        %v2573 = vadd.f32 %v1663, %v2572
        %v2574 = vpop.f32.mrb[0].mxu0
        %v2575 = vadd.f32 %v1659, %v2574
        %v2576 = vpop.f32.mrb[0].mxu0
        %v2577 = vadd.f32 %v1663, %v2576
        %2578 = vdwg.mxu0
        %2579 = vmatprep.subr.bf16.mxu0 %v1879
        %2580 = vmatpush1.bf16.msra.mxu0 %v1878
        %2581 = vmatprep.subr.bf16.mxu0 %v1887
        %2582 = vmatpush1.bf16.msra.mxu0 %v1886
        %2583 = vmatprep.subr.bf16.mxu0 %v1895
        %2584 = vmatpush1.bf16.msra.mxu0 %v1894
        %2585 = vmatprep.subr.bf16.mxu0 %v1903
        %2586 = vmatpush1.bf16.msra.mxu0 %v1902
        %2587 = vmatprep.subr.bf16.mxu0 %v1911
        %2588 = vmatpush1.bf16.msra.mxu0 %v1910
        %2589 = vmatprep.subr.bf16.mxu0 %v1919
        %2590 = vmatpush1.bf16.msra.mxu0 %v1918
        %2591 = vmatprep.subr.bf16.mxu0 %v1927
        %2592 = vmatpush1.bf16.msra.mxu0 %v1926
        %2593 = vmatprep.subr.bf16.mxu0 %v1935
        %2594 = vmatpush1.bf16.msra.mxu0 %v1934
        %2595 = vmatprep.subr.bf16.mxu0 0
        %2596 = vmatpush1.bf16.msra.mxu0 0
        %2597 = vmatprep.subr.bf16.mxu0 0
        %2598 = vmatpush1.bf16.msra.mxu0 0
        %2599 = vmatprep.subr.bf16.mxu0 0
        %2600 = vmatpush1.bf16.msra.mxu0 0
        %2601 = vmatprep.subr.bf16.mxu0 0
        %2602 = vmatpush1.bf16.msra.mxu0 0
        %2603 = vmatprep.subr.bf16.mxu0 0
        %2604 = vmatpush1.bf16.msra.mxu0 0
        %2605 = vmatprep.subr.bf16.mxu0 0
        %2606 = vmatpush1.bf16.msra.mxu0 0
        %2607 = vmatprep.subr.bf16.mxu0 0
        %2608 = vmatpush1.bf16.msra.mxu0 0
        %2609 = vmatprep.subr.bf16.mxu0 0
        %2610 = vmatpush1.bf16.msra.mxu0 0
        %2611 = vmatprep.mubr.bf16.mxu0 0
        %2612 = vmatmul.mubr.bf16.gmra.mrb[0].mxu0 %v1558
        %v2613 = vpop.f32.mrb[0].mxu0
        %v2614 = vadd.f32 %v1667, %v2613
        %v2615 = vpop.f32.mrb[0].mxu0
        %v2616 = vadd.f32 %v1671, %v2615
        %v2617 = vpop.f32.mrb[0].mxu0
        %v2618 = vadd.f32 %v1667, %v2617
        %v2619 = vpop.f32.mrb[0].mxu0
        %v2620 = vadd.f32 %v1671, %v2619
        %2621 = vmatprep.mubr.bf16.mxu0 0
        %2622 = vmatmul.mubr.bf16.gmra.mrb[0].mxu0 %v1559
        %v2623 = vpop.f32.mrb[0].mxu0
        %v2624 = vadd.f32 %v1667, %v2623
        %v2625 = vpop.f32.mrb[0].mxu0
        %v2626 = vadd.f32 %v1671, %v2625
        %v2627 = vpop.f32.mrb[0].mxu0
        %v2628 = vadd.f32 %v1667, %v2627
        %v2629 = vpop.f32.mrb[0].mxu0
        %v2630 = vadd.f32 %v1671, %v2629
        %2631 = vmatprep.mubr.bf16.mxu0 0
        %2632 = vmatmul.mubr.bf16.gmra.mrb[0].mxu0 %v1560
        %v2633 = vpop.f32.mrb[0].mxu0
        %v2634 = vadd.f32 %v1667, %v2633
        %v2635 = vpop.f32.mrb[0].mxu0
        %v2636 = vadd.f32 %v1671, %v2635
        %v2637 = vpop.f32.mrb[0].mxu0
        %v2638 = vadd.f32 %v1667, %v2637
        %v2639 = vpop.f32.mrb[0].mxu0
        %v2640 = vadd.f32 %v1671, %v2639
        %2641 = vmatprep.mubr.bf16.mxu0 0
        %2642 = vmatmul.mubr.bf16.gmra.mrb[0].mxu0 %v1561
        %v2643 = vpop.f32.mrb[0].mxu0
        %v2644 = vadd.f32 %v1667, %v2643
        %v2645 = vpop.f32.mrb[0].mxu0
        %v2646 = vadd.f32 %v1671, %v2645
        %v2647 = vpop.f32.mrb[0].mxu0
        %v2648 = vadd.f32 %v1667, %v2647
        %v2649 = vpop.f32.mrb[0].mxu0
        %v2650 = vadd.f32 %v1671, %v2649
        %2651 = vmatprep.mubr.bf16.mxu0 0
        %2652 = vmatmul.mubr.bf16.gmra.mrb[0].mxu0 %v1562
        %v2653 = vpop.f32.mrb[0].mxu0
        %v2654 = vadd.f32 %v1667, %v2653
        %v2655 = vpop.f32.mrb[0].mxu0
        %v2656 = vadd.f32 %v1671, %v2655
        %v2657 = vpop.f32.mrb[0].mxu0
        %v2658 = vadd.f32 %v1667, %v2657
        %v2659 = vpop.f32.mrb[0].mxu0
        %v2660 = vadd.f32 %v1671, %v2659
        %2661 = vmatprep.mubr.bf16.mxu0 0
        %2662 = vmatmul.mubr.bf16.gmra.mrb[0].mxu0 %v1563
        %v2663 = vpop.f32.mrb[0].mxu0
        %v2664 = vadd.f32 %v1667, %v2663
        %v2665 = vpop.f32.mrb[0].mxu0
        %v2666 = vadd.f32 %v1671, %v2665
        %v2667 = vpop.f32.mrb[0].mxu0
        %v2668 = vadd.f32 %v1667, %v2667
        %v2669 = vpop.f32.mrb[0].mxu0
        %v2670 = vadd.f32 %v1671, %v2669
        %2671 = vmatprep.mubr.bf16.mxu0 0
        %2672 = vmatmul.mubr.bf16.gmra.mrb[0].mxu0 %v1564
        %v2673 = vpop.f32.mrb[0].mxu0
        %v2674 = vadd.f32 %v1667, %v2673
        %v2675 = vpop.f32.mrb[0].mxu0
        %v2676 = vadd.f32 %v1671, %v2675
        %v2677 = vpop.f32.mrb[0].mxu0
        %v2678 = vadd.f32 %v1667, %v2677
        %v2679 = vpop.f32.mrb[0].mxu0
        %v2680 = vadd.f32 %v1671, %v2679
        %2681 = vmatprep.mubr.bf16.mxu0 0
        %2682 = vmatmul.mubr.bf16.gmra.mrb[0].mxu0 %v1565
        %v2683 = vpop.f32.mrb[0].mxu0
        %v2684 = vadd.f32 %v1667, %v2683
        %v2685 = vpop.f32.mrb[0].mxu0
        %v2686 = vadd.f32 %v1671, %v2685
        %v2687 = vpop.f32.mrb[0].mxu0
        %v2688 = vadd.f32 %v1667, %v2687
        %v2689 = vpop.f32.mrb[0].mxu0
        %v2690 = vadd.f32 %v1671, %v2689
        %2691 = vmatprep.mubr.bf16.mxu0 0
        %2692 = vmatmul.mubr.bf16.gmra.mrb[0].mxu0 %v1566
        %v2693 = vpop.f32.mrb[0].mxu0
        %v2694 = vadd.f32 %v1667, %v2693
        %v2695 = vpop.f32.mrb[0].mxu0
        %v2696 = vadd.f32 %v1671, %v2695
        %v2697 = vpop.f32.mrb[0].mxu0
        %v2698 = vadd.f32 %v1667, %v2697
        %v2699 = vpop.f32.mrb[0].mxu0
        %v2700 = vadd.f32 %v1671, %v2699
        %2701 = vmatprep.mubr.bf16.mxu0 0
        %2702 = vmatmul.mubr.bf16.gmra.mrb[0].mxu0 %v1567
        %v2703 = vpop.f32.mrb[0].mxu0
        %v2704 = vadd.f32 %v1667, %v2703
        %v2705 = vpop.f32.mrb[0].mxu0
        %v2706 = vadd.f32 %v1671, %v2705
        %v2707 = vpop.f32.mrb[0].mxu0
        %v2708 = vadd.f32 %v1667, %v2707
        %v2709 = vpop.f32.mrb[0].mxu0
        %v2710 = vadd.f32 %v1671, %v2709
        %2711 = vmatprep.mubr.bf16.mxu0 0
        %2712 = vmatmul.mubr.bf16.gmra.mrb[0].mxu0 %v1568
        %v2713 = vpop.f32.mrb[0].mxu0
        %v2714 = vadd.f32 %v1667, %v2713
        %v2715 = vpop.f32.mrb[0].mxu0
        %v2716 = vadd.f32 %v1671, %v2715
        %v2717 = vpop.f32.mrb[0].mxu0
        %v2718 = vadd.f32 %v1667, %v2717
        %v2719 = vpop.f32.mrb[0].mxu0
        %v2720 = vadd.f32 %v1671, %v2719
        %2721 = vmatprep.mubr.bf16.mxu0 0
        %2722 = vmatmul.mubr.bf16.gmra.mrb[0].mxu0 %v1569
        %v2723 = vpop.f32.mrb[0].mxu0
        %v2724 = vadd.f32 %v1667, %v2723
        %v2725 = vpop.f32.mrb[0].mxu0
        %v2726 = vadd.f32 %v1671, %v2725
        %v2727 = vpop.f32.mrb[0].mxu0
        %v2728 = vadd.f32 %v1667, %v2727
        %v2729 = vpop.f32.mrb[0].mxu0
        %v2730 = vadd.f32 %v1671, %v2729
        %2731 = vmatprep.mubr.bf16.mxu0 0
        %2732 = vmatmul.mubr.bf16.gmra.mrb[0].mxu0 %v1570
        %v2733 = vpop.f32.mrb[0].mxu0
        %v2734 = vadd.f32 %v1667, %v2733
        %v2735 = vpop.f32.mrb[0].mxu0
        %v2736 = vadd.f32 %v1671, %v2735
        %v2737 = vpop.f32.mrb[0].mxu0
        %v2738 = vadd.f32 %v1667, %v2737
        %v2739 = vpop.f32.mrb[0].mxu0
        %v2740 = vadd.f32 %v1671, %v2739
        %2741 = vmatprep.mubr.bf16.mxu0 0
        %2742 = vmatmul.mubr.bf16.gmra.mrb[0].mxu0 %v1571
        %v2743 = vpop.f32.mrb[0].mxu0
        %v2744 = vadd.f32 %v1667, %v2743
        %v2745 = vpop.f32.mrb[0].mxu0
        %v2746 = vadd.f32 %v1671, %v2745
        %v2747 = vpop.f32.mrb[0].mxu0
        %v2748 = vadd.f32 %v1667, %v2747
        %v2749 = vpop.f32.mrb[0].mxu0
        %v2750 = vadd.f32 %v1671, %v2749
        %2751 = vmatprep.mubr.bf16.mxu0 0
        %2752 = vmatmul.mubr.bf16.gmra.mrb[0].mxu0 %v1572
        %v2753 = vpop.f32.mrb[0].mxu0
        %v2754 = vadd.f32 %v1667, %v2753
        %v2755 = vpop.f32.mrb[0].mxu0
        %v2756 = vadd.f32 %v1671, %v2755
        %v2757 = vpop.f32.mrb[0].mxu0
        %v2758 = vadd.f32 %v1667, %v2757
        %v2759 = vpop.f32.mrb[0].mxu0
        %v2760 = vadd.f32 %v1671, %v2759
        %2761 = vmatprep.mubr.bf16.mxu0 0
        %2762 = vmatmul.mubr.bf16.gmra.mrb[0].mxu0 %v1573
        %v2763 = vpop.f32.mrb[0].mxu0
        %v2764 = vadd.f32 %v1667, %v2763
        %v2765 = vpop.f32.mrb[0].mxu0
        %v2766 = vadd.f32 %v1671, %v2765
        %v2767 = vpop.f32.mrb[0].mxu0
        %v2768 = vadd.f32 %v1667, %v2767
        %v2769 = vpop.f32.mrb[0].mxu0
        %v2770 = vadd.f32 %v1671, %v2769
        %2771 = vdwg.mxu0
        %v2772 = vmax.f32 %v2035, 0.0
        %v2773 = vmax.f32 %v2037, 0.0
        %v2774 = vmax.f32 %v2228, 0.0
        %v2775 = vmax.f32 %v2230, 0.0
        %v2776 = vmax.f32 %v2421, 0.0
        %v2777 = vmax.f32 %v2423, 0.0
        %v2778 = vmax.f32 %v2614, 0.0
        %v2779 = vmax.f32 %v2616, 0.0
        %v2780 = vmax.f32 %v2039, 0.0
        %v2781 = vmax.f32 %v2041, 0.0
        %v2782 = vmax.f32 %v2232, 0.0
        %v2783 = vmax.f32 %v2234, 0.0
        %v2784 = vmax.f32 %v2425, 0.0
        %v2785 = vmax.f32 %v2427, 0.0
        %v2786 = vmax.f32 %v2618, 0.0
        %v2787 = vmax.f32 %v2620, 0.0
        %v2788 = vmax.f32 %v2045, 0.0
        %v2789 = vmax.f32 %v2047, 0.0
        %v2790 = vmax.f32 %v2238, 0.0
        %v2791 = vmax.f32 %v2240, 0.0
        %v2792 = vmax.f32 %v2431, 0.0
        %v2793 = vmax.f32 %v2433, 0.0
        %v2794 = vmax.f32 %v2624, 0.0
        %v2795 = vmax.f32 %v2626, 0.0
        %v2796 = vmax.f32 %v2049, 0.0
        %v2797 = vmax.f32 %v2051, 0.0
        %v2798 = vmax.f32 %v2242, 0.0
        %v2799 = vmax.f32 %v2244, 0.0
        %v2800 = vmax.f32 %v2435, 0.0
        %v2801 = vmax.f32 %v2437, 0.0
        %v2802 = vmax.f32 %v2628, 0.0
        %v2803 = vmax.f32 %v2630, 0.0
        %v2804 = vmax.f32 %v2055, 0.0
        %v2805 = vmax.f32 %v2057, 0.0
        %v2806 = vmax.f32 %v2248, 0.0
        %v2807 = vmax.f32 %v2250, 0.0
        %v2808 = vmax.f32 %v2441, 0.0
        %v2809 = vmax.f32 %v2443, 0.0
        %v2810 = vmax.f32 %v2634, 0.0
        %v2811 = vmax.f32 %v2636, 0.0
        %v2812 = vmax.f32 %v2059, 0.0
        %v2813 = vmax.f32 %v2061, 0.0
        %v2814 = vmax.f32 %v2252, 0.0
        %v2815 = vmax.f32 %v2254, 0.0
        %v2816 = vmax.f32 %v2445, 0.0
        %v2817 = vmax.f32 %v2447, 0.0
        %v2818 = vmax.f32 %v2638, 0.0
        %v2819 = vmax.f32 %v2640, 0.0
        %v2820 = vmax.f32 %v2065, 0.0
        %v2821 = vmax.f32 %v2067, 0.0
        %v2822 = vmax.f32 %v2258, 0.0
        %v2823 = vmax.f32 %v2260, 0.0
        %v2824 = vmax.f32 %v2451, 0.0
        %v2825 = vmax.f32 %v2453, 0.0
        %v2826 = vmax.f32 %v2644, 0.0
        %v2827 = vmax.f32 %v2646, 0.0
        %v2828 = vmax.f32 %v2069, 0.0
        %v2829 = vmax.f32 %v2071, 0.0
        %v2830 = vmax.f32 %v2262, 0.0
        %v2831 = vmax.f32 %v2264, 0.0
        %v2832 = vmax.f32 %v2455, 0.0
        %v2833 = vmax.f32 %v2457, 0.0
        %v2834 = vmax.f32 %v2648, 0.0
        %v2835 = vmax.f32 %v2650, 0.0
        %v2836 = vmax.f32 %v2075, 0.0
        %v2837 = vmax.f32 %v2077, 0.0
        %v2838 = vmax.f32 %v2268, 0.0
        %v2839 = vmax.f32 %v2270, 0.0
        %v2840 = vmax.f32 %v2461, 0.0
        %v2841 = vmax.f32 %v2463, 0.0
        %v2842 = vmax.f32 %v2654, 0.0
        %v2843 = vmax.f32 %v2656, 0.0
        %v2844 = vmax.f32 %v2079, 0.0
        %v2845 = vmax.f32 %v2081, 0.0
        %v2846 = vmax.f32 %v2272, 0.0
        %v2847 = vmax.f32 %v2274, 0.0
        %v2848 = vmax.f32 %v2465, 0.0
        %v2849 = vmax.f32 %v2467, 0.0
        %v2850 = vmax.f32 %v2658, 0.0
        %v2851 = vmax.f32 %v2660, 0.0
        %v2852 = vmax.f32 %v2085, 0.0
        %v2853 = vmax.f32 %v2087, 0.0
        %v2854 = vmax.f32 %v2278, 0.0
        %v2855 = vmax.f32 %v2280, 0.0
        %v2856 = vmax.f32 %v2471, 0.0
        %v2857 = vmax.f32 %v2473, 0.0
        %v2858 = vmax.f32 %v2664, 0.0
        %v2859 = vmax.f32 %v2666, 0.0
        %v2860 = vmax.f32 %v2089, 0.0
        %v2861 = vmax.f32 %v2091, 0.0
        %v2862 = vmax.f32 %v2282, 0.0
        %v2863 = vmax.f32 %v2284, 0.0
        %v2864 = vmax.f32 %v2475, 0.0
        %v2865 = vmax.f32 %v2477, 0.0
        %v2866 = vmax.f32 %v2668, 0.0
        %v2867 = vmax.f32 %v2670, 0.0
        %v2868 = vmax.f32 %v2095, 0.0
        %v2869 = vmax.f32 %v2097, 0.0
        %v2870 = vmax.f32 %v2288, 0.0
        %v2871 = vmax.f32 %v2290, 0.0
        %v2872 = vmax.f32 %v2481, 0.0
        %v2873 = vmax.f32 %v2483, 0.0
        %v2874 = vmax.f32 %v2674, 0.0
        %v2875 = vmax.f32 %v2676, 0.0
        %v2876 = vmax.f32 %v2099, 0.0
        %v2877 = vmax.f32 %v2101, 0.0
        %v2878 = vmax.f32 %v2292, 0.0
        %v2879 = vmax.f32 %v2294, 0.0
        %v2880 = vmax.f32 %v2485, 0.0
        %v2881 = vmax.f32 %v2487, 0.0
        %v2882 = vmax.f32 %v2678, 0.0
        %v2883 = vmax.f32 %v2680, 0.0
        %v2884 = vmax.f32 %v2105, 0.0
        %v2885 = vmax.f32 %v2107, 0.0
        %v2886 = vmax.f32 %v2298, 0.0
        %v2887 = vmax.f32 %v2300, 0.0
        %v2888 = vmax.f32 %v2491, 0.0
        %v2889 = vmax.f32 %v2493, 0.0
        %v2890 = vmax.f32 %v2684, 0.0
        %v2891 = vmax.f32 %v2686, 0.0
        %v2892 = vmax.f32 %v2109, 0.0
        %v2893 = vmax.f32 %v2111, 0.0
        %v2894 = vmax.f32 %v2302, 0.0
        %v2895 = vmax.f32 %v2304, 0.0
        %v2896 = vmax.f32 %v2495, 0.0
        %v2897 = vmax.f32 %v2497, 0.0
        %v2898 = vmax.f32 %v2688, 0.0
        %v2899 = vmax.f32 %v2690, 0.0
        %v2900 = vmax.f32 %v2115, 0.0
        %v2901 = vmax.f32 %v2117, 0.0
        %v2902 = vmax.f32 %v2308, 0.0
        %v2903 = vmax.f32 %v2310, 0.0
        %v2904 = vmax.f32 %v2501, 0.0
        %v2905 = vmax.f32 %v2503, 0.0
        %v2906 = vmax.f32 %v2694, 0.0
        %v2907 = vmax.f32 %v2696, 0.0
        %v2908 = vmax.f32 %v2119, 0.0
        %v2909 = vmax.f32 %v2121, 0.0
        %v2910 = vmax.f32 %v2312, 0.0
        %v2911 = vmax.f32 %v2314, 0.0
        %v2912 = vmax.f32 %v2505, 0.0
        %v2913 = vmax.f32 %v2507, 0.0
        %v2914 = vmax.f32 %v2698, 0.0
        %v2915 = vmax.f32 %v2700, 0.0
        %v2916 = vmax.f32 %v2125, 0.0
        %v2917 = vmax.f32 %v2127, 0.0
        %v2918 = vmax.f32 %v2318, 0.0
        %v2919 = vmax.f32 %v2320, 0.0
        %v2920 = vmax.f32 %v2511, 0.0
        %v2921 = vmax.f32 %v2513, 0.0
        %v2922 = vmax.f32 %v2704, 0.0
        %v2923 = vmax.f32 %v2706, 0.0
        %v2924 = vmax.f32 %v2129, 0.0
        %v2925 = vmax.f32 %v2131, 0.0
        %v2926 = vmax.f32 %v2322, 0.0
        %v2927 = vmax.f32 %v2324, 0.0
        %v2928 = vmax.f32 %v2515, 0.0
        %v2929 = vmax.f32 %v2517, 0.0
        %v2930 = vmax.f32 %v2708, 0.0
        %v2931 = vmax.f32 %v2710, 0.0
        %v2932 = vmax.f32 %v2135, 0.0
        %v2933 = vmax.f32 %v2137, 0.0
        %v2934 = vmax.f32 %v2328, 0.0
        %v2935 = vmax.f32 %v2330, 0.0
        %v2936 = vmax.f32 %v2521, 0.0
        %v2937 = vmax.f32 %v2523, 0.0
        %v2938 = vmax.f32 %v2714, 0.0
        %v2939 = vmax.f32 %v2716, 0.0
        %v2940 = vmax.f32 %v2139, 0.0
        %v2941 = vmax.f32 %v2141, 0.0
        %v2942 = vmax.f32 %v2332, 0.0
        %v2943 = vmax.f32 %v2334, 0.0
        %v2944 = vmax.f32 %v2525, 0.0
        %v2945 = vmax.f32 %v2527, 0.0
        %v2946 = vmax.f32 %v2718, 0.0
        %v2947 = vmax.f32 %v2720, 0.0
        %v2948 = vmax.f32 %v2145, 0.0
        %v2949 = vmax.f32 %v2147, 0.0
        %v2950 = vmax.f32 %v2338, 0.0
        %v2951 = vmax.f32 %v2340, 0.0
        %v2952 = vmax.f32 %v2531, 0.0
        %v2953 = vmax.f32 %v2533, 0.0
        %v2954 = vmax.f32 %v2724, 0.0
        %v2955 = vmax.f32 %v2726, 0.0
        %v2956 = vmax.f32 %v2149, 0.0
        %v2957 = vmax.f32 %v2151, 0.0
        %v2958 = vmax.f32 %v2342, 0.0
        %v2959 = vmax.f32 %v2344, 0.0
        %v2960 = vmax.f32 %v2535, 0.0
        %v2961 = vmax.f32 %v2537, 0.0
        %v2962 = vmax.f32 %v2728, 0.0
        %v2963 = vmax.f32 %v2730, 0.0
        %v2964 = vmax.f32 %v2155, 0.0
        %v2965 = vmax.f32 %v2157, 0.0
        %v2966 = vmax.f32 %v2348, 0.0
        %v2967 = vmax.f32 %v2350, 0.0
        %v2968 = vmax.f32 %v2541, 0.0
        %v2969 = vmax.f32 %v2543, 0.0
        %v2970 = vmax.f32 %v2734, 0.0
        %v2971 = vmax.f32 %v2736, 0.0
        %v2972 = vmax.f32 %v2159, 0.0
        %v2973 = vmax.f32 %v2161, 0.0
        %v2974 = vmax.f32 %v2352, 0.0
        %v2975 = vmax.f32 %v2354, 0.0
        %v2976 = vmax.f32 %v2545, 0.0
        %v2977 = vmax.f32 %v2547, 0.0
        %v2978 = vmax.f32 %v2738, 0.0
        %v2979 = vmax.f32 %v2740, 0.0
        %v2980 = vmax.f32 %v2165, 0.0
        %v2981 = vmax.f32 %v2167, 0.0
        %v2982 = vmax.f32 %v2358, 0.0
        %v2983 = vmax.f32 %v2360, 0.0
        %v2984 = vmax.f32 %v2551, 0.0
        %v2985 = vmax.f32 %v2553, 0.0
        %v2986 = vmax.f32 %v2744, 0.0
        %v2987 = vmax.f32 %v2746, 0.0
        %v2988 = vmax.f32 %v2169, 0.0
        %v2989 = vmax.f32 %v2171, 0.0
        %v2990 = vmax.f32 %v2362, 0.0
        %v2991 = vmax.f32 %v2364, 0.0
        %v2992 = vmax.f32 %v2555, 0.0
        %v2993 = vmax.f32 %v2557, 0.0
        %v2994 = vmax.f32 %v2748, 0.0
        %v2995 = vmax.f32 %v2750, 0.0
        %v2996 = vmax.f32 %v2175, 0.0
        %v2997 = vmax.f32 %v2177, 0.0
        %v2998 = vmax.f32 %v2368, 0.0
        %v2999 = vmax.f32 %v2370, 0.0
        %v3000 = vmax.f32 %v2561, 0.0
        %v3001 = vmax.f32 %v2563, 0.0
        %v3002 = vmax.f32 %v2754, 0.0
        %v3003 = vmax.f32 %v2756, 0.0
        %v3004 = vmax.f32 %v2179, 0.0
        %v3005 = vmax.f32 %v2181, 0.0
        %v3006 = vmax.f32 %v2372, 0.0
        %v3007 = vmax.f32 %v2374, 0.0
        %v3008 = vmax.f32 %v2565, 0.0
        %v3009 = vmax.f32 %v2567, 0.0
        %v3010 = vmax.f32 %v2758, 0.0
        %v3011 = vmax.f32 %v2760, 0.0
        %v3012 = vmax.f32 %v2185, 0.0
        %v3013 = vmax.f32 %v2187, 0.0
        %v3014 = vmax.f32 %v2378, 0.0
        %v3015 = vmax.f32 %v2380, 0.0
        %v3016 = vmax.f32 %v2571, 0.0
        %v3017 = vmax.f32 %v2573, 0.0
        %v3018 = vmax.f32 %v2764, 0.0
        %v3019 = vmax.f32 %v2766, 0.0
        %v3020 = vmax.f32 %v2189, 0.0
        %v3021 = vmax.f32 %v2191, 0.0
        %v3022 = vmax.f32 %v2382, 0.0
        %v3023 = vmax.f32 %v2384, 0.0
        %v3024 = vmax.f32 %v2575, 0.0
        %v3025 = vmax.f32 %v2577, 0.0
        %v3026 = vmax.f32 %v2768, 0.0
        %v3027 = vmax.f32 %v2770, 0.0
        %v3028 = vld [vmem:[%s546] sm:$0xff]
        %v3029 = vmax.f32 %v2772, %v2780
        %v3030 = vmax.f32 %v3029, %v2788
        %v3031 = vmax.f32 %v3030, %v2796
        %v3032 = vmax.f32 %v3031, %v2804
        %v3033 = vmax.f32 %v3032, %v2812
        %v3034 = vmax.f32 %v3033, %v2820
        %v3035 = vmax.f32 %v3034, %v2828
        %v3036 = vmax.f32 %v3035, %v2836
        %v3037 = vmax.f32 %v3036, %v2844
        %v3038 = vmax.f32 %v3037, %v2852
        %v3039 = vmax.f32 %v3038, %v2860
        %v3040 = vmax.f32 %v3039, %v2868
        %v3041 = vmax.f32 %v3040, %v2876
        %v3042 = vmax.f32 %v3041, %v2884
        %v3043 = vmax.f32 %v3042, %v2892
        %v3044 = vmax.f32 %v3043, %v2900
        %v3045 = vmax.f32 %v3044, %v2908
        %v3046 = vmax.f32 %v3045, %v2916
        %v3047 = vmax.f32 %v3046, %v2924
        %v3048 = vmax.f32 %v3047, %v2932
        %v3049 = vmax.f32 %v3048, %v2940
        %v3050 = vmax.f32 %v3049, %v2948
        %v3051 = vmax.f32 %v3050, %v2956
        %v3052 = vmax.f32 %v3051, %v2964
        %v3053 = vmax.f32 %v3052, %v2972
        %v3054 = vmax.f32 %v3053, %v2980
        %v3055 = vmax.f32 %v3054, %v2988
        %v3056 = vmax.f32 %v3055, %v2996
        %v3057 = vmax.f32 %v3056, %v3004
        %v3058 = vmax.f32 %v3057, %v3012
        %v3059 = vmax.f32 %v3058, %v3020
        %v3060 = vrot.slane %v3059, 4
        %v3061 = vmax.f32 %v3059, %v3060
        %v3062 = vrot.slane %v3061, 2
        %v3063 = vmax.f32 %v3061, %v3062
        %v3064 = vrot.slane %v3063, 1
        %v3065 = vmax.f32 %v3063, %v3064
        %v3066 = vmax.f32 %v2773, %v2781
        %v3067 = vmax.f32 %v3066, %v2789
        %v3068 = vmax.f32 %v3067, %v2797
        %v3069 = vmax.f32 %v3068, %v2805
        %v3070 = vmax.f32 %v3069, %v2813
        %v3071 = vmax.f32 %v3070, %v2821
        %v3072 = vmax.f32 %v3071, %v2829
        %v3073 = vmax.f32 %v3072, %v2837
        %v3074 = vmax.f32 %v3073, %v2845
        %v3075 = vmax.f32 %v3074, %v2853
        %v3076 = vmax.f32 %v3075, %v2861
        %v3077 = vmax.f32 %v3076, %v2869
        %v3078 = vmax.f32 %v3077, %v2877
        %v3079 = vmax.f32 %v3078, %v2885
        %v3080 = vmax.f32 %v3079, %v2893
        %v3081 = vmax.f32 %v3080, %v2901
        %v3082 = vmax.f32 %v3081, %v2909
        %v3083 = vmax.f32 %v3082, %v2917
        %v3084 = vmax.f32 %v3083, %v2925
        %v3085 = vmax.f32 %v3084, %v2933
        %v3086 = vmax.f32 %v3085, %v2941
        %v3087 = vmax.f32 %v3086, %v2949
        %v3088 = vmax.f32 %v3087, %v2957
        %v3089 = vmax.f32 %v3088, %v2965
        %v3090 = vmax.f32 %v3089, %v2973
        %v3091 = vmax.f32 %v3090, %v2981
        %v3092 = vmax.f32 %v3091, %v2989
        %v3093 = vmax.f32 %v3092, %v2997
        %v3094 = vmax.f32 %v3093, %v3005
        %v3095 = vmax.f32 %v3094, %v3013
        %v3096 = vmax.f32 %v3095, %v3021
        %v3097 = vrot.slane %v3096, 4
        %v3098 = vmax.f32 %v3096, %v3097
        %v3099 = vrot.slane %v3098, 2
        %v3100 = vmax.f32 %v3098, %v3099
        %v3101 = vrot.slane %v3100, 1
        %v3102 = vmax.f32 %v3100, %v3101
        %v3103 = vmax.f32 %v2774, %v2782
        %v3104 = vmax.f32 %v3103, %v2790
        %v3105 = vmax.f32 %v3104, %v2798
        %v3106 = vmax.f32 %v3105, %v2806
        %v3107 = vmax.f32 %v3106, %v2814
        %v3108 = vmax.f32 %v3107, %v2822
        %v3109 = vmax.f32 %v3108, %v2830
        %v3110 = vmax.f32 %v3109, %v2838
        %v3111 = vmax.f32 %v3110, %v2846
        %v3112 = vmax.f32 %v3111, %v2854
        %v3113 = vmax.f32 %v3112, %v2862
        %v3114 = vmax.f32 %v3113, %v2870
        %v3115 = vmax.f32 %v3114, %v2878
        %v3116 = vmax.f32 %v3115, %v2886
        %v3117 = vmax.f32 %v3116, %v2894
        %v3118 = vmax.f32 %v3117, %v2902
        %v3119 = vmax.f32 %v3118, %v2910
        %v3120 = vmax.f32 %v3119, %v2918
        %v3121 = vmax.f32 %v3120, %v2926
        %v3122 = vmax.f32 %v3121, %v2934
        %v3123 = vmax.f32 %v3122, %v2942
        %v3124 = vmax.f32 %v3123, %v2950
        %v3125 = vmax.f32 %v3124, %v2958
        %v3126 = vmax.f32 %v3125, %v2966
        %v3127 = vmax.f32 %v3126, %v2974
        %v3128 = vmax.f32 %v3127, %v2982
        %v3129 = vmax.f32 %v3128, %v2990
        %v3130 = vmax.f32 %v3129, %v2998
        %v3131 = vmax.f32 %v3130, %v3006
        %v3132 = vmax.f32 %v3131, %v3014
        %v3133 = vmax.f32 %v3132, %v3022
        %v3134 = vrot.slane %v3133, 4
        %v3135 = vmax.f32 %v3133, %v3134
        %v3136 = vrot.slane %v3135, 2
        %v3137 = vmax.f32 %v3135, %v3136
        %v3138 = vrot.slane %v3137, 1
        %v3139 = vmax.f32 %v3137, %v3138
        %v3140 = vmax.f32 %v2775, %v2783
        %v3141 = vmax.f32 %v3140, %v2791
        %v3142 = vmax.f32 %v3141, %v2799
        %v3143 = vmax.f32 %v3142, %v2807
        %v3144 = vmax.f32 %v3143, %v2815
        %v3145 = vmax.f32 %v3144, %v2823
        %v3146 = vmax.f32 %v3145, %v2831
        %v3147 = vmax.f32 %v3146, %v2839
        %v3148 = vmax.f32 %v3147, %v2847
        %v3149 = vmax.f32 %v3148, %v2855
        %v3150 = vmax.f32 %v3149, %v2863
        %v3151 = vmax.f32 %v3150, %v2871
        %v3152 = vmax.f32 %v3151, %v2879
        %v3153 = vmax.f32 %v3152, %v2887
        %v3154 = vmax.f32 %v3153, %v2895
        %v3155 = vmax.f32 %v3154, %v2903
        %v3156 = vmax.f32 %v3155, %v2911
        %v3157 = vmax.f32 %v3156, %v2919
        %v3158 = vmax.f32 %v3157, %v2927
        %v3159 = vmax.f32 %v3158, %v2935
        %v3160 = vmax.f32 %v3159, %v2943
        %v3161 = vmax.f32 %v3160, %v2951
        %v3162 = vmax.f32 %v3161, %v2959
        %v3163 = vmax.f32 %v3162, %v2967
        %v3164 = vmax.f32 %v3163, %v2975
        %v3165 = vmax.f32 %v3164, %v2983
        %v3166 = vmax.f32 %v3165, %v2991
        %v3167 = vmax.f32 %v3166, %v2999
        %v3168 = vmax.f32 %v3167, %v3007
        %v3169 = vmax.f32 %v3168, %v3015
        %v3170 = vmax.f32 %v3169, %v3023
        %v3171 = vrot.slane %v3170, 4
        %v3172 = vmax.f32 %v3170, %v3171
        %v3173 = vrot.slane %v3172, 2
        %v3174 = vmax.f32 %v3172, %v3173
        %v3175 = vrot.slane %v3174, 1
        %v3176 = vmax.f32 %v3174, %v3175
        %v3177 = vmax.f32 %v2776, %v2784
        %v3178 = vmax.f32 %v3177, %v2792
        %v3179 = vmax.f32 %v3178, %v2800
        %v3180 = vmax.f32 %v3179, %v2808
        %v3181 = vmax.f32 %v3180, %v2816
        %v3182 = vmax.f32 %v3181, %v2824
        %v3183 = vmax.f32 %v3182, %v2832
        %v3184 = vmax.f32 %v3183, %v2840
        %v3185 = vmax.f32 %v3184, %v2848
        %v3186 = vmax.f32 %v3185, %v2856
        %v3187 = vmax.f32 %v3186, %v2864
        %v3188 = vmax.f32 %v3187, %v2872
        %v3189 = vmax.f32 %v3188, %v2880
        %v3190 = vmax.f32 %v3189, %v2888
        %v3191 = vmax.f32 %v3190, %v2896
        %v3192 = vmax.f32 %v3191, %v2904
        %v3193 = vmax.f32 %v3192, %v2912
        %v3194 = vmax.f32 %v3193, %v2920
        %v3195 = vmax.f32 %v3194, %v2928
        %v3196 = vmax.f32 %v3195, %v2936
        %v3197 = vmax.f32 %v3196, %v2944
        %v3198 = vmax.f32 %v3197, %v2952
        %v3199 = vmax.f32 %v3198, %v2960
        %v3200 = vmax.f32 %v3199, %v2968
        %v3201 = vmax.f32 %v3200, %v2976
        %v3202 = vmax.f32 %v3201, %v2984
        %v3203 = vmax.f32 %v3202, %v2992
        %v3204 = vmax.f32 %v3203, %v3000
        %v3205 = vmax.f32 %v3204, %v3008
        %v3206 = vmax.f32 %v3205, %v3016
        %v3207 = vmax.f32 %v3206, %v3024
        %v3208 = vrot.slane %v3207, 4
        %v3209 = vmax.f32 %v3207, %v3208
        %v3210 = vrot.slane %v3209, 2
        %v3211 = vmax.f32 %v3209, %v3210
        %v3212 = vrot.slane %v3211, 1
        %v3213 = vmax.f32 %v3211, %v3212
        %v3214 = vmax.f32 %v2777, %v2785
        %v3215 = vmax.f32 %v3214, %v2793
        %v3216 = vmax.f32 %v3215, %v2801
        %v3217 = vmax.f32 %v3216, %v2809
        %v3218 = vmax.f32 %v3217, %v2817
        %v3219 = vmax.f32 %v3218, %v2825
        %v3220 = vmax.f32 %v3219, %v2833
        %v3221 = vmax.f32 %v3220, %v2841
        %v3222 = vmax.f32 %v3221, %v2849
        %v3223 = vmax.f32 %v3222, %v2857
        %v3224 = vmax.f32 %v3223, %v2865
        %v3225 = vmax.f32 %v3224, %v2873
        %v3226 = vmax.f32 %v3225, %v2881
        %v3227 = vmax.f32 %v3226, %v2889
        %v3228 = vmax.f32 %v3227, %v2897
        %v3229 = vmax.f32 %v3228, %v2905
        %v3230 = vmax.f32 %v3229, %v2913
        %v3231 = vmax.f32 %v3230, %v2921
        %v3232 = vmax.f32 %v3231, %v2929
        %v3233 = vmax.f32 %v3232, %v2937
        %v3234 = vmax.f32 %v3233, %v2945
        %v3235 = vmax.f32 %v3234, %v2953
        %v3236 = vmax.f32 %v3235, %v2961
        %v3237 = vmax.f32 %v3236, %v2969
        %v3238 = vmax.f32 %v3237, %v2977
        %v3239 = vmax.f32 %v3238, %v2985
        %v3240 = vmax.f32 %v3239, %v2993
        %v3241 = vmax.f32 %v3240, %v3001
        %v3242 = vmax.f32 %v3241, %v3009
        %v3243 = vmax.f32 %v3242, %v3017
        %v3244 = vmax.f32 %v3243, %v3025
        %v3245 = vrot.slane %v3244, 4
        %v3246 = vmax.f32 %v3244, %v3245
        %v3247 = vrot.slane %v3246, 2
        %v3248 = vmax.f32 %v3246, %v3247
        %v3249 = vrot.slane %v3248, 1
        %v3250 = vmax.f32 %v3248, %v3249
        %v3251 = vmax.f32 %v2778, %v2786
        %v3252 = vmax.f32 %v3251, %v2794
        %v3253 = vmax.f32 %v3252, %v2802
        %v3254 = vmax.f32 %v3253, %v2810
        %v3255 = vmax.f32 %v3254, %v2818
        %v3256 = vmax.f32 %v3255, %v2826
        %v3257 = vmax.f32 %v3256, %v2834
        %v3258 = vmax.f32 %v3257, %v2842
        %v3259 = vmax.f32 %v3258, %v2850
        %v3260 = vmax.f32 %v3259, %v2858
        %v3261 = vmax.f32 %v3260, %v2866
        %v3262 = vmax.f32 %v3261, %v2874
        %v3263 = vmax.f32 %v3262, %v2882
        %v3264 = vmax.f32 %v3263, %v2890
        %v3265 = vmax.f32 %v3264, %v2898
        %v3266 = vmax.f32 %v3265, %v2906
        %v3267 = vmax.f32 %v3266, %v2914
        %v3268 = vmax.f32 %v3267, %v2922
        %v3269 = vmax.f32 %v3268, %v2930
        %v3270 = vmax.f32 %v3269, %v2938
        %v3271 = vmax.f32 %v3270, %v2946
        %v3272 = vmax.f32 %v3271, %v2954
        %v3273 = vmax.f32 %v3272, %v2962
        %v3274 = vmax.f32 %v3273, %v2970
        %v3275 = vmax.f32 %v3274, %v2978
        %v3276 = vmax.f32 %v3275, %v2986
        %v3277 = vmax.f32 %v3276, %v2994
        %v3278 = vmax.f32 %v3277, %v3002
        %v3279 = vmax.f32 %v3278, %v3010
        %v3280 = vmax.f32 %v3279, %v3018
        %v3281 = vmax.f32 %v3280, %v3026
        %v3282 = vrot.slane %v3281, 4
        %v3283 = vmax.f32 %v3281, %v3282
        %v3284 = vrot.slane %v3283, 2
        %v3285 = vmax.f32 %v3283, %v3284
        %v3286 = vrot.slane %v3285, 1
        %v3287 = vmax.f32 %v3285, %v3286
        %v3288 = vmax.f32 %v2779, %v2787
        %v3289 = vmax.f32 %v3288, %v2795
        %v3290 = vmax.f32 %v3289, %v2803
        %v3291 = vmax.f32 %v3290, %v2811
        %v3292 = vmax.f32 %v3291, %v2819
        %v3293 = vmax.f32 %v3292, %v2827
        %v3294 = vmax.f32 %v3293, %v2835
        %v3295 = vmax.f32 %v3294, %v2843
        %v3296 = vmax.f32 %v3295, %v2851
        %v3297 = vmax.f32 %v3296, %v2859
        %v3298 = vmax.f32 %v3297, %v2867
        %v3299 = vmax.f32 %v3298, %v2875
        %v3300 = vmax.f32 %v3299, %v2883
        %v3301 = vmax.f32 %v3300, %v2891
        %v3302 = vmax.f32 %v3301, %v2899
        %v3303 = vmax.f32 %v3302, %v2907
        %v3304 = vmax.f32 %v3303, %v2915
        %v3305 = vmax.f32 %v3304, %v2923
        %v3306 = vmax.f32 %v3305, %v2931
        %v3307 = vmax.f32 %v3306, %v2939
        %v3308 = vmax.f32 %v3307, %v2947
        %v3309 = vmax.f32 %v3308, %v2955
        %v3310 = vmax.f32 %v3309, %v2963
        %v3311 = vmax.f32 %v3310, %v2971
        %v3312 = vmax.f32 %v3311, %v2979
        %v3313 = vmax.f32 %v3312, %v2987
        %v3314 = vmax.f32 %v3313, %v2995
        %v3315 = vmax.f32 %v3314, %v3003
        %v3316 = vmax.f32 %v3315, %v3011
        %v3317 = vmax.f32 %v3316, %v3019
        %v3318 = vmax.f32 %v3317, %v3027
        %v3319 = vrot.slane %v3318, 4
        %v3320 = vmax.f32 %v3318, %v3319
        %v3321 = vrot.slane %v3320, 2
        %v3322 = vmax.f32 %v3320, %v3321
        %v3323 = vrot.slane %v3322, 1
        %v3324 = vmax.f32 %v3322, %v3323
        %v3333 = vcombine.low %v3065, %v3102
        %v3334 = vcombine.low %v3139, %v3176
        %v3335 = vcombine.low %v3213, %v3250
        %v3336 = vcombine.low %v3287, %v3324
        %v3338 = vunpack.c.l.s4 1966171168
        %v3339 = vunpack.c.0.s8 %v3338
        %v3340 = vlaneseq
        %v3341 = vshrl.u32 %v3340, 7
        %v3342 = vsub.s32 %v3339, %v3341
        %v3343 = vrot.slane %v3333, %v3342
        %v3345 = vunpack.c.l.s4 1966171168
        %v3346 = vunpack.c.0.s8 %v3345
        %v3347 = vlaneseq
        %v3348 = vshrl.u32 %v3347, 7
        %v3349 = vsub.s32 %v3346, %v3348
        %v3350 = vrot.slane %v3334, %v3349
        %v3352 = vunpack.c.l.s4 1966171168
        %v3353 = vunpack.c.0.s8 %v3352
        %v3354 = vlaneseq
        %v3355 = vshrl.u32 %v3354, 7
        %v3356 = vsub.s32 %v3353, %v3355
        %v3357 = vrot.slane %v3335, %v3356
        %v3359 = vunpack.c.l.s4 1966171168
        %v3360 = vunpack.c.0.s8 %v3359
        %v3361 = vlaneseq
        %v3362 = vshrl.u32 %v3361, 7
        %v3363 = vsub.s32 %v3360, %v3362
        %v3364 = vrot.slane %v3336, %v3363
        %v3365 = vcombine.low %v3343, %v3350
        %v3366 = vcombine.low %v3357, %v3364
        %v3368 = vunpack.c.l.s4 1966171168
        %v3369 = vunpack.c.0.s8 %v3368
        %v3370 = vlaneseq
        %v3371 = vshrl.u32 %v3370, 7
        %v3372 = vsub.s32 %v3369, %v3371
        %v3373 = vrot.slane %v3365, %v3372
        %v3375 = vunpack.c.l.s4 1966171168
        %v3376 = vunpack.c.0.s8 %v3375
        %v3377 = vlaneseq
        %v3378 = vshrl.u32 %v3377, 7
        %v3379 = vsub.s32 %v3376, %v3378
        %v3380 = vrot.slane %v3366, %v3379
        %v3381 = vcombine.low %v3373, %v3380
        %v3383 = vmax.f32 %v3028, %v3381
        %3384 = vst [vmem:[%s546] sm:$0xff] %v3383
        // Predicated region
        $region93: #{tpu_custom_call.1} parent=71 // pred_check
          %p3385 = pneg %p564
        $region94: #{tpu_custom_call.1} parent=71 // pred_check_branch
          %3387 = sbr.rel (%p3385) target = $region96
        $region95: #{tpu_custom_call.1} parent=71 // pred_region
          %v3388 = vld [vmem:[%s546] sm:$0xff]
          %v3390 = vlaneseq
          %v3391 = vshrl.u32 %v3390, 7
          %v3392 = vsub.s32 0, %v3391
          %v3393 = vrot.slane %v3388, %v3392
          %v3394 = vlaneseq
          %v3395 = vshrl.u32 %v3394, 7
          %v3396 = vsub.s32 1, %v3395
          %v3397 = vrot.slane %v3388, %v3396
          %v3398 = vlaneseq
          %v3399 = vshrl.u32 %v3398, 7
          %v3400 = vsub.s32 2, %v3399
          %v3401 = vrot.slane %v3388, %v3400
          %v3402 = vlaneseq
          %v3403 = vshrl.u32 %v3402, 7
          %v3404 = vsub.s32 3, %v3403
          %v3405 = vrot.slane %v3388, %v3404
          %v3406 = vlaneseq
          %v3407 = vshrl.u32 %v3406, 7
          %v3408 = vsub.s32 4, %v3407
          %v3409 = vrot.slane %v3388, %v3408
          %v3410 = vlaneseq
          %v3411 = vshrl.u32 %v3410, 7
          %v3412 = vsub.s32 5, %v3411
          %v3413 = vrot.slane %v3388, %v3412
          %v3414 = vlaneseq
          %v3415 = vshrl.u32 %v3414, 7
          %v3416 = vsub.s32 6, %v3415
          %v3417 = vrot.slane %v3388, %v3416
          %v3418 = vlaneseq
          %v3419 = vshrl.u32 %v3418, 7
          %v3420 = vsub.s32 7, %v3419
          %v3421 = vrot.slane %v3388, %v3420
          %v3430 = vpack.c.bf16 %v3393, %v3393
          %v3431 = vpack.c.bf16 %v3397, %v3397
          %v3432 = vpack.c.bf16 %v3401, %v3401
          %v3433 = vpack.c.bf16 %v3405, %v3405
          %v3434 = vpack.c.bf16 %v3409, %v3409
          %v3435 = vpack.c.bf16 %v3413, %v3413
          %v3436 = vpack.c.bf16 %v3417, %v3417
          %v3437 = vpack.c.bf16 %v3421, %v3421
          %v3438 = vld [vmem:[#allocation5] sm:$0xff]
          %v3439 = vld [vmem:[#allocation5 + $0x8] sm:$0xff]
          %v3440 = vld [vmem:[#allocation5 + $0x10] sm:$0xff]
          %v3441 = vld [vmem:[#allocation5 + $0x18] sm:$0xff]
          %v3442 = vld [vmem:[#allocation5 + $0x20] sm:$0xff]
          %v3443 = vld [vmem:[#allocation5 + $0x28] sm:$0xff]
          %v3444 = vld [vmem:[#allocation5 + $0x30] sm:$0xff]
          %v3445 = vld [vmem:[#allocation5 + $0x38] sm:$0xff]
          %v3446 = vld [vmem:[#allocation5 + $0x40] sm:$0xff]
          %v3447 = vld [vmem:[#allocation5 + $0x48] sm:$0xff]
          %v3448 = vld [vmem:[#allocation5 + $0x50] sm:$0xff]
          %v3449 = vld [vmem:[#allocation5 + $0x58] sm:$0xff]
          %v3450 = vld [vmem:[#allocation5 + $0x60] sm:$0xff]
          %v3451 = vld [vmem:[#allocation5 + $0x68] sm:$0xff]
          %v3452 = vld [vmem:[#allocation5 + $0x70] sm:$0xff]
          %v3453 = vld [vmem:[#allocation5 + $0x78] sm:$0xff]
          %v3454 = vld [vmem:[#allocation5 + $0x80] sm:$0xff]
          %v3455 = vld [vmem:[#allocation5 + $0x88] sm:$0xff]
          %v3456 = vld [vmem:[#allocation5 + $0x90] sm:$0xff]
          %v3457 = vld [vmem:[#allocation5 + $0x98] sm:$0xff]
          %v3458 = vld [vmem:[#allocation5 + $0xa0] sm:$0xff]
          %v3459 = vld [vmem:[#allocation5 + $0xa8] sm:$0xff]
          %v3460 = vld [vmem:[#allocation5 + $0xb0] sm:$0xff]
          %v3461 = vld [vmem:[#allocation5 + $0xb8] sm:$0xff]
          %v3462 = vld [vmem:[#allocation5 + $0xc0] sm:$0xff]
          %v3463 = vld [vmem:[#allocation5 + $0xc8] sm:$0xff]
          %v3464 = vld [vmem:[#allocation5 + $0xd0] sm:$0xff]
          %v3465 = vld [vmem:[#allocation5 + $0xd8] sm:$0xff]
          %v3466 = vld [vmem:[#allocation5 + $0xe0] sm:$0xff]
          %v3467 = vld [vmem:[#allocation5 + $0xe8] sm:$0xff]
          %v3468 = vld [vmem:[#allocation5 + $0xf0] sm:$0xff]
          %v3469 = vld [vmem:[#allocation5 + $0xf8] sm:$0xff]
          %v3470 = vld [vmem:[#allocation5 + $0x100] sm:$0xff]
          %v3471 = vld [vmem:[#allocation5 + $0x108] sm:$0xff]
          %v3472 = vld [vmem:[#allocation5 + $0x110] sm:$0xff]
          %v3473 = vld [vmem:[#allocation5 + $0x118] sm:$0xff]
          %v3474 = vld [vmem:[#allocation5 + $0x120] sm:$0xff]
          %v3475 = vld [vmem:[#allocation5 + $0x128] sm:$0xff]
          %v3476 = vld [vmem:[#allocation5 + $0x130] sm:$0xff]
          %v3477 = vld [vmem:[#allocation5 + $0x138] sm:$0xff]
          %v3478 = vld [vmem:[#allocation5 + $0x140] sm:$0xff]
          %v3479 = vld [vmem:[#allocation5 + $0x148] sm:$0xff]
          %v3480 = vld [vmem:[#allocation5 + $0x150] sm:$0xff]
          %v3481 = vld [vmem:[#allocation5 + $0x158] sm:$0xff]
          %v3482 = vld [vmem:[#allocation5 + $0x160] sm:$0xff]
          %v3483 = vld [vmem:[#allocation5 + $0x168] sm:$0xff]
          %v3484 = vld [vmem:[#allocation5 + $0x170] sm:$0xff]
          %v3485 = vld [vmem:[#allocation5 + $0x178] sm:$0xff]
          %v3486 = vld [vmem:[#allocation5 + $0x180] sm:$0xff]
          %v3487 = vld [vmem:[#allocation5 + $0x188] sm:$0xff]
          %v3488 = vld [vmem:[#allocation5 + $0x190] sm:$0xff]
          %v3489 = vld [vmem:[#allocation5 + $0x198] sm:$0xff]
          %v3490 = vld [vmem:[#allocation5 + $0x1a0] sm:$0xff]
          %v3491 = vld [vmem:[#allocation5 + $0x1a8] sm:$0xff]
          %v3492 = vld [vmem:[#allocation5 + $0x1b0] sm:$0xff]
          %v3493 = vld [vmem:[#allocation5 + $0x1b8] sm:$0xff]
          %v3494 = vld [vmem:[#allocation5 + $0x1c0] sm:$0xff]
          %v3495 = vld [vmem:[#allocation5 + $0x1c8] sm:$0xff]
          %v3496 = vld [vmem:[#allocation5 + $0x1d0] sm:$0xff]
          %v3497 = vld [vmem:[#allocation5 + $0x1d8] sm:$0xff]
          %v3498 = vld [vmem:[#allocation5 + $0x1e0] sm:$0xff]
          %v3499 = vld [vmem:[#allocation5 + $0x1e8] sm:$0xff]
          %v3500 = vld [vmem:[#allocation5 + $0x1f0] sm:$0xff]
          %v3501 = vld [vmem:[#allocation5 + $0x1f8] sm:$0xff]
          %v3502 = vld [vmem:[#allocation5 + $0x200] sm:$0xff]
          %v3503 = vld [vmem:[#allocation5 + $0x208] sm:$0xff]
          %v3504 = vld [vmem:[#allocation5 + $0x210] sm:$0xff]
          %v3505 = vld [vmem:[#allocation5 + $0x218] sm:$0xff]
          %v3506 = vld [vmem:[#allocation5 + $0x220] sm:$0xff]
          %v3507 = vld [vmem:[#allocation5 + $0x228] sm:$0xff]
          %v3508 = vld [vmem:[#allocation5 + $0x230] sm:$0xff]
          %v3509 = vld [vmem:[#allocation5 + $0x238] sm:$0xff]
          %v3510 = vld [vmem:[#allocation5 + $0x240] sm:$0xff]
          %v3511 = vld [vmem:[#allocation5 + $0x248] sm:$0xff]
          %v3512 = vld [vmem:[#allocation5 + $0x250] sm:$0xff]
          %v3513 = vld [vmem:[#allocation5 + $0x258] sm:$0xff]
          %v3514 = vld [vmem:[#allocation5 + $0x260] sm:$0xff]
          %v3515 = vld [vmem:[#allocation5 + $0x268] sm:$0xff]
          %v3516 = vld [vmem:[#allocation5 + $0x270] sm:$0xff]
          %v3517 = vld [vmem:[#allocation5 + $0x278] sm:$0xff]
          %v3518 = vld [vmem:[#allocation5 + $0x280] sm:$0xff]
          %v3519 = vld [vmem:[#allocation5 + $0x288] sm:$0xff]
          %v3520 = vld [vmem:[#allocation5 + $0x290] sm:$0xff]
          %v3521 = vld [vmem:[#allocation5 + $0x298] sm:$0xff]
          %v3522 = vld [vmem:[#allocation5 + $0x2a0] sm:$0xff]
          %v3523 = vld [vmem:[#allocation5 + $0x2a8] sm:$0xff]
          %v3524 = vld [vmem:[#allocation5 + $0x2b0] sm:$0xff]
          %v3525 = vld [vmem:[#allocation5 + $0x2b8] sm:$0xff]
          %v3526 = vld [vmem:[#allocation5 + $0x2c0] sm:$0xff]
          %v3527 = vld [vmem:[#allocation5 + $0x2c8] sm:$0xff]
          %v3528 = vld [vmem:[#allocation5 + $0x2d0] sm:$0xff]
          %v3529 = vld [vmem:[#allocation5 + $0x2d8] sm:$0xff]
          %v3530 = vld [vmem:[#allocation5 + $0x2e0] sm:$0xff]
          %v3531 = vld [vmem:[#allocation5 + $0x2e8] sm:$0xff]
          %v3532 = vld [vmem:[#allocation5 + $0x2f0] sm:$0xff]
          %v3533 = vld [vmem:[#allocation5 + $0x2f8] sm:$0xff]
          %v3534 = vld [vmem:[#allocation5 + $0x300] sm:$0xff]
          %v3535 = vld [vmem:[#allocation5 + $0x308] sm:$0xff]
          %v3536 = vld [vmem:[#allocation5 + $0x310] sm:$0xff]
          %v3537 = vld [vmem:[#allocation5 + $0x318] sm:$0xff]
          %v3538 = vld [vmem:[#allocation5 + $0x320] sm:$0xff]
          %v3539 = vld [vmem:[#allocation5 + $0x328] sm:$0xff]
          %v3540 = vld [vmem:[#allocation5 + $0x330] sm:$0xff]
          %v3541 = vld [vmem:[#allocation5 + $0x338] sm:$0xff]
          %v3542 = vld [vmem:[#allocation5 + $0x340] sm:$0xff]
          %v3543 = vld [vmem:[#allocation5 + $0x348] sm:$0xff]
          %v3544 = vld [vmem:[#allocation5 + $0x350] sm:$0xff]
          %v3545 = vld [vmem:[#allocation5 + $0x358] sm:$0xff]
          %v3546 = vld [vmem:[#allocation5 + $0x360] sm:$0xff]
          %v3547 = vld [vmem:[#allocation5 + $0x368] sm:$0xff]
          %v3548 = vld [vmem:[#allocation5 + $0x370] sm:$0xff]
          %v3549 = vld [vmem:[#allocation5 + $0x378] sm:$0xff]
          %v3550 = vld [vmem:[#allocation5 + $0x380] sm:$0xff]
          %v3551 = vld [vmem:[#allocation5 + $0x388] sm:$0xff]
          %v3552 = vld [vmem:[#allocation5 + $0x390] sm:$0xff]
          %v3553 = vld [vmem:[#allocation5 + $0x398] sm:$0xff]
          %v3554 = vld [vmem:[#allocation5 + $0x3a0] sm:$0xff]
          %v3555 = vld [vmem:[#allocation5 + $0x3a8] sm:$0xff]
          %v3556 = vld [vmem:[#allocation5 + $0x3b0] sm:$0xff]
          %v3557 = vld [vmem:[#allocation5 + $0x3b8] sm:$0xff]
          %v3558 = vld [vmem:[#allocation5 + $0x3c0] sm:$0xff]
          %v3559 = vld [vmem:[#allocation5 + $0x3c8] sm:$0xff]
          %v3560 = vld [vmem:[#allocation5 + $0x3d0] sm:$0xff]
          %v3561 = vld [vmem:[#allocation5 + $0x3d8] sm:$0xff]
          %v3562 = vld [vmem:[#allocation5 + $0x3e0] sm:$0xff]
          %v3563 = vld [vmem:[#allocation5 + $0x3e8] sm:$0xff]
          %v3564 = vld [vmem:[#allocation5 + $0x3f0] sm:$0xff]
          %v3565 = vld [vmem:[#allocation5 + $0x3f8] sm:$0xff]
          %v3566 = vld [vmem:[#allocation5 + $0x400] sm:$0xff]
          %v3567 = vld [vmem:[#allocation5 + $0x408] sm:$0xff]
          %v3568 = vld [vmem:[#allocation5 + $0x410] sm:$0xff]
          %v3569 = vld [vmem:[#allocation5 + $0x418] sm:$0xff]
          %v3570 = vld [vmem:[#allocation5 + $0x420] sm:$0xff]
          %v3571 = vld [vmem:[#allocation5 + $0x428] sm:$0xff]
          %v3572 = vld [vmem:[#allocation5 + $0x430] sm:$0xff]
          %v3573 = vld [vmem:[#allocation5 + $0x438] sm:$0xff]
          %v3574 = vld [vmem:[#allocation5 + $0x440] sm:$0xff]
          %v3575 = vld [vmem:[#allocation5 + $0x448] sm:$0xff]
          %v3576 = vld [vmem:[#allocation5 + $0x450] sm:$0xff]
          %v3577 = vld [vmem:[#allocation5 + $0x458] sm:$0xff]
          %v3578 = vld [vmem:[#allocation5 + $0x460] sm:$0xff]
          %v3579 = vld [vmem:[#allocation5 + $0x468] sm:$0xff]
          %v3580 = vld [vmem:[#allocation5 + $0x470] sm:$0xff]
          %v3581 = vld [vmem:[#allocation5 + $0x478] sm:$0xff]
          %v3582 = vld [vmem:[#allocation5 + $0x480] sm:$0xff]
          %v3583 = vld [vmem:[#allocation5 + $0x488] sm:$0xff]
          %v3584 = vld [vmem:[#allocation5 + $0x490] sm:$0xff]
          %v3585 = vld [vmem:[#allocation5 + $0x498] sm:$0xff]
          %v3586 = vld [vmem:[#allocation5 + $0x4a0] sm:$0xff]
          %v3587 = vld [vmem:[#allocation5 + $0x4a8] sm:$0xff]
          %v3588 = vld [vmem:[#allocation5 + $0x4b0] sm:$0xff]
          %v3589 = vld [vmem:[#allocation5 + $0x4b8] sm:$0xff]
          %v3590 = vld [vmem:[#allocation5 + $0x4c0] sm:$0xff]
          %v3591 = vld [vmem:[#allocation5 + $0x4c8] sm:$0xff]
          %v3592 = vld [vmem:[#allocation5 + $0x4d0] sm:$0xff]
          %v3593 = vld [vmem:[#allocation5 + $0x4d8] sm:$0xff]
          %v3594 = vld [vmem:[#allocation5 + $0x4e0] sm:$0xff]
          %v3595 = vld [vmem:[#allocation5 + $0x4e8] sm:$0xff]
          %v3596 = vld [vmem:[#allocation5 + $0x4f0] sm:$0xff]
          %v3597 = vld [vmem:[#allocation5 + $0x4f8] sm:$0xff]
          %v3598 = vld [vmem:[#allocation5 + $0x500] sm:$0xff]
          %v3599 = vld [vmem:[#allocation5 + $0x508] sm:$0xff]
          %v3600 = vld [vmem:[#allocation5 + $0x510] sm:$0xff]
          %v3601 = vld [vmem:[#allocation5 + $0x518] sm:$0xff]
          %v3602 = vld [vmem:[#allocation5 + $0x520] sm:$0xff]
          %v3603 = vld [vmem:[#allocation5 + $0x528] sm:$0xff]
          %v3604 = vld [vmem:[#allocation5 + $0x530] sm:$0xff]
          %v3605 = vld [vmem:[#allocation5 + $0x538] sm:$0xff]
          %v3606 = vld [vmem:[#allocation5 + $0x540] sm:$0xff]
          %v3607 = vld [vmem:[#allocation5 + $0x548] sm:$0xff]
          %v3608 = vld [vmem:[#allocation5 + $0x550] sm:$0xff]
          %v3609 = vld [vmem:[#allocation5 + $0x558] sm:$0xff]
          %v3610 = vld [vmem:[#allocation5 + $0x560] sm:$0xff]
          %v3611 = vld [vmem:[#allocation5 + $0x568] sm:$0xff]
          %v3612 = vld [vmem:[#allocation5 + $0x570] sm:$0xff]
          %v3613 = vld [vmem:[#allocation5 + $0x578] sm:$0xff]
          %v3614 = vld [vmem:[#allocation5 + $0x580] sm:$0xff]
          %v3615 = vld [vmem:[#allocation5 + $0x588] sm:$0xff]
          %v3616 = vld [vmem:[#allocation5 + $0x590] sm:$0xff]
          %v3617 = vld [vmem:[#allocation5 + $0x598] sm:$0xff]
          %v3618 = vld [vmem:[#allocation5 + $0x5a0] sm:$0xff]
          %v3619 = vld [vmem:[#allocation5 + $0x5a8] sm:$0xff]
          %v3620 = vld [vmem:[#allocation5 + $0x5b0] sm:$0xff]
          %v3621 = vld [vmem:[#allocation5 + $0x5b8] sm:$0xff]
          %v3622 = vld [vmem:[#allocation5 + $0x5c0] sm:$0xff]
          %v3623 = vld [vmem:[#allocation5 + $0x5c8] sm:$0xff]
          %v3624 = vld [vmem:[#allocation5 + $0x5d0] sm:$0xff]
          %v3625 = vld [vmem:[#allocation5 + $0x5d8] sm:$0xff]
          %v3626 = vld [vmem:[#allocation5 + $0x5e0] sm:$0xff]
          %v3627 = vld [vmem:[#allocation5 + $0x5e8] sm:$0xff]
          %v3628 = vld [vmem:[#allocation5 + $0x5f0] sm:$0xff]
          %v3629 = vld [vmem:[#allocation5 + $0x5f8] sm:$0xff]
          %v3630 = vld [vmem:[#allocation5 + $0x600] sm:$0xff]
          %v3631 = vld [vmem:[#allocation5 + $0x608] sm:$0xff]
          %v3632 = vld [vmem:[#allocation5 + $0x610] sm:$0xff]
          %v3633 = vld [vmem:[#allocation5 + $0x618] sm:$0xff]
          %v3634 = vld [vmem:[#allocation5 + $0x620] sm:$0xff]
          %v3635 = vld [vmem:[#allocation5 + $0x628] sm:$0xff]
          %v3636 = vld [vmem:[#allocation5 + $0x630] sm:$0xff]
          %v3637 = vld [vmem:[#allocation5 + $0x638] sm:$0xff]
          %v3638 = vld [vmem:[#allocation5 + $0x640] sm:$0xff]
          %v3639 = vld [vmem:[#allocation5 + $0x648] sm:$0xff]
          %v3640 = vld [vmem:[#allocation5 + $0x650] sm:$0xff]
          %v3641 = vld [vmem:[#allocation5 + $0x658] sm:$0xff]
          %v3642 = vld [vmem:[#allocation5 + $0x660] sm:$0xff]
          %v3643 = vld [vmem:[#allocation5 + $0x668] sm:$0xff]
          %v3644 = vld [vmem:[#allocation5 + $0x670] sm:$0xff]
          %v3645 = vld [vmem:[#allocation5 + $0x678] sm:$0xff]
          %v3646 = vld [vmem:[#allocation5 + $0x680] sm:$0xff]
          %v3647 = vld [vmem:[#allocation5 + $0x688] sm:$0xff]
          %v3648 = vld [vmem:[#allocation5 + $0x690] sm:$0xff]
          %v3649 = vld [vmem:[#allocation5 + $0x698] sm:$0xff]
          %v3650 = vld [vmem:[#allocation5 + $0x6a0] sm:$0xff]
          %v3651 = vld [vmem:[#allocation5 + $0x6a8] sm:$0xff]
          %v3652 = vld [vmem:[#allocation5 + $0x6b0] sm:$0xff]
          %v3653 = vld [vmem:[#allocation5 + $0x6b8] sm:$0xff]
          %v3654 = vld [vmem:[#allocation5 + $0x6c0] sm:$0xff]
          %v3655 = vld [vmem:[#allocation5 + $0x6c8] sm:$0xff]
          %v3656 = vld [vmem:[#allocation5 + $0x6d0] sm:$0xff]
          %v3657 = vld [vmem:[#allocation5 + $0x6d8] sm:$0xff]
          %v3658 = vld [vmem:[#allocation5 + $0x6e0] sm:$0xff]
          %v3659 = vld [vmem:[#allocation5 + $0x6e8] sm:$0xff]
          %v3660 = vld [vmem:[#allocation5 + $0x6f0] sm:$0xff]
          %v3661 = vld [vmem:[#allocation5 + $0x6f8] sm:$0xff]
          %v3662 = vld [vmem:[#allocation5 + $0x700] sm:$0xff]
          %v3663 = vld [vmem:[#allocation5 + $0x708] sm:$0xff]
          %v3664 = vld [vmem:[#allocation5 + $0x710] sm:$0xff]
          %v3665 = vld [vmem:[#allocation5 + $0x718] sm:$0xff]
          %v3666 = vld [vmem:[#allocation5 + $0x720] sm:$0xff]
          %v3667 = vld [vmem:[#allocation5 + $0x728] sm:$0xff]
          %v3668 = vld [vmem:[#allocation5 + $0x730] sm:$0xff]
          %v3669 = vld [vmem:[#allocation5 + $0x738] sm:$0xff]
          %v3670 = vld [vmem:[#allocation5 + $0x740] sm:$0xff]
          %v3671 = vld [vmem:[#allocation5 + $0x748] sm:$0xff]
          %v3672 = vld [vmem:[#allocation5 + $0x750] sm:$0xff]
          %v3673 = vld [vmem:[#allocation5 + $0x758] sm:$0xff]
          %v3674 = vld [vmem:[#allocation5 + $0x760] sm:$0xff]
          %v3675 = vld [vmem:[#allocation5 + $0x768] sm:$0xff]
          %v3676 = vld [vmem:[#allocation5 + $0x770] sm:$0xff]
          %v3677 = vld [vmem:[#allocation5 + $0x778] sm:$0xff]
          %v3678 = vld [vmem:[#allocation5 + $0x780] sm:$0xff]
          %v3679 = vld [vmem:[#allocation5 + $0x788] sm:$0xff]
          %v3680 = vld [vmem:[#allocation5 + $0x790] sm:$0xff]
          %v3681 = vld [vmem:[#allocation5 + $0x798] sm:$0xff]
          %v3682 = vld [vmem:[#allocation5 + $0x7a0] sm:$0xff]
          %v3683 = vld [vmem:[#allocation5 + $0x7a8] sm:$0xff]
          %v3684 = vld [vmem:[#allocation5 + $0x7b0] sm:$0xff]
          %v3685 = vld [vmem:[#allocation5 + $0x7b8] sm:$0xff]
          %v3686 = vld [vmem:[#allocation5 + $0x7c0] sm:$0xff]
          %v3687 = vld [vmem:[#allocation5 + $0x7c8] sm:$0xff]
          %v3688 = vld [vmem:[#allocation5 + $0x7d0] sm:$0xff]
          %v3689 = vld [vmem:[#allocation5 + $0x7d8] sm:$0xff]
          %v3690 = vld [vmem:[#allocation5 + $0x7e0] sm:$0xff]
          %v3691 = vld [vmem:[#allocation5 + $0x7e8] sm:$0xff]
          %v3692 = vld [vmem:[#allocation5 + $0x7f0] sm:$0xff]
          %v3693 = vld [vmem:[#allocation5 + $0x7f8] sm:$0xff]
          %v3694 = vld [vmem:[%s8] sm:$0xf]
          %v3951 = vunpack.c.l.b16 %v3438
          %v3952 = vunpack.c.h.b16 %v3438
          %v3953 = vunpack.c.l.b16 %v3439
          %v3954 = vunpack.c.h.b16 %v3439
          %v3955 = vunpack.c.l.b16 %v3440
          %v3956 = vunpack.c.h.b16 %v3440
          %v3957 = vunpack.c.l.b16 %v3441
          %v3958 = vunpack.c.h.b16 %v3441
          %v3959 = vunpack.c.l.b16 %v3442
          %v3960 = vunpack.c.h.b16 %v3442
          %v3961 = vunpack.c.l.b16 %v3443
          %v3962 = vunpack.c.h.b16 %v3443
          %v3963 = vunpack.c.l.b16 %v3444
          %v3964 = vunpack.c.h.b16 %v3444
          %v3965 = vunpack.c.l.b16 %v3445
          %v3966 = vunpack.c.h.b16 %v3445
          %v3967 = vunpack.c.l.b16 %v3446
          %v3968 = vunpack.c.h.b16 %v3446
          %v3969 = vunpack.c.l.b16 %v3447
          %v3970 = vunpack.c.h.b16 %v3447
          %v3971 = vunpack.c.l.b16 %v3448
          %v3972 = vunpack.c.h.b16 %v3448
          %v3973 = vunpack.c.l.b16 %v3449
          %v3974 = vunpack.c.h.b16 %v3449
          %v3975 = vunpack.c.l.b16 %v3450
          %v3976 = vunpack.c.h.b16 %v3450
          %v3977 = vunpack.c.l.b16 %v3451
          %v3978 = vunpack.c.h.b16 %v3451
          %v3979 = vunpack.c.l.b16 %v3452
          %v3980 = vunpack.c.h.b16 %v3452
          %v3981 = vunpack.c.l.b16 %v3453
          %v3982 = vunpack.c.h.b16 %v3453
          %v3983 = vunpack.c.l.b16 %v3454
          %v3984 = vunpack.c.h.b16 %v3454
          %v3985 = vunpack.c.l.b16 %v3455
          %v3986 = vunpack.c.h.b16 %v3455
          %v3987 = vunpack.c.l.b16 %v3456
          %v3988 = vunpack.c.h.b16 %v3456
          %v3989 = vunpack.c.l.b16 %v3457
          %v3990 = vunpack.c.h.b16 %v3457
          %v3991 = vunpack.c.l.b16 %v3458
          %v3992 = vunpack.c.h.b16 %v3458
          %v3993 = vunpack.c.l.b16 %v3459
          %v3994 = vunpack.c.h.b16 %v3459
          %v3995 = vunpack.c.l.b16 %v3460
          %v3996 = vunpack.c.h.b16 %v3460
          %v3997 = vunpack.c.l.b16 %v3461
          %v3998 = vunpack.c.h.b16 %v3461
          %v3999 = vunpack.c.l.b16 %v3462
          %v4000 = vunpack.c.h.b16 %v3462
          %v4001 = vunpack.c.l.b16 %v3463
          %v4002 = vunpack.c.h.b16 %v3463
          %v4003 = vunpack.c.l.b16 %v3464
          %v4004 = vunpack.c.h.b16 %v3464
          %v4005 = vunpack.c.l.b16 %v3465
          %v4006 = vunpack.c.h.b16 %v3465
          %v4007 = vunpack.c.l.b16 %v3466
          %v4008 = vunpack.c.h.b16 %v3466
          %v4009 = vunpack.c.l.b16 %v3467
          %v4010 = vunpack.c.h.b16 %v3467
          %v4011 = vunpack.c.l.b16 %v3468
          %v4012 = vunpack.c.h.b16 %v3468
          %v4013 = vunpack.c.l.b16 %v3469
          %v4014 = vunpack.c.h.b16 %v3469
          %v4015 = vunpack.c.l.b16 %v3470
          %v4016 = vunpack.c.h.b16 %v3470
          %v4017 = vunpack.c.l.b16 %v3471
          %v4018 = vunpack.c.h.b16 %v3471
          %v4019 = vunpack.c.l.b16 %v3472
          %v4020 = vunpack.c.h.b16 %v3472
          %v4021 = vunpack.c.l.b16 %v3473
          %v4022 = vunpack.c.h.b16 %v3473
          %v4023 = vunpack.c.l.b16 %v3474
          %v4024 = vunpack.c.h.b16 %v3474
          %v4025 = vunpack.c.l.b16 %v3475
          %v4026 = vunpack.c.h.b16 %v3475
          %v4027 = vunpack.c.l.b16 %v3476
          %v4028 = vunpack.c.h.b16 %v3476
          %v4029 = vunpack.c.l.b16 %v3477
          %v4030 = vunpack.c.h.b16 %v3477
          %v4031 = vunpack.c.l.b16 %v3478
          %v4032 = vunpack.c.h.b16 %v3478
          %v4033 = vunpack.c.l.b16 %v3479
          %v4034 = vunpack.c.h.b16 %v3479
          %v4035 = vunpack.c.l.b16 %v3480
          %v4036 = vunpack.c.h.b16 %v3480
          %v4037 = vunpack.c.l.b16 %v3481
          %v4038 = vunpack.c.h.b16 %v3481
          %v4039 = vunpack.c.l.b16 %v3482
          %v4040 = vunpack.c.h.b16 %v3482
          %v4041 = vunpack.c.l.b16 %v3483
          %v4042 = vunpack.c.h.b16 %v3483
          %v4043 = vunpack.c.l.b16 %v3484
          %v4044 = vunpack.c.h.b16 %v3484
          %v4045 = vunpack.c.l.b16 %v3485
          %v4046 = vunpack.c.h.b16 %v3485
          %v4047 = vunpack.c.l.b16 %v3486
          %v4048 = vunpack.c.h.b16 %v3486
          %v4049 = vunpack.c.l.b16 %v3487
          %v4050 = vunpack.c.h.b16 %v3487
          %v4051 = vunpack.c.l.b16 %v3488
          %v4052 = vunpack.c.h.b16 %v3488
          %v4053 = vunpack.c.l.b16 %v3489
          %v4054 = vunpack.c.h.b16 %v3489
          %v4055 = vunpack.c.l.b16 %v3490
          %v4056 = vunpack.c.h.b16 %v3490
          %v4057 = vunpack.c.l.b16 %v3491
          %v4058 = vunpack.c.h.b16 %v3491
          %v4059 = vunpack.c.l.b16 %v3492
          %v4060 = vunpack.c.h.b16 %v3492
          %v4061 = vunpack.c.l.b16 %v3493
          %v4062 = vunpack.c.h.b16 %v3493
          %v4063 = vunpack.c.l.b16 %v3494
          %v4064 = vunpack.c.h.b16 %v3494
          %v4065 = vunpack.c.l.b16 %v3495
          %v4066 = vunpack.c.h.b16 %v3495
          %v4067 = vunpack.c.l.b16 %v3496
          %v4068 = vunpack.c.h.b16 %v3496
          %v4069 = vunpack.c.l.b16 %v3497
          %v4070 = vunpack.c.h.b16 %v3497
          %v4071 = vunpack.c.l.b16 %v3498
          %v4072 = vunpack.c.h.b16 %v3498
          %v4073 = vunpack.c.l.b16 %v3499
          %v4074 = vunpack.c.h.b16 %v3499
          %v4075 = vunpack.c.l.b16 %v3500
          %v4076 = vunpack.c.h.b16 %v3500
          %v4077 = vunpack.c.l.b16 %v3501
          %v4078 = vunpack.c.h.b16 %v3501
          %v4079 = vunpack.c.l.b16 %v3502
          %v4080 = vunpack.c.h.b16 %v3502
          %v4081 = vunpack.c.l.b16 %v3503
          %v4082 = vunpack.c.h.b16 %v3503
          %v4083 = vunpack.c.l.b16 %v3504
          %v4084 = vunpack.c.h.b16 %v3504
          %v4085 = vunpack.c.l.b16 %v3505
          %v4086 = vunpack.c.h.b16 %v3505
          %v4087 = vunpack.c.l.b16 %v3506
          %v4088 = vunpack.c.h.b16 %v3506
          %v4089 = vunpack.c.l.b16 %v3507
          %v4090 = vunpack.c.h.b16 %v3507
          %v4091 = vunpack.c.l.b16 %v3508
          %v4092 = vunpack.c.h.b16 %v3508
          %v4093 = vunpack.c.l.b16 %v3509
          %v4094 = vunpack.c.h.b16 %v3509
          %v4095 = vunpack.c.l.b16 %v3510
          %v4096 = vunpack.c.h.b16 %v3510
          %v4097 = vunpack.c.l.b16 %v3511
          %v4098 = vunpack.c.h.b16 %v3511
          %v4099 = vunpack.c.l.b16 %v3512
          %v4100 = vunpack.c.h.b16 %v3512
          %v4101 = vunpack.c.l.b16 %v3513
          %v4102 = vunpack.c.h.b16 %v3513
          %v4103 = vunpack.c.l.b16 %v3514
          %v4104 = vunpack.c.h.b16 %v3514
          %v4105 = vunpack.c.l.b16 %v3515
          %v4106 = vunpack.c.h.b16 %v3515
          %v4107 = vunpack.c.l.b16 %v3516
          %v4108 = vunpack.c.h.b16 %v3516
          %v4109 = vunpack.c.l.b16 %v3517
          %v4110 = vunpack.c.h.b16 %v3517
          %v4111 = vunpack.c.l.b16 %v3518
          %v4112 = vunpack.c.h.b16 %v3518
          %v4113 = vunpack.c.l.b16 %v3519
          %v4114 = vunpack.c.h.b16 %v3519
          %v4115 = vunpack.c.l.b16 %v3520
          %v4116 = vunpack.c.h.b16 %v3520
          %v4117 = vunpack.c.l.b16 %v3521
          %v4118 = vunpack.c.h.b16 %v3521
          %v4119 = vunpack.c.l.b16 %v3522
          %v4120 = vunpack.c.h.b16 %v3522
          %v4121 = vunpack.c.l.b16 %v3523
          %v4122 = vunpack.c.h.b16 %v3523
          %v4123 = vunpack.c.l.b16 %v3524
          %v4124 = vunpack.c.h.b16 %v3524
          %v4125 = vunpack.c.l.b16 %v3525
          %v4126 = vunpack.c.h.b16 %v3525
          %v4127 = vunpack.c.l.b16 %v3526
          %v4128 = vunpack.c.h.b16 %v3526
          %v4129 = vunpack.c.l.b16 %v3527
          %v4130 = vunpack.c.h.b16 %v3527
          %v4131 = vunpack.c.l.b16 %v3528
          %v4132 = vunpack.c.h.b16 %v3528
          %v4133 = vunpack.c.l.b16 %v3529
          %v4134 = vunpack.c.h.b16 %v3529
          %v4135 = vunpack.c.l.b16 %v3530
          %v4136 = vunpack.c.h.b16 %v3530
          %v4137 = vunpack.c.l.b16 %v3531
          %v4138 = vunpack.c.h.b16 %v3531
          %v4139 = vunpack.c.l.b16 %v3532
          %v4140 = vunpack.c.h.b16 %v3532
          %v4141 = vunpack.c.l.b16 %v3533
          %v4142 = vunpack.c.h.b16 %v3533
          %v4143 = vunpack.c.l.b16 %v3534
          %v4144 = vunpack.c.h.b16 %v3534
          %v4145 = vunpack.c.l.b16 %v3535
          %v4146 = vunpack.c.h.b16 %v3535
          %v4147 = vunpack.c.l.b16 %v3536
          %v4148 = vunpack.c.h.b16 %v3536
          %v4149 = vunpack.c.l.b16 %v3537
          %v4150 = vunpack.c.h.b16 %v3537
          %v4151 = vunpack.c.l.b16 %v3538
          %v4152 = vunpack.c.h.b16 %v3538
          %v4153 = vunpack.c.l.b16 %v3539
          %v4154 = vunpack.c.h.b16 %v3539
          %v4155 = vunpack.c.l.b16 %v3540
          %v4156 = vunpack.c.h.b16 %v3540
          %v4157 = vunpack.c.l.b16 %v3541
          %v4158 = vunpack.c.h.b16 %v3541
          %v4159 = vunpack.c.l.b16 %v3542
          %v4160 = vunpack.c.h.b16 %v3542
          %v4161 = vunpack.c.l.b16 %v3543
          %v4162 = vunpack.c.h.b16 %v3543
          %v4163 = vunpack.c.l.b16 %v3544
          %v4164 = vunpack.c.h.b16 %v3544
          %v4165 = vunpack.c.l.b16 %v3545
          %v4166 = vunpack.c.h.b16 %v3545
          %v4167 = vunpack.c.l.b16 %v3546
          %v4168 = vunpack.c.h.b16 %v3546
          %v4169 = vunpack.c.l.b16 %v3547
          %v4170 = vunpack.c.h.b16 %v3547
          %v4171 = vunpack.c.l.b16 %v3548
          %v4172 = vunpack.c.h.b16 %v3548
          %v4173 = vunpack.c.l.b16 %v3549
          %v4174 = vunpack.c.h.b16 %v3549
          %v4175 = vunpack.c.l.b16 %v3550
          %v4176 = vunpack.c.h.b16 %v3550
          %v4177 = vunpack.c.l.b16 %v3551
          %v4178 = vunpack.c.h.b16 %v3551
          %v4179 = vunpack.c.l.b16 %v3552
          %v4180 = vunpack.c.h.b16 %v3552
          %v4181 = vunpack.c.l.b16 %v3553
          %v4182 = vunpack.c.h.b16 %v3553
          %v4183 = vunpack.c.l.b16 %v3554
          %v4184 = vunpack.c.h.b16 %v3554
          %v4185 = vunpack.c.l.b16 %v3555
          %v4186 = vunpack.c.h.b16 %v3555
          %v4187 = vunpack.c.l.b16 %v3556
          %v4188 = vunpack.c.h.b16 %v3556
          %v4189 = vunpack.c.l.b16 %v3557
          %v4190 = vunpack.c.h.b16 %v3557
          %v4191 = vunpack.c.l.b16 %v3558
          %v4192 = vunpack.c.h.b16 %v3558
          %v4193 = vunpack.c.l.b16 %v3559
          %v4194 = vunpack.c.h.b16 %v3559
          %v4195 = vunpack.c.l.b16 %v3560
          %v4196 = vunpack.c.h.b16 %v3560
          %v4197 = vunpack.c.l.b16 %v3561
          %v4198 = vunpack.c.h.b16 %v3561
          %v4199 = vunpack.c.l.b16 %v3562
          %v4200 = vunpack.c.h.b16 %v3562
          %v4201 = vunpack.c.l.b16 %v3563
          %v4202 = vunpack.c.h.b16 %v3563
          %v4203 = vunpack.c.l.b16 %v3564
          %v4204 = vunpack.c.h.b16 %v3564
          %v4205 = vunpack.c.l.b16 %v3565
          %v4206 = vunpack.c.h.b16 %v3565
          %v4207 = vunpack.c.l.b16 %v3566
          %v4208 = vunpack.c.h.b16 %v3566
          %v4209 = vunpack.c.l.b16 %v3567
          %v4210 = vunpack.c.h.b16 %v3567
          %v4211 = vunpack.c.l.b16 %v3568
          %v4212 = vunpack.c.h.b16 %v3568
          %v4213 = vunpack.c.l.b16 %v3569
          %v4214 = vunpack.c.h.b16 %v3569
          %v4215 = vunpack.c.l.b16 %v3570
          %v4216 = vunpack.c.h.b16 %v3570
          %v4217 = vunpack.c.l.b16 %v3571
          %v4218 = vunpack.c.h.b16 %v3571
          %v4219 = vunpack.c.l.b16 %v3572
          %v4220 = vunpack.c.h.b16 %v3572
          %v4221 = vunpack.c.l.b16 %v3573
          %v4222 = vunpack.c.h.b16 %v3573
          %v4223 = vunpack.c.l.b16 %v3574
          %v4224 = vunpack.c.h.b16 %v3574
          %v4225 = vunpack.c.l.b16 %v3575
          %v4226 = vunpack.c.h.b16 %v3575
          %v4227 = vunpack.c.l.b16 %v3576
          %v4228 = vunpack.c.h.b16 %v3576
          %v4229 = vunpack.c.l.b16 %v3577
          %v4230 = vunpack.c.h.b16 %v3577
          %v4231 = vunpack.c.l.b16 %v3578
          %v4232 = vunpack.c.h.b16 %v3578
          %v4233 = vunpack.c.l.b16 %v3579
          %v4234 = vunpack.c.h.b16 %v3579
          %v4235 = vunpack.c.l.b16 %v3580
          %v4236 = vunpack.c.h.b16 %v3580
          %v4237 = vunpack.c.l.b16 %v3581
          %v4238 = vunpack.c.h.b16 %v3581
          %v4239 = vunpack.c.l.b16 %v3582
          %v4240 = vunpack.c.h.b16 %v3582
          %v4241 = vunpack.c.l.b16 %v3583
          %v4242 = vunpack.c.h.b16 %v3583
          %v4243 = vunpack.c.l.b16 %v3584
          %v4244 = vunpack.c.h.b16 %v3584
          %v4245 = vunpack.c.l.b16 %v3585
          %v4246 = vunpack.c.h.b16 %v3585
          %v4247 = vunpack.c.l.b16 %v3586
          %v4248 = vunpack.c.h.b16 %v3586
          %v4249 = vunpack.c.l.b16 %v3587
          %v4250 = vunpack.c.h.b16 %v3587
          %v4251 = vunpack.c.l.b16 %v3588
          %v4252 = vunpack.c.h.b16 %v3588
          %v4253 = vunpack.c.l.b16 %v3589
          %v4254 = vunpack.c.h.b16 %v3589
          %v4255 = vunpack.c.l.b16 %v3590
          %v4256 = vunpack.c.h.b16 %v3590
          %v4257 = vunpack.c.l.b16 %v3591
          %v4258 = vunpack.c.h.b16 %v3591
          %v4259 = vunpack.c.l.b16 %v3592
          %v4260 = vunpack.c.h.b16 %v3592
          %v4261 = vunpack.c.l.b16 %v3593
          %v4262 = vunpack.c.h.b16 %v3593
          %v4263 = vunpack.c.l.b16 %v3594
          %v4264 = vunpack.c.h.b16 %v3594
          %v4265 = vunpack.c.l.b16 %v3595
          %v4266 = vunpack.c.h.b16 %v3595
          %v4267 = vunpack.c.l.b16 %v3596
          %v4268 = vunpack.c.h.b16 %v3596
          %v4269 = vunpack.c.l.b16 %v3597
          %v4270 = vunpack.c.h.b16 %v3597
          %v4271 = vunpack.c.l.b16 %v3598
          %v4272 = vunpack.c.h.b16 %v3598
          %v4273 = vunpack.c.l.b16 %v3599
          %v4274 = vunpack.c.h.b16 %v3599
          %v4275 = vunpack.c.l.b16 %v3600
          %v4276 = vunpack.c.h.b16 %v3600
          %v4277 = vunpack.c.l.b16 %v3601
          %v4278 = vunpack.c.h.b16 %v3601
          %v4279 = vunpack.c.l.b16 %v3602
          %v4280 = vunpack.c.h.b16 %v3602
          %v4281 = vunpack.c.l.b16 %v3603
          %v4282 = vunpack.c.h.b16 %v3603
          %v4283 = vunpack.c.l.b16 %v3604
          %v4284 = vunpack.c.h.b16 %v3604
          %v4285 = vunpack.c.l.b16 %v3605
          %v4286 = vunpack.c.h.b16 %v3605
          %v4287 = vunpack.c.l.b16 %v3606
          %v4288 = vunpack.c.h.b16 %v3606
          %v4289 = vunpack.c.l.b16 %v3607
          %v4290 = vunpack.c.h.b16 %v3607
          %v4291 = vunpack.c.l.b16 %v3608
          %v4292 = vunpack.c.h.b16 %v3608
          %v4293 = vunpack.c.l.b16 %v3609
          %v4294 = vunpack.c.h.b16 %v3609
          %v4295 = vunpack.c.l.b16 %v3610
          %v4296 = vunpack.c.h.b16 %v3610
          %v4297 = vunpack.c.l.b16 %v3611
          %v4298 = vunpack.c.h.b16 %v3611
          %v4299 = vunpack.c.l.b16 %v3612
          %v4300 = vunpack.c.h.b16 %v3612
          %v4301 = vunpack.c.l.b16 %v3613
          %v4302 = vunpack.c.h.b16 %v3613
          %v4303 = vunpack.c.l.b16 %v3614
          %v4304 = vunpack.c.h.b16 %v3614
          %v4305 = vunpack.c.l.b16 %v3615
          %v4306 = vunpack.c.h.b16 %v3615
          %v4307 = vunpack.c.l.b16 %v3616
          %v4308 = vunpack.c.h.b16 %v3616
          %v4309 = vunpack.c.l.b16 %v3617
          %v4310 = vunpack.c.h.b16 %v3617
          %v4311 = vunpack.c.l.b16 %v3618
          %v4312 = vunpack.c.h.b16 %v3618
          %v4313 = vunpack.c.l.b16 %v3619
          %v4314 = vunpack.c.h.b16 %v3619
          %v4315 = vunpack.c.l.b16 %v3620
          %v4316 = vunpack.c.h.b16 %v3620
          %v4317 = vunpack.c.l.b16 %v3621
          %v4318 = vunpack.c.h.b16 %v3621
          %v4319 = vunpack.c.l.b16 %v3622
          %v4320 = vunpack.c.h.b16 %v3622
          %v4321 = vunpack.c.l.b16 %v3623
          %v4322 = vunpack.c.h.b16 %v3623
          %v4323 = vunpack.c.l.b16 %v3624
          %v4324 = vunpack.c.h.b16 %v3624
          %v4325 = vunpack.c.l.b16 %v3625
          %v4326 = vunpack.c.h.b16 %v3625
          %v4327 = vunpack.c.l.b16 %v3626
          %v4328 = vunpack.c.h.b16 %v3626
          %v4329 = vunpack.c.l.b16 %v3627
          %v4330 = vunpack.c.h.b16 %v3627
          %v4331 = vunpack.c.l.b16 %v3628
          %v4332 = vunpack.c.h.b16 %v3628
          %v4333 = vunpack.c.l.b16 %v3629
          %v4334 = vunpack.c.h.b16 %v3629
          %v4335 = vunpack.c.l.b16 %v3630
          %v4336 = vunpack.c.h.b16 %v3630
          %v4337 = vunpack.c.l.b16 %v3631
          %v4338 = vunpack.c.h.b16 %v3631
          %v4339 = vunpack.c.l.b16 %v3632
          %v4340 = vunpack.c.h.b16 %v3632
          %v4341 = vunpack.c.l.b16 %v3633
          %v4342 = vunpack.c.h.b16 %v3633
          %v4343 = vunpack.c.l.b16 %v3634
          %v4344 = vunpack.c.h.b16 %v3634
          %v4345 = vunpack.c.l.b16 %v3635
          %v4346 = vunpack.c.h.b16 %v3635
          %v4347 = vunpack.c.l.b16 %v3636
          %v4348 = vunpack.c.h.b16 %v3636
          %v4349 = vunpack.c.l.b16 %v3637
          %v4350 = vunpack.c.h.b16 %v3637
          %v4351 = vunpack.c.l.b16 %v3638
          %v4352 = vunpack.c.h.b16 %v3638
          %v4353 = vunpack.c.l.b16 %v3639
          %v4354 = vunpack.c.h.b16 %v3639
          %v4355 = vunpack.c.l.b16 %v3640
          %v4356 = vunpack.c.h.b16 %v3640
          %v4357 = vunpack.c.l.b16 %v3641
          %v4358 = vunpack.c.h.b16 %v3641
          %v4359 = vunpack.c.l.b16 %v3642
          %v4360 = vunpack.c.h.b16 %v3642
          %v4361 = vunpack.c.l.b16 %v3643
          %v4362 = vunpack.c.h.b16 %v3643
          %v4363 = vunpack.c.l.b16 %v3644
          %v4364 = vunpack.c.h.b16 %v3644
          %v4365 = vunpack.c.l.b16 %v3645
          %v4366 = vunpack.c.h.b16 %v3645
          %v4367 = vunpack.c.l.b16 %v3646
          %v4368 = vunpack.c.h.b16 %v3646
          %v4369 = vunpack.c.l.b16 %v3647
          %v4370 = vunpack.c.h.b16 %v3647
          %v4371 = vunpack.c.l.b16 %v3648
          %v4372 = vunpack.c.h.b16 %v3648
          %v4373 = vunpack.c.l.b16 %v3649
          %v4374 = vunpack.c.h.b16 %v3649
          %v4375 = vunpack.c.l.b16 %v3650
          %v4376 = vunpack.c.h.b16 %v3650
          %v4377 = vunpack.c.l.b16 %v3651
          %v4378 = vunpack.c.h.b16 %v3651
          %v4379 = vunpack.c.l.b16 %v3652
          %v4380 = vunpack.c.h.b16 %v3652
          %v4381 = vunpack.c.l.b16 %v3653
          %v4382 = vunpack.c.h.b16 %v3653
          %v4383 = vunpack.c.l.b16 %v3654
          %v4384 = vunpack.c.h.b16 %v3654
          %v4385 = vunpack.c.l.b16 %v3655
          %v4386 = vunpack.c.h.b16 %v3655
          %v4387 = vunpack.c.l.b16 %v3656
          %v4388 = vunpack.c.h.b16 %v3656
          %v4389 = vunpack.c.l.b16 %v3657
          %v4390 = vunpack.c.h.b16 %v3657
          %v4391 = vunpack.c.l.b16 %v3658
          %v4392 = vunpack.c.h.b16 %v3658
          %v4393 = vunpack.c.l.b16 %v3659
          %v4394 = vunpack.c.h.b16 %v3659
          %v4395 = vunpack.c.l.b16 %v3660
          %v4396 = vunpack.c.h.b16 %v3660
          %v4397 = vunpack.c.l.b16 %v3661
          %v4398 = vunpack.c.h.b16 %v3661
          %v4399 = vunpack.c.l.b16 %v3662
          %v4400 = vunpack.c.h.b16 %v3662
          %v4401 = vunpack.c.l.b16 %v3663
          %v4402 = vunpack.c.h.b16 %v3663
          %v4403 = vunpack.c.l.b16 %v3664
          %v4404 = vunpack.c.h.b16 %v3664
          %v4405 = vunpack.c.l.b16 %v3665
          %v4406 = vunpack.c.h.b16 %v3665
          %v4407 = vunpack.c.l.b16 %v3666
          %v4408 = vunpack.c.h.b16 %v3666
          %v4409 = vunpack.c.l.b16 %v3667
          %v4410 = vunpack.c.h.b16 %v3667
          %v4411 = vunpack.c.l.b16 %v3668
          %v4412 = vunpack.c.h.b16 %v3668
          %v4413 = vunpack.c.l.b16 %v3669
          %v4414 = vunpack.c.h.b16 %v3669
          %v4415 = vunpack.c.l.b16 %v3670
          %v4416 = vunpack.c.h.b16 %v3670
          %v4417 = vunpack.c.l.b16 %v3671
          %v4418 = vunpack.c.h.b16 %v3671
          %v4419 = vunpack.c.l.b16 %v3672
          %v4420 = vunpack.c.h.b16 %v3672
          %v4421 = vunpack.c.l.b16 %v3673
          %v4422 = vunpack.c.h.b16 %v3673
          %v4423 = vunpack.c.l.b16 %v3674
          %v4424 = vunpack.c.h.b16 %v3674
          %v4425 = vunpack.c.l.b16 %v3675
          %v4426 = vunpack.c.h.b16 %v3675
          %v4427 = vunpack.c.l.b16 %v3676
          %v4428 = vunpack.c.h.b16 %v3676
          %v4429 = vunpack.c.l.b16 %v3677
          %v4430 = vunpack.c.h.b16 %v3677
          %v4431 = vunpack.c.l.b16 %v3678
          %v4432 = vunpack.c.h.b16 %v3678
          %v4433 = vunpack.c.l.b16 %v3679
          %v4434 = vunpack.c.h.b16 %v3679
          %v4435 = vunpack.c.l.b16 %v3680
          %v4436 = vunpack.c.h.b16 %v3680
          %v4437 = vunpack.c.l.b16 %v3681
          %v4438 = vunpack.c.h.b16 %v3681
          %v4439 = vunpack.c.l.b16 %v3682
          %v4440 = vunpack.c.h.b16 %v3682
          %v4441 = vunpack.c.l.b16 %v3683
          %v4442 = vunpack.c.h.b16 %v3683
          %v4443 = vunpack.c.l.b16 %v3684
          %v4444 = vunpack.c.h.b16 %v3684
          %v4445 = vunpack.c.l.b16 %v3685
          %v4446 = vunpack.c.h.b16 %v3685
          %v4447 = vunpack.c.l.b16 %v3686
          %v4448 = vunpack.c.h.b16 %v3686
          %v4449 = vunpack.c.l.b16 %v3687
          %v4450 = vunpack.c.h.b16 %v3687
          %v4451 = vunpack.c.l.b16 %v3688
          %v4452 = vunpack.c.h.b16 %v3688
          %v4453 = vunpack.c.l.b16 %v3689
          %v4454 = vunpack.c.h.b16 %v3689
          %v4455 = vunpack.c.l.b16 %v3690
          %v4456 = vunpack.c.h.b16 %v3690
          %v4457 = vunpack.c.l.b16 %v3691
          %v4458 = vunpack.c.h.b16 %v3691
          %v4459 = vunpack.c.l.b16 %v3692
          %v4460 = vunpack.c.h.b16 %v3692
          %v4461 = vunpack.c.l.b16 %v3693
          %v4462 = vunpack.c.h.b16 %v3693
          %v4463 = vpack.c.b16 %v3955, %v3951
          %v4464 = vpack.c.b16 %v3956, %v3952
          %v4465 = vpack.c.b16 %v3957, %v3953
          %v4466 = vpack.c.b16 %v3958, %v3954
          %v4467 = vpack.c.b16 %v3963, %v3959
          %v4468 = vpack.c.b16 %v3964, %v3960
          %v4469 = vpack.c.b16 %v3965, %v3961
          %v4470 = vpack.c.b16 %v3966, %v3962
          %v4471 = vpack.c.b16 %v3971, %v3967
          %v4472 = vpack.c.b16 %v3972, %v3968
          %v4473 = vpack.c.b16 %v3973, %v3969
          %v4474 = vpack.c.b16 %v3974, %v3970
          %v4475 = vpack.c.b16 %v3979, %v3975
          %v4476 = vpack.c.b16 %v3980, %v3976
          %v4477 = vpack.c.b16 %v3981, %v3977
          %v4478 = vpack.c.b16 %v3982, %v3978
          %v4479 = vpack.c.b16 %v3987, %v3983
          %v4480 = vpack.c.b16 %v3988, %v3984
          %v4481 = vpack.c.b16 %v3989, %v3985
          %v4482 = vpack.c.b16 %v3990, %v3986
          %v4483 = vpack.c.b16 %v3995, %v3991
          %v4484 = vpack.c.b16 %v3996, %v3992
          %v4485 = vpack.c.b16 %v3997, %v3993
          %v4486 = vpack.c.b16 %v3998, %v3994
          %v4487 = vpack.c.b16 %v4003, %v3999
          %v4488 = vpack.c.b16 %v4004, %v4000
          %v4489 = vpack.c.b16 %v4005, %v4001
          %v4490 = vpack.c.b16 %v4006, %v4002
          %v4491 = vpack.c.b16 %v4011, %v4007
          %v4492 = vpack.c.b16 %v4012, %v4008
          %v4493 = vpack.c.b16 %v4013, %v4009
          %v4494 = vpack.c.b16 %v4014, %v4010
          %v4495 = vpack.c.b16 %v4019, %v4015
          %v4496 = vpack.c.b16 %v4020, %v4016
          %v4497 = vpack.c.b16 %v4021, %v4017
          %v4498 = vpack.c.b16 %v4022, %v4018
          %v4499 = vpack.c.b16 %v4027, %v4023
          %v4500 = vpack.c.b16 %v4028, %v4024
          %v4501 = vpack.c.b16 %v4029, %v4025
          %v4502 = vpack.c.b16 %v4030, %v4026
          %v4503 = vpack.c.b16 %v4035, %v4031
          %v4504 = vpack.c.b16 %v4036, %v4032
          %v4505 = vpack.c.b16 %v4037, %v4033
          %v4506 = vpack.c.b16 %v4038, %v4034
          %v4507 = vpack.c.b16 %v4043, %v4039
          %v4508 = vpack.c.b16 %v4044, %v4040
          %v4509 = vpack.c.b16 %v4045, %v4041
          %v4510 = vpack.c.b16 %v4046, %v4042
          %v4511 = vpack.c.b16 %v4051, %v4047
          %v4512 = vpack.c.b16 %v4052, %v4048
          %v4513 = vpack.c.b16 %v4053, %v4049
          %v4514 = vpack.c.b16 %v4054, %v4050
          %v4515 = vpack.c.b16 %v4059, %v4055
          %v4516 = vpack.c.b16 %v4060, %v4056
          %v4517 = vpack.c.b16 %v4061, %v4057
          %v4518 = vpack.c.b16 %v4062, %v4058
          %v4519 = vpack.c.b16 %v4067, %v4063
          %v4520 = vpack.c.b16 %v4068, %v4064
          %v4521 = vpack.c.b16 %v4069, %v4065
          %v4522 = vpack.c.b16 %v4070, %v4066
          %v4523 = vpack.c.b16 %v4075, %v4071
          %v4524 = vpack.c.b16 %v4076, %v4072
          %v4525 = vpack.c.b16 %v4077, %v4073
          %v4526 = vpack.c.b16 %v4078, %v4074
          %v4527 = vpack.c.b16 %v4083, %v4079
          %v4528 = vpack.c.b16 %v4084, %v4080
          %v4529 = vpack.c.b16 %v4085, %v4081
          %v4530 = vpack.c.b16 %v4086, %v4082
          %v4531 = vpack.c.b16 %v4091, %v4087
          %v4532 = vpack.c.b16 %v4092, %v4088
          %v4533 = vpack.c.b16 %v4093, %v4089
          %v4534 = vpack.c.b16 %v4094, %v4090
          %v4535 = vpack.c.b16 %v4099, %v4095
          %v4536 = vpack.c.b16 %v4100, %v4096
          %v4537 = vpack.c.b16 %v4101, %v4097
          %v4538 = vpack.c.b16 %v4102, %v4098
          %v4539 = vpack.c.b16 %v4107, %v4103
          %v4540 = vpack.c.b16 %v4108, %v4104
          %v4541 = vpack.c.b16 %v4109, %v4105
          %v4542 = vpack.c.b16 %v4110, %v4106
          %v4543 = vpack.c.b16 %v4115, %v4111
          %v4544 = vpack.c.b16 %v4116, %v4112
          %v4545 = vpack.c.b16 %v4117, %v4113
          %v4546 = vpack.c.b16 %v4118, %v4114
          %v4547 = vpack.c.b16 %v4123, %v4119
          %v4548 = vpack.c.b16 %v4124, %v4120
          %v4549 = vpack.c.b16 %v4125, %v4121
          %v4550 = vpack.c.b16 %v4126, %v4122
          %v4551 = vpack.c.b16 %v4131, %v4127
          %v4552 = vpack.c.b16 %v4132, %v4128
          %v4553 = vpack.c.b16 %v4133, %v4129
          %v4554 = vpack.c.b16 %v4134, %v4130
          %v4555 = vpack.c.b16 %v4139, %v4135
          %v4556 = vpack.c.b16 %v4140, %v4136
          %v4557 = vpack.c.b16 %v4141, %v4137
          %v4558 = vpack.c.b16 %v4142, %v4138
          %v4559 = vpack.c.b16 %v4147, %v4143
          %v4560 = vpack.c.b16 %v4148, %v4144
          %v4561 = vpack.c.b16 %v4149, %v4145
          %v4562 = vpack.c.b16 %v4150, %v4146
          %v4563 = vpack.c.b16 %v4155, %v4151
          %v4564 = vpack.c.b16 %v4156, %v4152
          %v4565 = vpack.c.b16 %v4157, %v4153
          %v4566 = vpack.c.b16 %v4158, %v4154
          %v4567 = vpack.c.b16 %v4163, %v4159
          %v4568 = vpack.c.b16 %v4164, %v4160
          %v4569 = vpack.c.b16 %v4165, %v4161
          %v4570 = vpack.c.b16 %v4166, %v4162
          %v4571 = vpack.c.b16 %v4171, %v4167
          %v4572 = vpack.c.b16 %v4172, %v4168
          %v4573 = vpack.c.b16 %v4173, %v4169
          %v4574 = vpack.c.b16 %v4174, %v4170
          %v4575 = vpack.c.b16 %v4179, %v4175
          %v4576 = vpack.c.b16 %v4180, %v4176
          %v4577 = vpack.c.b16 %v4181, %v4177
          %v4578 = vpack.c.b16 %v4182, %v4178
          %v4579 = vpack.c.b16 %v4187, %v4183
          %v4580 = vpack.c.b16 %v4188, %v4184
          %v4581 = vpack.c.b16 %v4189, %v4185
          %v4582 = vpack.c.b16 %v4190, %v4186
          %v4583 = vpack.c.b16 %v4195, %v4191
          %v4584 = vpack.c.b16 %v4196, %v4192
          %v4585 = vpack.c.b16 %v4197, %v4193
          %v4586 = vpack.c.b16 %v4198, %v4194
          %v4587 = vpack.c.b16 %v4203, %v4199
          %v4588 = vpack.c.b16 %v4204, %v4200
          %v4589 = vpack.c.b16 %v4205, %v4201
          %v4590 = vpack.c.b16 %v4206, %v4202
          %v4591 = vpack.c.b16 %v4211, %v4207
          %v4592 = vpack.c.b16 %v4212, %v4208
          %v4593 = vpack.c.b16 %v4213, %v4209
          %v4594 = vpack.c.b16 %v4214, %v4210
          %v4595 = vpack.c.b16 %v4219, %v4215
          %v4596 = vpack.c.b16 %v4220, %v4216
          %v4597 = vpack.c.b16 %v4221, %v4217
          %v4598 = vpack.c.b16 %v4222, %v4218
          %v4599 = vpack.c.b16 %v4227, %v4223
          %v4600 = vpack.c.b16 %v4228, %v4224
          %v4601 = vpack.c.b16 %v4229, %v4225
          %v4602 = vpack.c.b16 %v4230, %v4226
          %v4603 = vpack.c.b16 %v4235, %v4231
          %v4604 = vpack.c.b16 %v4236, %v4232
          %v4605 = vpack.c.b16 %v4237, %v4233
          %v4606 = vpack.c.b16 %v4238, %v4234
          %v4607 = vpack.c.b16 %v4243, %v4239
          %v4608 = vpack.c.b16 %v4244, %v4240
          %v4609 = vpack.c.b16 %v4245, %v4241
          %v4610 = vpack.c.b16 %v4246, %v4242
          %v4611 = vpack.c.b16 %v4251, %v4247
          %v4612 = vpack.c.b16 %v4252, %v4248
          %v4613 = vpack.c.b16 %v4253, %v4249
          %v4614 = vpack.c.b16 %v4254, %v4250
          %v4615 = vpack.c.b16 %v4259, %v4255
          %v4616 = vpack.c.b16 %v4260, %v4256
          %v4617 = vpack.c.b16 %v4261, %v4257
          %v4618 = vpack.c.b16 %v4262, %v4258
          %v4619 = vpack.c.b16 %v4267, %v4263
          %v4620 = vpack.c.b16 %v4268, %v4264
          %v4621 = vpack.c.b16 %v4269, %v4265
          %v4622 = vpack.c.b16 %v4270, %v4266
          %v4623 = vpack.c.b16 %v4275, %v4271
          %v4624 = vpack.c.b16 %v4276, %v4272
          %v4625 = vpack.c.b16 %v4277, %v4273
          %v4626 = vpack.c.b16 %v4278, %v4274
          %v4627 = vpack.c.b16 %v4283, %v4279
          %v4628 = vpack.c.b16 %v4284, %v4280
          %v4629 = vpack.c.b16 %v4285, %v4281
          %v4630 = vpack.c.b16 %v4286, %v4282
          %v4631 = vpack.c.b16 %v4291, %v4287
          %v4632 = vpack.c.b16 %v4292, %v4288
          %v4633 = vpack.c.b16 %v4293, %v4289
          %v4634 = vpack.c.b16 %v4294, %v4290
          %v4635 = vpack.c.b16 %v4299, %v4295
          %v4636 = vpack.c.b16 %v4300, %v4296
          %v4637 = vpack.c.b16 %v4301, %v4297
          %v4638 = vpack.c.b16 %v4302, %v4298
          %v4639 = vpack.c.b16 %v4307, %v4303
          %v4640 = vpack.c.b16 %v4308, %v4304
          %v4641 = vpack.c.b16 %v4309, %v4305
          %v4642 = vpack.c.b16 %v4310, %v4306
          %v4643 = vpack.c.b16 %v4315, %v4311
          %v4644 = vpack.c.b16 %v4316, %v4312
          %v4645 = vpack.c.b16 %v4317, %v4313
          %v4646 = vpack.c.b16 %v4318, %v4314
          %v4647 = vpack.c.b16 %v4323, %v4319
          %v4648 = vpack.c.b16 %v4324, %v4320
          %v4649 = vpack.c.b16 %v4325, %v4321
          %v4650 = vpack.c.b16 %v4326, %v4322
          %v4651 = vpack.c.b16 %v4331, %v4327
          %v4652 = vpack.c.b16 %v4332, %v4328
          %v4653 = vpack.c.b16 %v4333, %v4329
          %v4654 = vpack.c.b16 %v4334, %v4330
          %v4655 = vpack.c.b16 %v4339, %v4335
          %v4656 = vpack.c.b16 %v4340, %v4336
          %v4657 = vpack.c.b16 %v4341, %v4337
          %v4658 = vpack.c.b16 %v4342, %v4338
          %v4659 = vpack.c.b16 %v4347, %v4343
          %v4660 = vpack.c.b16 %v4348, %v4344
          %v4661 = vpack.c.b16 %v4349, %v4345
          %v4662 = vpack.c.b16 %v4350, %v4346
          %v4663 = vpack.c.b16 %v4355, %v4351
          %v4664 = vpack.c.b16 %v4356, %v4352
          %v4665 = vpack.c.b16 %v4357, %v4353
          %v4666 = vpack.c.b16 %v4358, %v4354
          %v4667 = vpack.c.b16 %v4363, %v4359
          %v4668 = vpack.c.b16 %v4364, %v4360
          %v4669 = vpack.c.b16 %v4365, %v4361
          %v4670 = vpack.c.b16 %v4366, %v4362
          %v4671 = vpack.c.b16 %v4371, %v4367
          %v4672 = vpack.c.b16 %v4372, %v4368
          %v4673 = vpack.c.b16 %v4373, %v4369
          %v4674 = vpack.c.b16 %v4374, %v4370
          %v4675 = vpack.c.b16 %v4379, %v4375
          %v4676 = vpack.c.b16 %v4380, %v4376
          %v4677 = vpack.c.b16 %v4381, %v4377
          %v4678 = vpack.c.b16 %v4382, %v4378
          %v4679 = vpack.c.b16 %v4387, %v4383
          %v4680 = vpack.c.b16 %v4388, %v4384
          %v4681 = vpack.c.b16 %v4389, %v4385
          %v4682 = vpack.c.b16 %v4390, %v4386
          %v4683 = vpack.c.b16 %v4395, %v4391
          %v4684 = vpack.c.b16 %v4396, %v4392
          %v4685 = vpack.c.b16 %v4397, %v4393
          %v4686 = vpack.c.b16 %v4398, %v4394
          %v4687 = vpack.c.b16 %v4403, %v4399
          %v4688 = vpack.c.b16 %v4404, %v4400
          %v4689 = vpack.c.b16 %v4405, %v4401
          %v4690 = vpack.c.b16 %v4406, %v4402
          %v4691 = vpack.c.b16 %v4411, %v4407
          %v4692 = vpack.c.b16 %v4412, %v4408
          %v4693 = vpack.c.b16 %v4413, %v4409
          %v4694 = vpack.c.b16 %v4414, %v4410
          %v4695 = vpack.c.b16 %v4419, %v4415
          %v4696 = vpack.c.b16 %v4420, %v4416
          %v4697 = vpack.c.b16 %v4421, %v4417
          %v4698 = vpack.c.b16 %v4422, %v4418
          %v4699 = vpack.c.b16 %v4427, %v4423
          %v4700 = vpack.c.b16 %v4428, %v4424
          %v4701 = vpack.c.b16 %v4429, %v4425
          %v4702 = vpack.c.b16 %v4430, %v4426
          %v4703 = vpack.c.b16 %v4435, %v4431
          %v4704 = vpack.c.b16 %v4436, %v4432
          %v4705 = vpack.c.b16 %v4437, %v4433
          %v4706 = vpack.c.b16 %v4438, %v4434
          %v4707 = vpack.c.b16 %v4443, %v4439
          %v4708 = vpack.c.b16 %v4444, %v4440
          %v4709 = vpack.c.b16 %v4445, %v4441
          %v4710 = vpack.c.b16 %v4446, %v4442
          %v4711 = vpack.c.b16 %v4451, %v4447
          %v4712 = vpack.c.b16 %v4452, %v4448
          %v4713 = vpack.c.b16 %v4453, %v4449
          %v4714 = vpack.c.b16 %v4454, %v4450
          %v4715 = vpack.c.b16 %v4459, %v4455
          %v4716 = vpack.c.b16 %v4460, %v4456
          %v4717 = vpack.c.b16 %v4461, %v4457
          %v4718 = vpack.c.b16 %v4462, %v4458
          %v4976 = vlaneseq
          %v4977 = vshrl.u32 %v4976, 7
          %v4978 = vsub.s32 0, %v4977
          %v4979 = vrot.slane %v3694, %v4978
          %v4980 = vlaneseq
          %v4981 = vshrl.u32 %v4980, 7
          %v4982 = vsub.s32 1, %v4981
          %v4983 = vrot.slane %v3694, %v4982
          %v4984 = vlaneseq
          %v4985 = vshrl.u32 %v4984, 7
          %v4986 = vsub.s32 2, %v4985
          %v4987 = vrot.slane %v3694, %v4986
          %v4988 = vlaneseq
          %v4989 = vshrl.u32 %v4988, 7
          %v4990 = vsub.s32 3, %v4989
          %v4991 = vrot.slane %v3694, %v4990
          %4996 = vmatprep.subr.bf16.mxu0 %v4464
          %4997 = vmatpush1.bf16.msra.mxu0 %v4463
          %4998 = vmatprep.subr.bf16.mxu0 %v4468
          %4999 = vmatpush1.bf16.msra.mxu0 %v4467
          %5000 = vmatprep.subr.bf16.mxu0 %v4472
          %5001 = vmatpush1.bf16.msra.mxu0 %v4471
          %5002 = vmatprep.subr.bf16.mxu0 %v4476
          %5003 = vmatpush1.bf16.msra.mxu0 %v4475
          %5004 = vmatprep.subr.bf16.mxu0 %v4480
          %5005 = vmatpush1.bf16.msra.mxu0 %v4479
          %5006 = vmatprep.subr.bf16.mxu0 %v4484
          %5007 = vmatpush1.bf16.msra.mxu0 %v4483
          %5008 = vmatprep.subr.bf16.mxu0 %v4488
          %5009 = vmatpush1.bf16.msra.mxu0 %v4487
          %5010 = vmatprep.subr.bf16.mxu0 %v4492
          %5011 = vmatpush1.bf16.msra.mxu0 %v4491
          %5012 = vmatprep.subr.bf16.mxu0 %v4496
          %5013 = vmatpush1.bf16.msra.mxu0 %v4495
          %5014 = vmatprep.subr.bf16.mxu0 %v4500
          %5015 = vmatpush1.bf16.msra.mxu0 %v4499
          %5016 = vmatprep.subr.bf16.mxu0 %v4504
          %5017 = vmatpush1.bf16.msra.mxu0 %v4503
          %5018 = vmatprep.subr.bf16.mxu0 %v4508
          %5019 = vmatpush1.bf16.msra.mxu0 %v4507
          %5020 = vmatprep.subr.bf16.mxu0 %v4512
          %5021 = vmatpush1.bf16.msra.mxu0 %v4511
          %5022 = vmatprep.subr.bf16.mxu0 %v4516
          %5023 = vmatpush1.bf16.msra.mxu0 %v4515
          %5024 = vmatprep.subr.bf16.mxu0 %v4520
          %5025 = vmatpush1.bf16.msra.mxu0 %v4519
          %5026 = vmatprep.subr.bf16.mxu0 %v4524
          %5027 = vmatpush1.bf16.msra.mxu0 %v4523
          %5028 = vmatprep.mubr.bf16.mxu0 %v3431
          %5029 = vmatmul.mubr.bf16.gmra.mrb[0].mxu0 %v3430
          %v5030 = vpop.f32.mrb[0].mxu0
          %v5031 = vadd.f32 %v4979, %v5030
          %v5032 = vpop.f32.mrb[0].mxu0
          %v5033 = vadd.f32 %v4983, %v5032
          %v5034 = vpop.f32.mrb[0].mxu0
          %v5035 = vpop.f32.mrb[0].mxu0
          %5036 = vdwg.mxu0
          %5037 = vmatprep.subr.bf16.mxu0 %v4528
          %5038 = vmatpush1.bf16.msra.mxu0 %v4527
          %5039 = vmatprep.subr.bf16.mxu0 %v4532
          %5040 = vmatpush1.bf16.msra.mxu0 %v4531
          %5041 = vmatprep.subr.bf16.mxu0 %v4536
          %5042 = vmatpush1.bf16.msra.mxu0 %v4535
          %5043 = vmatprep.subr.bf16.mxu0 %v4540
          %5044 = vmatpush1.bf16.msra.mxu0 %v4539
          %5045 = vmatprep.subr.bf16.mxu0 %v4544
          %5046 = vmatpush1.bf16.msra.mxu0 %v4543
          %5047 = vmatprep.subr.bf16.mxu0 %v4548
          %5048 = vmatpush1.bf16.msra.mxu0 %v4547
          %5049 = vmatprep.subr.bf16.mxu0 %v4552
          %5050 = vmatpush1.bf16.msra.mxu0 %v4551
          %5051 = vmatprep.subr.bf16.mxu0 %v4556
          %5052 = vmatpush1.bf16.msra.mxu0 %v4555
          %5053 = vmatprep.subr.bf16.mxu0 %v4560
          %5054 = vmatpush1.bf16.msra.mxu0 %v4559
          %5055 = vmatprep.subr.bf16.mxu0 %v4564
          %5056 = vmatpush1.bf16.msra.mxu0 %v4563
          %5057 = vmatprep.subr.bf16.mxu0 %v4568
          %5058 = vmatpush1.bf16.msra.mxu0 %v4567
          %5059 = vmatprep.subr.bf16.mxu0 %v4572
          %5060 = vmatpush1.bf16.msra.mxu0 %v4571
          %5061 = vmatprep.subr.bf16.mxu0 %v4576
          %5062 = vmatpush1.bf16.msra.mxu0 %v4575
          %5063 = vmatprep.subr.bf16.mxu0 %v4580
          %5064 = vmatpush1.bf16.msra.mxu0 %v4579
          %5065 = vmatprep.subr.bf16.mxu0 %v4584
          %5066 = vmatpush1.bf16.msra.mxu0 %v4583
          %5067 = vmatprep.subr.bf16.mxu0 %v4588
          %5068 = vmatpush1.bf16.msra.mxu0 %v4587
          %5069 = vmatprep.mubr.bf16.mxu0 %v3433
          %5070 = vmatmul.mubr.bf16.gmra.mrb[0].mxu0 %v3432
          %v5071 = vpop.f32.mrb[0].mxu0
          %v5072 = vadd.f32 %v5031, %v5071
          %v5073 = vpop.f32.mrb[0].mxu0
          %v5074 = vadd.f32 %v5033, %v5073
          %v5075 = vpop.f32.mrb[0].mxu0
          %v5076 = vpop.f32.mrb[0].mxu0
          %5077 = vdwg.mxu0
          %5078 = vmatprep.subr.bf16.mxu0 %v4592
          %5079 = vmatpush1.bf16.msra.mxu0 %v4591
          %5080 = vmatprep.subr.bf16.mxu0 %v4596
          %5081 = vmatpush1.bf16.msra.mxu0 %v4595
          %5082 = vmatprep.subr.bf16.mxu0 %v4600
          %5083 = vmatpush1.bf16.msra.mxu0 %v4599
          %5084 = vmatprep.subr.bf16.mxu0 %v4604
          %5085 = vmatpush1.bf16.msra.mxu0 %v4603
          %5086 = vmatprep.subr.bf16.mxu0 %v4608
          %5087 = vmatpush1.bf16.msra.mxu0 %v4607
          %5088 = vmatprep.subr.bf16.mxu0 %v4612
          %5089 = vmatpush1.bf16.msra.mxu0 %v4611
          %5090 = vmatprep.subr.bf16.mxu0 %v4616
          %5091 = vmatpush1.bf16.msra.mxu0 %v4615
          %5092 = vmatprep.subr.bf16.mxu0 %v4620
          %5093 = vmatpush1.bf16.msra.mxu0 %v4619
          %5094 = vmatprep.subr.bf16.mxu0 %v4624
          %5095 = vmatpush1.bf16.msra.mxu0 %v4623
          %5096 = vmatprep.subr.bf16.mxu0 %v4628
          %5097 = vmatpush1.bf16.msra.mxu0 %v4627
          %5098 = vmatprep.subr.bf16.mxu0 %v4632
          %5099 = vmatpush1.bf16.msra.mxu0 %v4631
          %5100 = vmatprep.subr.bf16.mxu0 %v4636
          %5101 = vmatpush1.bf16.msra.mxu0 %v4635
          %5102 = vmatprep.subr.bf16.mxu0 %v4640
          %5103 = vmatpush1.bf16.msra.mxu0 %v4639
          %5104 = vmatprep.subr.bf16.mxu0 %v4644
          %5105 = vmatpush1.bf16.msra.mxu0 %v4643
          %5106 = vmatprep.subr.bf16.mxu0 %v4648
          %5107 = vmatpush1.bf16.msra.mxu0 %v4647
          %5108 = vmatprep.subr.bf16.mxu0 %v4652
          %5109 = vmatpush1.bf16.msra.mxu0 %v4651
          %5110 = vmatprep.mubr.bf16.mxu0 %v3435
          %5111 = vmatmul.mubr.bf16.gmra.mrb[0].mxu0 %v3434
          %v5112 = vpop.f32.mrb[0].mxu0
          %v5113 = vadd.f32 %v5072, %v5112
          %v5114 = vpop.f32.mrb[0].mxu0
          %v5115 = vadd.f32 %v5074, %v5114
          %v5116 = vpop.f32.mrb[0].mxu0
          %v5117 = vpop.f32.mrb[0].mxu0
          %5118 = vdwg.mxu0
          %5119 = vmatprep.subr.bf16.mxu0 %v4656
          %5120 = vmatpush1.bf16.msra.mxu0 %v4655
          %5121 = vmatprep.subr.bf16.mxu0 %v4660
          %5122 = vmatpush1.bf16.msra.mxu0 %v4659
          %5123 = vmatprep.subr.bf16.mxu0 %v4664
          %5124 = vmatpush1.bf16.msra.mxu0 %v4663
          %5125 = vmatprep.subr.bf16.mxu0 %v4668
          %5126 = vmatpush1.bf16.msra.mxu0 %v4667
          %5127 = vmatprep.subr.bf16.mxu0 %v4672
          %5128 = vmatpush1.bf16.msra.mxu0 %v4671
          %5129 = vmatprep.subr.bf16.mxu0 %v4676
          %5130 = vmatpush1.bf16.msra.mxu0 %v4675
          %5131 = vmatprep.subr.bf16.mxu0 %v4680
          %5132 = vmatpush1.bf16.msra.mxu0 %v4679
          %5133 = vmatprep.subr.bf16.mxu0 %v4684
          %5134 = vmatpush1.bf16.msra.mxu0 %v4683
          %5135 = vmatprep.subr.bf16.mxu0 %v4688
          %5136 = vmatpush1.bf16.msra.mxu0 %v4687
          %5137 = vmatprep.subr.bf16.mxu0 %v4692
          %5138 = vmatpush1.bf16.msra.mxu0 %v4691
          %5139 = vmatprep.subr.bf16.mxu0 %v4696
          %5140 = vmatpush1.bf16.msra.mxu0 %v4695
          %5141 = vmatprep.subr.bf16.mxu0 %v4700
          %5142 = vmatpush1.bf16.msra.mxu0 %v4699
          %5143 = vmatprep.subr.bf16.mxu0 %v4704
          %5144 = vmatpush1.bf16.msra.mxu0 %v4703
          %5145 = vmatprep.subr.bf16.mxu0 %v4708
          %5146 = vmatpush1.bf16.msra.mxu0 %v4707
          %5147 = vmatprep.subr.bf16.mxu0 %v4712
          %5148 = vmatpush1.bf16.msra.mxu0 %v4711
          %5149 = vmatprep.subr.bf16.mxu0 %v4716
          %5150 = vmatpush1.bf16.msra.mxu0 %v4715
          %5151 = vmatprep.mubr.bf16.mxu0 %v3437
          %5152 = vmatmul.mubr.bf16.gmra.mrb[0].mxu0 %v3436
          %v5153 = vpop.f32.mrb[0].mxu0
          %v5154 = vadd.f32 %v5113, %v5153
          %v5155 = vpop.f32.mrb[0].mxu0
          %v5156 = vadd.f32 %v5115, %v5155
          %v5157 = vpop.f32.mrb[0].mxu0
          %v5158 = vpop.f32.mrb[0].mxu0
          %5159 = vdwg.mxu0
          %5160 = vmatprep.subr.bf16.mxu0 %v4466
          %5161 = vmatpush1.bf16.msra.mxu0 %v4465
          %5162 = vmatprep.subr.bf16.mxu0 %v4470
          %5163 = vmatpush1.bf16.msra.mxu0 %v4469
          %5164 = vmatprep.subr.bf16.mxu0 %v4474
          %5165 = vmatpush1.bf16.msra.mxu0 %v4473
          %5166 = vmatprep.subr.bf16.mxu0 %v4478
          %5167 = vmatpush1.bf16.msra.mxu0 %v4477
          %5168 = vmatprep.subr.bf16.mxu0 %v4482
          %5169 = vmatpush1.bf16.msra.mxu0 %v4481
          %5170 = vmatprep.subr.bf16.mxu0 %v4486
          %5171 = vmatpush1.bf16.msra.mxu0 %v4485
          %5172 = vmatprep.subr.bf16.mxu0 %v4490
          %5173 = vmatpush1.bf16.msra.mxu0 %v4489
          %5174 = vmatprep.subr.bf16.mxu0 %v4494
          %5175 = vmatpush1.bf16.msra.mxu0 %v4493
          %5176 = vmatprep.subr.bf16.mxu0 %v4498
          %5177 = vmatpush1.bf16.msra.mxu0 %v4497
          %5178 = vmatprep.subr.bf16.mxu0 %v4502
          %5179 = vmatpush1.bf16.msra.mxu0 %v4501
          %5180 = vmatprep.subr.bf16.mxu0 %v4506
          %5181 = vmatpush1.bf16.msra.mxu0 %v4505
          %5182 = vmatprep.subr.bf16.mxu0 %v4510
          %5183 = vmatpush1.bf16.msra.mxu0 %v4509
          %5184 = vmatprep.subr.bf16.mxu0 %v4514
          %5185 = vmatpush1.bf16.msra.mxu0 %v4513
          %5186 = vmatprep.subr.bf16.mxu0 %v4518
          %5187 = vmatpush1.bf16.msra.mxu0 %v4517
          %5188 = vmatprep.subr.bf16.mxu0 %v4522
          %5189 = vmatpush1.bf16.msra.mxu0 %v4521
          %5190 = vmatprep.subr.bf16.mxu0 %v4526
          %5191 = vmatpush1.bf16.msra.mxu0 %v4525
          %5192 = vmatprep.mubr.bf16.mxu0 %v3431
          %5193 = vmatmul.mubr.bf16.gmra.mrb[0].mxu0 %v3430
          %v5194 = vpop.f32.mrb[0].mxu0
          %v5195 = vadd.f32 %v4987, %v5194
          %v5196 = vpop.f32.mrb[0].mxu0
          %v5197 = vadd.f32 %v4991, %v5196
          %v5198 = vpop.f32.mrb[0].mxu0
          %v5199 = vpop.f32.mrb[0].mxu0
          %5200 = vdwg.mxu0
          %5201 = vmatprep.subr.bf16.mxu0 %v4530
          %5202 = vmatpush1.bf16.msra.mxu0 %v4529
          %5203 = vmatprep.subr.bf16.mxu0 %v4534
          %5204 = vmatpush1.bf16.msra.mxu0 %v4533
          %5205 = vmatprep.subr.bf16.mxu0 %v4538
          %5206 = vmatpush1.bf16.msra.mxu0 %v4537
          %5207 = vmatprep.subr.bf16.mxu0 %v4542
          %5208 = vmatpush1.bf16.msra.mxu0 %v4541
          %5209 = vmatprep.subr.bf16.mxu0 %v4546
          %5210 = vmatpush1.bf16.msra.mxu0 %v4545
          %5211 = vmatprep.subr.bf16.mxu0 %v4550
          %5212 = vmatpush1.bf16.msra.mxu0 %v4549
          %5213 = vmatprep.subr.bf16.mxu0 %v4554
          %5214 = vmatpush1.bf16.msra.mxu0 %v4553
          %5215 = vmatprep.subr.bf16.mxu0 %v4558
          %5216 = vmatpush1.bf16.msra.mxu0 %v4557
          %5217 = vmatprep.subr.bf16.mxu0 %v4562
          %5218 = vmatpush1.bf16.msra.mxu0 %v4561
          %5219 = vmatprep.subr.bf16.mxu0 %v4566
          %5220 = vmatpush1.bf16.msra.mxu0 %v4565
          %5221 = vmatprep.subr.bf16.mxu0 %v4570
          %5222 = vmatpush1.bf16.msra.mxu0 %v4569
          %5223 = vmatprep.subr.bf16.mxu0 %v4574
          %5224 = vmatpush1.bf16.msra.mxu0 %v4573
          %5225 = vmatprep.subr.bf16.mxu0 %v4578
          %5226 = vmatpush1.bf16.msra.mxu0 %v4577
          %5227 = vmatprep.subr.bf16.mxu0 %v4582
          %5228 = vmatpush1.bf16.msra.mxu0 %v4581
          %5229 = vmatprep.subr.bf16.mxu0 %v4586
          %5230 = vmatpush1.bf16.msra.mxu0 %v4585
          %5231 = vmatprep.subr.bf16.mxu0 %v4590
          %5232 = vmatpush1.bf16.msra.mxu0 %v4589
          %5233 = vmatprep.mubr.bf16.mxu0 %v3433
          %5234 = vmatmul.mubr.bf16.gmra.mrb[0].mxu0 %v3432
          %v5235 = vpop.f32.mrb[0].mxu0
          %v5236 = vadd.f32 %v5195, %v5235
          %v5237 = vpop.f32.mrb[0].mxu0
          %v5238 = vadd.f32 %v5197, %v5237
          %v5239 = vpop.f32.mrb[0].mxu0
          %v5240 = vpop.f32.mrb[0].mxu0
          %5241 = vdwg.mxu0
          %5242 = vmatprep.subr.bf16.mxu0 %v4594
          %5243 = vmatpush1.bf16.msra.mxu0 %v4593
          %5244 = vmatprep.subr.bf16.mxu0 %v4598
          %5245 = vmatpush1.bf16.msra.mxu0 %v4597
          %5246 = vmatprep.subr.bf16.mxu0 %v4602
          %5247 = vmatpush1.bf16.msra.mxu0 %v4601
          %5248 = vmatprep.subr.bf16.mxu0 %v4606
          %5249 = vmatpush1.bf16.msra.mxu0 %v4605
          %5250 = vmatprep.subr.bf16.mxu0 %v4610
          %5251 = vmatpush1.bf16.msra.mxu0 %v4609
          %5252 = vmatprep.subr.bf16.mxu0 %v4614
          %5253 = vmatpush1.bf16.msra.mxu0 %v4613
          %5254 = vmatprep.subr.bf16.mxu0 %v4618
          %5255 = vmatpush1.bf16.msra.mxu0 %v4617
          %5256 = vmatprep.subr.bf16.mxu0 %v4622
          %5257 = vmatpush1.bf16.msra.mxu0 %v4621
          %5258 = vmatprep.subr.bf16.mxu0 %v4626
          %5259 = vmatpush1.bf16.msra.mxu0 %v4625
          %5260 = vmatprep.subr.bf16.mxu0 %v4630
          %5261 = vmatpush1.bf16.msra.mxu0 %v4629
          %5262 = vmatprep.subr.bf16.mxu0 %v4634
          %5263 = vmatpush1.bf16.msra.mxu0 %v4633
          %5264 = vmatprep.subr.bf16.mxu0 %v4638
          %5265 = vmatpush1.bf16.msra.mxu0 %v4637
          %5266 = vmatprep.subr.bf16.mxu0 %v4642
          %5267 = vmatpush1.bf16.msra.mxu0 %v4641
          %5268 = vmatprep.subr.bf16.mxu0 %v4646
          %5269 = vmatpush1.bf16.msra.mxu0 %v4645
          %5270 = vmatprep.subr.bf16.mxu0 %v4650
          %5271 = vmatpush1.bf16.msra.mxu0 %v4649
          %5272 = vmatprep.subr.bf16.mxu0 %v4654
          %5273 = vmatpush1.bf16.msra.mxu0 %v4653
          %5274 = vmatprep.mubr.bf16.mxu0 %v3435
          %5275 = vmatmul.mubr.bf16.gmra.mrb[0].mxu0 %v3434
          %v5276 = vpop.f32.mrb[0].mxu0
          %v5277 = vadd.f32 %v5236, %v5276
          %v5278 = vpop.f32.mrb[0].mxu0
          %v5279 = vadd.f32 %v5238, %v5278
          %v5280 = vpop.f32.mrb[0].mxu0
          %v5281 = vpop.f32.mrb[0].mxu0
          %5282 = vdwg.mxu0
          %5283 = vmatprep.subr.bf16.mxu0 %v4658
          %5284 = vmatpush1.bf16.msra.mxu0 %v4657
          %5285 = vmatprep.subr.bf16.mxu0 %v4662
          %5286 = vmatpush1.bf16.msra.mxu0 %v4661
          %5287 = vmatprep.subr.bf16.mxu0 %v4666
          %5288 = vmatpush1.bf16.msra.mxu0 %v4665
          %5289 = vmatprep.subr.bf16.mxu0 %v4670
          %5290 = vmatpush1.bf16.msra.mxu0 %v4669
          %5291 = vmatprep.subr.bf16.mxu0 %v4674
          %5292 = vmatpush1.bf16.msra.mxu0 %v4673
          %5293 = vmatprep.subr.bf16.mxu0 %v4678
          %5294 = vmatpush1.bf16.msra.mxu0 %v4677
          %5295 = vmatprep.subr.bf16.mxu0 %v4682
          %5296 = vmatpush1.bf16.msra.mxu0 %v4681
          %5297 = vmatprep.subr.bf16.mxu0 %v4686
          %5298 = vmatpush1.bf16.msra.mxu0 %v4685
          %5299 = vmatprep.subr.bf16.mxu0 %v4690
          %5300 = vmatpush1.bf16.msra.mxu0 %v4689
          %5301 = vmatprep.subr.bf16.mxu0 %v4694
          %5302 = vmatpush1.bf16.msra.mxu0 %v4693
          %5303 = vmatprep.subr.bf16.mxu0 %v4698
          %5304 = vmatpush1.bf16.msra.mxu0 %v4697
          %5305 = vmatprep.subr.bf16.mxu0 %v4702
          %5306 = vmatpush1.bf16.msra.mxu0 %v4701
          %5307 = vmatprep.subr.bf16.mxu0 %v4706
          %5308 = vmatpush1.bf16.msra.mxu0 %v4705
          %5309 = vmatprep.subr.bf16.mxu0 %v4710
          %5310 = vmatpush1.bf16.msra.mxu0 %v4709
          %5311 = vmatprep.subr.bf16.mxu0 %v4714
          %5312 = vmatpush1.bf16.msra.mxu0 %v4713
          %5313 = vmatprep.subr.bf16.mxu0 %v4718
          %5314 = vmatpush1.bf16.msra.mxu0 %v4717
          %5315 = vmatprep.mubr.bf16.mxu0 %v3437
          %5316 = vmatmul.mubr.bf16.gmra.mrb[0].mxu0 %v3436
          %v5317 = vpop.f32.mrb[0].mxu0
          %v5318 = vadd.f32 %v5277, %v5317
          %v5319 = vpop.f32.mrb[0].mxu0
          %v5320 = vadd.f32 %v5279, %v5319
          %v5321 = vpop.f32.mrb[0].mxu0
          %v5322 = vpop.f32.mrb[0].mxu0
          %5323 = vdwg.mxu0
          %v5324 = vmax.f32 %v5154, 0.0
          %v5325 = vmax.f32 %v5156, 0.0
          %v5326 = vmax.f32 %v5318, 0.0
          %v5327 = vmax.f32 %v5320, 0.0
          %v5328 = vpack.c.bf16 %v5324, %v5324
          %v5329 = vpack.c.bf16 %v5325, %v5325
          %v5330 = vpack.c.bf16 %v5326, %v5326
          %v5331 = vpack.c.bf16 %v5327, %v5327
          %v5332 = vld [vmem:[#allocation7] sm:$0xff]
          %v5333 = vld [vmem:[#allocation7 + $0x8] sm:$0xff]
          %v5334 = vld [vmem:[#allocation7 + $0x10] sm:$0xff]
          %v5335 = vld [vmem:[#allocation7 + $0x18] sm:$0xff]
          %v5336 = vld [vmem:[#allocation7 + $0x20] sm:$0xff]
          %v5337 = vld [vmem:[#allocation7 + $0x28] sm:$0xff]
          %v5338 = vld [vmem:[#allocation7 + $0x30] sm:$0xff]
          %v5339 = vld [vmem:[#allocation7 + $0x38] sm:$0xff]
          %v5340 = vld [vmem:[#allocation7 + $0x40] sm:$0xff]
          %v5341 = vld [vmem:[#allocation7 + $0x48] sm:$0xff]
          %v5342 = vld [vmem:[#allocation7 + $0x50] sm:$0xff]
          %v5343 = vld [vmem:[#allocation7 + $0x58] sm:$0xff]
          %v5344 = vld [vmem:[#allocation7 + $0x60] sm:$0xff]
          %v5345 = vld [vmem:[#allocation7 + $0x68] sm:$0xff]
          %v5346 = vld [vmem:[#allocation7 + $0x70] sm:$0xff]
          %v5347 = vld [vmem:[#allocation7 + $0x78] sm:$0xff]
          %v5348 = vld [vmem:[#allocation7 + $0x80] sm:$0xff]
          %v5349 = vld [vmem:[#allocation7 + $0x88] sm:$0xff]
          %v5350 = vld [vmem:[#allocation7 + $0x90] sm:$0xff]
          %v5351 = vld [vmem:[#allocation7 + $0x98] sm:$0xff]
          %v5352 = vld [vmem:[#allocation7 + $0xa0] sm:$0xff]
          %v5353 = vld [vmem:[#allocation7 + $0xa8] sm:$0xff]
          %v5354 = vld [vmem:[#allocation7 + $0xb0] sm:$0xff]
          %v5355 = vld [vmem:[#allocation7 + $0xb8] sm:$0xff]
          %v5356 = vld [vmem:[#allocation7 + $0xc0] sm:$0xff]
          %v5357 = vld [vmem:[#allocation7 + $0xc8] sm:$0xff]
          %v5358 = vld [vmem:[#allocation7 + $0xd0] sm:$0xff]
          %v5359 = vld [vmem:[#allocation7 + $0xd8] sm:$0xff]
          %v5360 = vld [vmem:[#allocation7 + $0xe0] sm:$0xff]
          %v5361 = vld [vmem:[#allocation7 + $0xe8] sm:$0xff]
          %v5362 = vld [vmem:[#allocation7 + $0xf0] sm:$0xff]
          %v5363 = vld [vmem:[#allocation7 + $0xf8] sm:$0xff]
          %v5364 = vld [vmem:[#allocation7 + $0x100] sm:$0xff]
          %v5365 = vld [vmem:[#allocation7 + $0x108] sm:$0xff]
          %v5366 = vld [vmem:[#allocation7 + $0x110] sm:$0xff]
          %v5367 = vld [vmem:[#allocation7 + $0x118] sm:$0xff]
          %v5368 = vld [vmem:[#allocation7 + $0x120] sm:$0xff]
          %v5369 = vld [vmem:[#allocation7 + $0x128] sm:$0xff]
          %v5370 = vld [vmem:[#allocation7 + $0x130] sm:$0xff]
          %v5371 = vld [vmem:[#allocation7 + $0x138] sm:$0xff]
          %v5372 = vld [vmem:[#allocation7 + $0x140] sm:$0xff]
          %v5373 = vld [vmem:[#allocation7 + $0x148] sm:$0xff]
          %v5374 = vld [vmem:[#allocation7 + $0x150] sm:$0xff]
          %v5375 = vld [vmem:[#allocation7 + $0x158] sm:$0xff]
          %v5376 = vld [vmem:[#allocation7 + $0x160] sm:$0xff]
          %v5377 = vld [vmem:[#allocation7 + $0x168] sm:$0xff]
          %v5378 = vld [vmem:[#allocation7 + $0x170] sm:$0xff]
          %v5379 = vld [vmem:[#allocation7 + $0x178] sm:$0xff]
          %v5380 = vld [vmem:[#allocation7 + $0x180] sm:$0xff]
          %v5381 = vld [vmem:[#allocation7 + $0x188] sm:$0xff]
          %v5382 = vld [vmem:[#allocation7 + $0x190] sm:$0xff]
          %v5383 = vld [vmem:[#allocation7 + $0x198] sm:$0xff]
          %v5384 = vld [vmem:[#allocation7 + $0x1a0] sm:$0xff]
          %v5385 = vld [vmem:[#allocation7 + $0x1a8] sm:$0xff]
          %v5386 = vld [vmem:[#allocation7 + $0x1b0] sm:$0xff]
          %v5387 = vld [vmem:[#allocation7 + $0x1b8] sm:$0xff]
          %v5388 = vld [vmem:[#allocation7 + $0x1c0] sm:$0xff]
          %v5389 = vld [vmem:[#allocation7 + $0x1c8] sm:$0xff]
          %v5390 = vld [vmem:[#allocation7 + $0x1d0] sm:$0xff]
          %v5391 = vld [vmem:[#allocation7 + $0x1d8] sm:$0xff]
          %v5392 = vld [vmem:[#allocation7 + $0x1e0] sm:$0xff]
          %v5393 = vld [vmem:[#allocation7 + $0x1e8] sm:$0xff]
          %v5394 = vld [vmem:[#allocation7 + $0x1f0] sm:$0xff]
          %v5395 = vld [vmem:[#allocation7 + $0x1f8] sm:$0xff]
          %v5396 = vld [vmem:[%s10] sm:$0x3]
          %v5461 = vunpack.c.l.b16 %v5332
          %v5462 = vunpack.c.h.b16 %v5332
          %v5463 = vunpack.c.l.b16 %v5333
          %v5464 = vunpack.c.h.b16 %v5333
          %v5465 = vunpack.c.l.b16 %v5334
          %v5466 = vunpack.c.h.b16 %v5334
          %v5467 = vunpack.c.l.b16 %v5335
          %v5468 = vunpack.c.h.b16 %v5335
          %v5469 = vunpack.c.l.b16 %v5336
          %v5470 = vunpack.c.h.b16 %v5336
          %v5471 = vunpack.c.l.b16 %v5337
          %v5472 = vunpack.c.h.b16 %v5337
          %v5473 = vunpack.c.l.b16 %v5338
          %v5474 = vunpack.c.h.b16 %v5338
          %v5475 = vunpack.c.l.b16 %v5339
          %v5476 = vunpack.c.h.b16 %v5339
          %v5477 = vunpack.c.l.b16 %v5340
          %v5478 = vunpack.c.h.b16 %v5340
          %v5479 = vunpack.c.l.b16 %v5341
          %v5480 = vunpack.c.h.b16 %v5341
          %v5481 = vunpack.c.l.b16 %v5342
          %v5482 = vunpack.c.h.b16 %v5342
          %v5483 = vunpack.c.l.b16 %v5343
          %v5484 = vunpack.c.h.b16 %v5343
          %v5485 = vunpack.c.l.b16 %v5344
          %v5486 = vunpack.c.h.b16 %v5344
          %v5487 = vunpack.c.l.b16 %v5345
          %v5488 = vunpack.c.h.b16 %v5345
          %v5489 = vunpack.c.l.b16 %v5346
          %v5490 = vunpack.c.h.b16 %v5346
          %v5491 = vunpack.c.l.b16 %v5347
          %v5492 = vunpack.c.h.b16 %v5347
          %v5493 = vunpack.c.l.b16 %v5348
          %v5494 = vunpack.c.h.b16 %v5348
          %v5495 = vunpack.c.l.b16 %v5349
          %v5496 = vunpack.c.h.b16 %v5349
          %v5497 = vunpack.c.l.b16 %v5350
          %v5498 = vunpack.c.h.b16 %v5350
          %v5499 = vunpack.c.l.b16 %v5351
          %v5500 = vunpack.c.h.b16 %v5351
          %v5501 = vunpack.c.l.b16 %v5352
          %v5502 = vunpack.c.h.b16 %v5352
          %v5503 = vunpack.c.l.b16 %v5353
          %v5504 = vunpack.c.h.b16 %v5353
          %v5505 = vunpack.c.l.b16 %v5354
          %v5506 = vunpack.c.h.b16 %v5354
          %v5507 = vunpack.c.l.b16 %v5355
          %v5508 = vunpack.c.h.b16 %v5355
          %v5509 = vunpack.c.l.b16 %v5356
          %v5510 = vunpack.c.h.b16 %v5356
          %v5511 = vunpack.c.l.b16 %v5357
          %v5512 = vunpack.c.h.b16 %v5357
          %v5513 = vunpack.c.l.b16 %v5358
          %v5514 = vunpack.c.h.b16 %v5358
          %v5515 = vunpack.c.l.b16 %v5359
          %v5516 = vunpack.c.h.b16 %v5359
          %v5517 = vunpack.c.l.b16 %v5360
          %v5518 = vunpack.c.h.b16 %v5360
          %v5519 = vunpack.c.l.b16 %v5361
          %v5520 = vunpack.c.h.b16 %v5361
          %v5521 = vunpack.c.l.b16 %v5362
          %v5522 = vunpack.c.h.b16 %v5362
          %v5523 = vunpack.c.l.b16 %v5363
          %v5524 = vunpack.c.h.b16 %v5363
          %v5525 = vunpack.c.l.b16 %v5364
          %v5526 = vunpack.c.h.b16 %v5364
          %v5527 = vunpack.c.l.b16 %v5365
          %v5528 = vunpack.c.h.b16 %v5365
          %v5529 = vunpack.c.l.b16 %v5366
          %v5530 = vunpack.c.h.b16 %v5366
          %v5531 = vunpack.c.l.b16 %v5367
          %v5532 = vunpack.c.h.b16 %v5367
          %v5533 = vunpack.c.l.b16 %v5368
          %v5534 = vunpack.c.h.b16 %v5368
          %v5535 = vunpack.c.l.b16 %v5369
          %v5536 = vunpack.c.h.b16 %v5369
          %v5537 = vunpack.c.l.b16 %v5370
          %v5538 = vunpack.c.h.b16 %v5370
          %v5539 = vunpack.c.l.b16 %v5371
          %v5540 = vunpack.c.h.b16 %v5371
          %v5541 = vunpack.c.l.b16 %v5372
          %v5542 = vunpack.c.h.b16 %v5372
          %v5543 = vunpack.c.l.b16 %v5373
          %v5544 = vunpack.c.h.b16 %v5373
          %v5545 = vunpack.c.l.b16 %v5374
          %v5546 = vunpack.c.h.b16 %v5374
          %v5547 = vunpack.c.l.b16 %v5375
          %v5548 = vunpack.c.h.b16 %v5375
          %v5549 = vunpack.c.l.b16 %v5376
          %v5550 = vunpack.c.h.b16 %v5376
          %v5551 = vunpack.c.l.b16 %v5377
          %v5552 = vunpack.c.h.b16 %v5377
          %v5553 = vunpack.c.l.b16 %v5378
          %v5554 = vunpack.c.h.b16 %v5378
          %v5555 = vunpack.c.l.b16 %v5379
          %v5556 = vunpack.c.h.b16 %v5379
          %v5557 = vunpack.c.l.b16 %v5380
          %v5558 = vunpack.c.h.b16 %v5380
          %v5559 = vunpack.c.l.b16 %v5381
          %v5560 = vunpack.c.h.b16 %v5381
          %v5561 = vunpack.c.l.b16 %v5382
          %v5562 = vunpack.c.h.b16 %v5382
          %v5563 = vunpack.c.l.b16 %v5383
          %v5564 = vunpack.c.h.b16 %v5383
          %v5565 = vunpack.c.l.b16 %v5384
          %v5566 = vunpack.c.h.b16 %v5384
          %v5567 = vunpack.c.l.b16 %v5385
          %v5568 = vunpack.c.h.b16 %v5385
          %v5569 = vunpack.c.l.b16 %v5386
          %v5570 = vunpack.c.h.b16 %v5386
          %v5571 = vunpack.c.l.b16 %v5387
          %v5572 = vunpack.c.h.b16 %v5387
          %v5573 = vunpack.c.l.b16 %v5388
          %v5574 = vunpack.c.h.b16 %v5388
          %v5575 = vunpack.c.l.b16 %v5389
          %v5576 = vunpack.c.h.b16 %v5389
          %v5577 = vunpack.c.l.b16 %v5390
          %v5578 = vunpack.c.h.b16 %v5390
          %v5579 = vunpack.c.l.b16 %v5391
          %v5580 = vunpack.c.h.b16 %v5391
          %v5581 = vunpack.c.l.b16 %v5392
          %v5582 = vunpack.c.h.b16 %v5392
          %v5583 = vunpack.c.l.b16 %v5393
          %v5584 = vunpack.c.h.b16 %v5393
          %v5585 = vunpack.c.l.b16 %v5394
          %v5586 = vunpack.c.h.b16 %v5394
          %v5587 = vunpack.c.l.b16 %v5395
          %v5588 = vunpack.c.h.b16 %v5395
          %v5589 = vpack.c.b16 %v5463, %v5461
          %v5590 = vpack.c.b16 %v5464, %v5462
          %v5591 = vpack.c.b16 %v5467, %v5465
          %v5592 = vpack.c.b16 %v5468, %v5466
          %v5593 = vpack.c.b16 %v5471, %v5469
          %v5594 = vpack.c.b16 %v5472, %v5470
          %v5595 = vpack.c.b16 %v5475, %v5473
          %v5596 = vpack.c.b16 %v5476, %v5474
          %v5597 = vpack.c.b16 %v5479, %v5477
          %v5598 = vpack.c.b16 %v5480, %v5478
          %v5599 = vpack.c.b16 %v5483, %v5481
          %v5600 = vpack.c.b16 %v5484, %v5482
          %v5601 = vpack.c.b16 %v5487, %v5485
          %v5602 = vpack.c.b16 %v5488, %v5486
          %v5603 = vpack.c.b16 %v5491, %v5489
          %v5604 = vpack.c.b16 %v5492, %v5490
          %v5605 = vpack.c.b16 %v5495, %v5493
          %v5606 = vpack.c.b16 %v5496, %v5494
          %v5607 = vpack.c.b16 %v5499, %v5497
          %v5608 = vpack.c.b16 %v5500, %v5498
          %v5609 = vpack.c.b16 %v5503, %v5501
          %v5610 = vpack.c.b16 %v5504, %v5502
          %v5611 = vpack.c.b16 %v5507, %v5505
          %v5612 = vpack.c.b16 %v5508, %v5506
          %v5613 = vpack.c.b16 %v5511, %v5509
          %v5614 = vpack.c.b16 %v5512, %v5510
          %v5615 = vpack.c.b16 %v5515, %v5513
          %v5616 = vpack.c.b16 %v5516, %v5514
          %v5617 = vpack.c.b16 %v5519, %v5517
          %v5618 = vpack.c.b16 %v5520, %v5518
          %v5619 = vpack.c.b16 %v5523, %v5521
          %v5620 = vpack.c.b16 %v5524, %v5522
          %v5621 = vpack.c.b16 %v5527, %v5525
          %v5622 = vpack.c.b16 %v5528, %v5526
          %v5623 = vpack.c.b16 %v5531, %v5529
          %v5624 = vpack.c.b16 %v5532, %v5530
          %v5625 = vpack.c.b16 %v5535, %v5533
          %v5626 = vpack.c.b16 %v5536, %v5534
          %v5627 = vpack.c.b16 %v5539, %v5537
          %v5628 = vpack.c.b16 %v5540, %v5538
          %v5629 = vpack.c.b16 %v5543, %v5541
          %v5630 = vpack.c.b16 %v5544, %v5542
          %v5631 = vpack.c.b16 %v5547, %v5545
          %v5632 = vpack.c.b16 %v5548, %v5546
          %v5633 = vpack.c.b16 %v5551, %v5549
          %v5634 = vpack.c.b16 %v5552, %v5550
          %v5635 = vpack.c.b16 %v5555, %v5553
          %v5636 = vpack.c.b16 %v5556, %v5554
          %v5637 = vpack.c.b16 %v5559, %v5557
          %v5638 = vpack.c.b16 %v5560, %v5558
          %v5639 = vpack.c.b16 %v5563, %v5561
          %v5640 = vpack.c.b16 %v5564, %v5562
          %v5641 = vpack.c.b16 %v5567, %v5565
          %v5642 = vpack.c.b16 %v5568, %v5566
          %v5643 = vpack.c.b16 %v5571, %v5569
          %v5644 = vpack.c.b16 %v5572, %v5570
          %v5645 = vpack.c.b16 %v5575, %v5573
          %v5646 = vpack.c.b16 %v5576, %v5574
          %v5647 = vpack.c.b16 %v5579, %v5577
          %v5648 = vpack.c.b16 %v5580, %v5578
          %v5649 = vpack.c.b16 %v5583, %v5581
          %v5650 = vpack.c.b16 %v5584, %v5582
          %v5651 = vpack.c.b16 %v5587, %v5585
          %v5652 = vpack.c.b16 %v5588, %v5586
          %v5718 = vlaneseq
          %v5719 = vshrl.u32 %v5718, 7
          %v5720 = vsub.s32 0, %v5719
          %v5721 = vrot.slane %v5396, %v5720
          %v5722 = vlaneseq
          %v5723 = vshrl.u32 %v5722, 7
          %v5724 = vsub.s32 1, %v5723
          %v5725 = vrot.slane %v5396, %v5724
          %5728 = vmatprep.subr.bf16.mxu0 %v5590
          %5729 = vmatpush1.bf16.msra.mxu0 %v5589
          %5730 = vmatprep.subr.bf16.mxu0 %v5592
          %5731 = vmatpush1.bf16.msra.mxu0 %v5591
          %5732 = vmatprep.subr.bf16.mxu0 %v5594
          %5733 = vmatpush1.bf16.msra.mxu0 %v5593
          %5734 = vmatprep.subr.bf16.mxu0 %v5596
          %5735 = vmatpush1.bf16.msra.mxu0 %v5595
          %5736 = vmatprep.subr.bf16.mxu0 %v5598
          %5737 = vmatpush1.bf16.msra.mxu0 %v5597
          %5738 = vmatprep.subr.bf16.mxu0 %v5600
          %5739 = vmatpush1.bf16.msra.mxu0 %v5599
          %5740 = vmatprep.subr.bf16.mxu0 %v5602
          %5741 = vmatpush1.bf16.msra.mxu0 %v5601
          %5742 = vmatprep.subr.bf16.mxu0 %v5604
          %5743 = vmatpush1.bf16.msra.mxu0 %v5603
          %5744 = vmatprep.subr.bf16.mxu0 %v5606
          %5745 = vmatpush1.bf16.msra.mxu0 %v5605
          %5746 = vmatprep.subr.bf16.mxu0 %v5608
          %5747 = vmatpush1.bf16.msra.mxu0 %v5607
          %5748 = vmatprep.subr.bf16.mxu0 %v5610
          %5749 = vmatpush1.bf16.msra.mxu0 %v5609
          %5750 = vmatprep.subr.bf16.mxu0 %v5612
          %5751 = vmatpush1.bf16.msra.mxu0 %v5611
          %5752 = vmatprep.subr.bf16.mxu0 %v5614
          %5753 = vmatpush1.bf16.msra.mxu0 %v5613
          %5754 = vmatprep.subr.bf16.mxu0 %v5616
          %5755 = vmatpush1.bf16.msra.mxu0 %v5615
          %5756 = vmatprep.subr.bf16.mxu0 %v5618
          %5757 = vmatpush1.bf16.msra.mxu0 %v5617
          %5758 = vmatprep.subr.bf16.mxu0 %v5620
          %5759 = vmatpush1.bf16.msra.mxu0 %v5619
          %5760 = vmatprep.mubr.bf16.mxu0 %v5329
          %5761 = vmatmul.mubr.bf16.gmra.mrb[0].mxu0 %v5328
          %v5762 = vpop.f32.mrb[0].mxu0
          %v5763 = vadd.f32 %v5721, %v5762
          %v5764 = vpop.f32.mrb[0].mxu0
          %v5765 = vadd.f32 %v5725, %v5764
          %v5766 = vpop.f32.mrb[0].mxu0
          %v5767 = vpop.f32.mrb[0].mxu0
          %5768 = vdwg.mxu0
          %5769 = vmatprep.subr.bf16.mxu0 %v5622
          %5770 = vmatpush1.bf16.msra.mxu0 %v5621
          %5771 = vmatprep.subr.bf16.mxu0 %v5624
          %5772 = vmatpush1.bf16.msra.mxu0 %v5623
          %5773 = vmatprep.subr.bf16.mxu0 %v5626
          %5774 = vmatpush1.bf16.msra.mxu0 %v5625
          %5775 = vmatprep.subr.bf16.mxu0 %v5628
          %5776 = vmatpush1.bf16.msra.mxu0 %v5627
          %5777 = vmatprep.subr.bf16.mxu0 %v5630
          %5778 = vmatpush1.bf16.msra.mxu0 %v5629
          %5779 = vmatprep.subr.bf16.mxu0 %v5632
          %5780 = vmatpush1.bf16.msra.mxu0 %v5631
          %5781 = vmatprep.subr.bf16.mxu0 %v5634
          %5782 = vmatpush1.bf16.msra.mxu0 %v5633
          %5783 = vmatprep.subr.bf16.mxu0 %v5636
          %5784 = vmatpush1.bf16.msra.mxu0 %v5635
          %5785 = vmatprep.subr.bf16.mxu0 %v5638
          %5786 = vmatpush1.bf16.msra.mxu0 %v5637
          %5787 = vmatprep.subr.bf16.mxu0 %v5640
          %5788 = vmatpush1.bf16.msra.mxu0 %v5639
          %5789 = vmatprep.subr.bf16.mxu0 %v5642
          %5790 = vmatpush1.bf16.msra.mxu0 %v5641
          %5791 = vmatprep.subr.bf16.mxu0 %v5644
          %5792 = vmatpush1.bf16.msra.mxu0 %v5643
          %5793 = vmatprep.subr.bf16.mxu0 %v5646
          %5794 = vmatpush1.bf16.msra.mxu0 %v5645
          %5795 = vmatprep.subr.bf16.mxu0 %v5648
          %5796 = vmatpush1.bf16.msra.mxu0 %v5647
          %5797 = vmatprep.subr.bf16.mxu0 %v5650
          %5798 = vmatpush1.bf16.msra.mxu0 %v5649
          %5799 = vmatprep.subr.bf16.mxu0 %v5652
          %5800 = vmatpush1.bf16.msra.mxu0 %v5651
          %5801 = vmatprep.mubr.bf16.mxu0 %v5331
          %5802 = vmatmul.mubr.bf16.gmra.mrb[0].mxu0 %v5330
          %v5803 = vpop.f32.mrb[0].mxu0
          %v5804 = vadd.f32 %v5763, %v5803
          %v5805 = vpop.f32.mrb[0].mxu0
          %v5806 = vadd.f32 %v5765, %v5805
          %v5807 = vpop.f32.mrb[0].mxu0
          %v5808 = vpop.f32.mrb[0].mxu0
          %5809 = vdwg.mxu0
          %v5810 = vmax.f32 %v5804, 0.0
          %v5811 = vmax.f32 %v5806, 0.0
          %v5812 = vpack.c.bf16 %v5810, %v5810
          %v5813 = vpack.c.bf16 %v5811, %v5811
          %v5814 = vld [vmem:[#allocation8] sm:$0xf]
          %v5815 = vld [vmem:[#allocation8 + $0x4] sm:$0xf]
          %v5816 = vld [vmem:[#allocation8 + $0x8] sm:$0xf]
          %v5817 = vld [vmem:[#allocation8 + $0xc] sm:$0xf]
          %v5818 = vld [vmem:[#allocation8 + $0x10] sm:$0xf]
          %v5819 = vld [vmem:[#allocation8 + $0x14] sm:$0xf]
          %v5820 = vld [vmem:[#allocation8 + $0x18] sm:$0xf]
          %v5821 = vld [vmem:[#allocation8 + $0x1c] sm:$0xf]
          %v5822 = vld [vmem:[#allocation8 + $0x20] sm:$0xf]
          %v5823 = vld [vmem:[#allocation8 + $0x24] sm:$0xf]
          %v5824 = vld [vmem:[#allocation8 + $0x28] sm:$0xf]
          %v5825 = vld [vmem:[#allocation8 + $0x2c] sm:$0xf]
          %v5826 = vld [vmem:[#allocation8 + $0x30] sm:$0xf]
          %v5827 = vld [vmem:[#allocation8 + $0x34] sm:$0xf]
          %v5828 = vld [vmem:[#allocation8 + $0x38] sm:$0xf]
          %v5829 = vld [vmem:[#allocation8 + $0x3c] sm:$0xf]
          %v5830 = vld [vmem:[#allocation8 + $0x40] sm:$0xf]
          %v5831 = vld [vmem:[#allocation8 + $0x44] sm:$0xf]
          %v5832 = vld [vmem:[#allocation8 + $0x48] sm:$0xf]
          %v5833 = vld [vmem:[#allocation8 + $0x4c] sm:$0xf]
          %v5834 = vld [vmem:[#allocation8 + $0x50] sm:$0xf]
          %v5835 = vld [vmem:[#allocation8 + $0x54] sm:$0xf]
          %v5836 = vld [vmem:[#allocation8 + $0x58] sm:$0xf]
          %v5837 = vld [vmem:[#allocation8 + $0x5c] sm:$0xf]
          %v5838 = vld [vmem:[#allocation8 + $0x60] sm:$0xf]
          %v5839 = vld [vmem:[#allocation8 + $0x64] sm:$0xf]
          %v5840 = vld [vmem:[#allocation8 + $0x68] sm:$0xf]
          %v5841 = vld [vmem:[#allocation8 + $0x6c] sm:$0xf]
          %v5842 = vld [vmem:[#allocation8 + $0x70] sm:$0xf]
          %v5843 = vld [vmem:[#allocation8 + $0x74] sm:$0xf]
          %v5844 = vld [vmem:[#allocation8 + $0x78] sm:$0xf]
          %v5845 = vld [vmem:[#allocation8 + $0x7c] sm:$0xf]
          %v5846 = vld [vmem:[%s12] sm:$0x1]
          %v5879 = vunpack.c.l.b16 %v5814
          %v5880 = vunpack.c.l.b16 %v5815
          %v5881 = vunpack.c.l.b16 %v5816
          %v5882 = vunpack.c.l.b16 %v5817
          %v5883 = vunpack.c.l.b16 %v5818
          %v5884 = vunpack.c.l.b16 %v5819
          %v5885 = vunpack.c.l.b16 %v5820
          %v5886 = vunpack.c.l.b16 %v5821
          %v5887 = vunpack.c.l.b16 %v5822
          %v5888 = vunpack.c.l.b16 %v5823
          %v5889 = vunpack.c.l.b16 %v5824
          %v5890 = vunpack.c.l.b16 %v5825
          %v5891 = vunpack.c.l.b16 %v5826
          %v5892 = vunpack.c.l.b16 %v5827
          %v5893 = vunpack.c.l.b16 %v5828
          %v5894 = vunpack.c.l.b16 %v5829
          %v5895 = vunpack.c.l.b16 %v5830
          %v5896 = vunpack.c.l.b16 %v5831
          %v5897 = vunpack.c.l.b16 %v5832
          %v5898 = vunpack.c.l.b16 %v5833
          %v5899 = vunpack.c.l.b16 %v5834
          %v5900 = vunpack.c.l.b16 %v5835
          %v5901 = vunpack.c.l.b16 %v5836
          %v5902 = vunpack.c.l.b16 %v5837
          %v5903 = vunpack.c.l.b16 %v5838
          %v5904 = vunpack.c.l.b16 %v5839
          %v5905 = vunpack.c.l.b16 %v5840
          %v5906 = vunpack.c.l.b16 %v5841
          %v5907 = vunpack.c.l.b16 %v5842
          %v5908 = vunpack.c.l.b16 %v5843
          %v5909 = vunpack.c.l.b16 %v5844
          %v5910 = vunpack.c.l.b16 %v5845
          %v5911 = vpack.c.b16 %v5880, %v5879
          %v5912 = vpack.c.b16 %v5882, %v5881
          %v5913 = vpack.c.b16 %v5884, %v5883
          %v5914 = vpack.c.b16 %v5886, %v5885
          %v5915 = vpack.c.b16 %v5888, %v5887
          %v5916 = vpack.c.b16 %v5890, %v5889
          %v5917 = vpack.c.b16 %v5892, %v5891
          %v5918 = vpack.c.b16 %v5894, %v5893
          %v5919 = vpack.c.b16 %v5896, %v5895
          %v5920 = vpack.c.b16 %v5898, %v5897
          %v5921 = vpack.c.b16 %v5900, %v5899
          %v5922 = vpack.c.b16 %v5902, %v5901
          %v5923 = vpack.c.b16 %v5904, %v5903
          %v5924 = vpack.c.b16 %v5906, %v5905
          %v5925 = vpack.c.b16 %v5908, %v5907
          %v5926 = vpack.c.b16 %v5910, %v5909
          %5943 = vmatprep.subr.bf16.mxu0 0
          %5944 = vmatpush1.bf16.msra.mxu0 %v5911
          %5945 = vmatprep.subr.bf16.mxu0 0
          %5946 = vmatpush1.bf16.msra.mxu0 %v5912
          %5947 = vmatprep.subr.bf16.mxu0 0
          %5948 = vmatpush1.bf16.msra.mxu0 %v5913
          %5949 = vmatprep.subr.bf16.mxu0 0
          %5950 = vmatpush1.bf16.msra.mxu0 %v5914
          %5951 = vmatprep.subr.bf16.mxu0 0
          %5952 = vmatpush1.bf16.msra.mxu0 %v5915
          %5953 = vmatprep.subr.bf16.mxu0 0
          %5954 = vmatpush1.bf16.msra.mxu0 %v5916
          %5955 = vmatprep.subr.bf16.mxu0 0
          %5956 = vmatpush1.bf16.msra.mxu0 %v5917
          %5957 = vmatprep.subr.bf16.mxu0 0
          %5958 = vmatpush1.bf16.msra.mxu0 %v5918
          %5959 = vmatprep.subr.bf16.mxu0 0
          %5960 = vmatpush1.bf16.msra.mxu0 %v5919
          %5961 = vmatprep.subr.bf16.mxu0 0
          %5962 = vmatpush1.bf16.msra.mxu0 %v5920
          %5963 = vmatprep.subr.bf16.mxu0 0
          %5964 = vmatpush1.bf16.msra.mxu0 %v5921
          %5965 = vmatprep.subr.bf16.mxu0 0
          %5966 = vmatpush1.bf16.msra.mxu0 %v5922
          %5967 = vmatprep.subr.bf16.mxu0 0
          %5968 = vmatpush1.bf16.msra.mxu0 %v5923
          %5969 = vmatprep.subr.bf16.mxu0 0
          %5970 = vmatpush1.bf16.msra.mxu0 %v5924
          %5971 = vmatprep.subr.bf16.mxu0 0
          %5972 = vmatpush1.bf16.msra.mxu0 %v5925
          %5973 = vmatprep.subr.bf16.mxu0 0
          %5974 = vmatpush1.bf16.msra.mxu0 %v5926
          %5975 = vmatprep.mubr.bf16.mxu0 %v5813
          %5976 = vmatmul.mubr.bf16.gmra.mrb[0].mxu0 %v5812
          %v5977 = vpop.f32.mrb[0].mxu0
          %v5978 = vadd.f32 %v5846, %v5977
          %v5979 = vpop.f32.mrb[0].mxu0
          %v5980 = vpop.f32.mrb[0].mxu0
          %v5981 = vpop.f32.mrb[0].mxu0
          %5982 = vdwg.mxu0
          %v5983 = vmax.f32 %v5978, 0.0
          %5984 = vst [vmem:[%s552] sm:$0x1] %v5983
        $region96: #{tpu_custom_call.1} parent=71 // pred_fallthru
          _
        %s5985 = sand.u32 %s335, 1
        %s5986 = scalar_lea.sflag [#allocation4], %s5985
        %s5987 = sand.u32 %s335, 1
        %s5988 = smul.addr %s5987, 8
        %s5989 = scalar_lea.vmem [#allocation10], %s5988
        %s5990 = sand.u32 %s361, 1
        %s5991 = scalar_lea.sflag [#allocation12], %s5990
        %s5992 = sand.u32 %s361, 1
        %s5993 = scalar_lea.vmem [#allocation11], %s5992
        // Predicated region
        $region97: #{tpu_custom_call.1} parent=71 // pred_check
          %p5994 = pneg %p345
        $region98: #{tpu_custom_call.1} parent=71 // pred_check_branch
          %5996 = sbr.rel (%p5994) target = $region100
        $region99: #{tpu_custom_call.1} parent=71 // pred_region
          %s5998 = ssub.s32 128, 128
          %5999 = vsyncadd %s5986, %s5998
          %s6000 = smul.addr %s39, 8
          %s6001 = smul.addr %s6000, 16
          %s6002 = scalar_lea.hbm %s13, %s6001
          %s6004 = sshll.u32 %s5989, 4
          %s6005 = int_to_ptr.vmem [resolvable:$true] %s6004
          %6007 = dma.vmem_to_hbm [thread:$0]  %s6005, 128, %s6002, %s5986
        $region100: #{tpu_custom_call.1} parent=71 // pred_fallthru
          _
        // Predicated region
        $region101: #{tpu_custom_call.1} parent=71 // pred_check
          %p6008 = pneg %p371
        $region102: #{tpu_custom_call.1} parent=71 // pred_check_branch
          %6010 = sbr.rel (%p6008) target = $region104
        $region103: #{tpu_custom_call.1} parent=71 // pred_region
          %s6012 = ssub.s32 16, 16
          %6013 = vsyncadd %s5991, %s6012
          %s6014 = smul.addr %s39, 16
          %s6015 = scalar_lea.hbm %s14, %s6014
          %s6017 = sshll.u32 %s5993, 4
          %s6018 = int_to_ptr.vmem [resolvable:$true] %s6017
          %6020 = dma.vmem_to_hbm [thread:$0]  %s6018, 16, %s6015, %s5991
        $region104: #{tpu_custom_call.1} parent=71 // pred_fallthru
          _
      $region72: #{tpu_custom_call.1} parent=5 // pred_fallthru
        _
      %p6021 = scmp.le.s32.totalorder 2, %s30
      // Predicated region
      $region105: #{tpu_custom_call.1} parent=5 // pred_check
        %p6022 = pneg %p6021
      $region106: #{tpu_custom_call.1} parent=5 // pred_check_branch
        %6024 = sbr.rel (%p6022) target = $region108
      $region107: #{tpu_custom_call.1} parent=5 // pred_region
        %s6025 = ssub.s32 %s30, 2
        // Predicated region
        $region109: #{tpu_custom_call.1} parent=107 // pred_check
          %p6026 = pneg %p351
        $region110: #{tpu_custom_call.1} parent=107 // pred_check_branch
          %6028 = sbr.rel (%p6026) target = $region112
        $region111: #{tpu_custom_call.1} parent=107 // pred_region
          %s6029 = sand.u32 %s336, 1
          %s6030 = scalar_lea.sflag [#allocation4], %s6029
          %s6031 = sand.u32 %s336, 1
          %s6032 = smul.addr %s6031, 8
          %s6033 = scalar_lea.vmem [#allocation10], %s6032
          %6034 = dma.done %s6030, 128
        $region112: #{tpu_custom_call.1} parent=107 // pred_fallthru
          _
        // Predicated region
        $region113: #{tpu_custom_call.1} parent=107 // pred_check
          %p6035 = pneg %p377
        $region114: #{tpu_custom_call.1} parent=107 // pred_check_branch
          %6037 = sbr.rel (%p6035) target = $region116
        $region115: #{tpu_custom_call.1} parent=107 // pred_region
          %s6038 = sand.u32 %s362, 1
          %s6039 = scalar_lea.sflag [#allocation12], %s6038
          %s6040 = sand.u32 %s362, 1
          %s6041 = scalar_lea.vmem [#allocation11], %s6040
          %6042 = dma.done %s6039, 16
        $region116: #{tpu_custom_call.1} parent=107 // pred_fallthru
          _
      $region108: #{tpu_custom_call.1} parent=5 // pred_fallthru
        _
    $region6: #{tpu_custom_call.1} parent=1 // loop_footer
      %s34 = sadd.s32 1, %s30
    $region7: #{tpu_custom_call.1} parent=1 // loop_footer_branch
      %29 = sbr.rel target = $region3
    $region8: #{tpu_custom_call.1} parent=1 // loop_exit
      _
    %6043 = vsyncpa [#allocation3], 1
    %s6044 = scalar_lea.sflag [#allocation3], 1
    %6045 = vsyncpa %s6044, 1
    %6046 = vsyncpa [#allocation6], 1
    %6047 = vsyncpa [#allocation9], 1
    %6048 = vsyncpa [#allocation4], 1
    %s6049 = scalar_lea.sflag [#allocation4], 1
    %6050 = vsyncpa %s6049, 1
    %6051 = vsyncpa [#allocation12], 1
    %s6052 = scalar_lea.sflag [#allocation12], 1
    %6053 = vsyncpa %s6052, 1

</llo_original>
